<compile_context>
chip_gen: v5e
topology: v5e:2x2
jax: 0.10.0
libtpu: 0.0.40
codegen_flags: <defaults>
</compile_context>

<pallas_src>
import functools

import jax
import jax.numpy as jnp
import numpy as np
from jax.experimental import pallas as pl
from jax.experimental.pallas import tpu as pltpu


def _leaky(x, slope=0.2):
    return jnp.where(x > 0, x, slope * x)


def _round_up(x, m):
    return ((x + m - 1) // m) * m


# --------------------------------------------------------------------------------------
# Kernel: processes BT bags per grid step; every parameter resident in VMEM.
# --------------------------------------------------------------------------------------
def net_kernel(bag_ref,                                   # (BT*N, agg_in)
               w_ai_ref,                                  # fused [ascend_dim | ins layer-1]
               a_e_w_ref,                                 # (agg_out, 1)
               b1_w_ref, b2_w_ref,                        # bag_info MLP tail
               i2p_w_ref,                                 # ins layer-2, zero-row padded
               s_asc_w_ref, s_e_wb_ref,                   # SelfAttention
               f_w_ref,                                   # classifier, lane-padded
               bias_ref,                                  # (8, 128) bias slab
               out_ref,                                   # (BT, nc_pad)
               *, bt, n_ins):
    f32 = jnp.float32
    agg_out = a_e_w_ref.shape[0]
    p_ai = w_ai_ref.shape[1]                   # agg_out + ins_hidden
    b1_dim = b1_w_ref.shape[1]
    self_in = b2_w_ref.shape[1]
    self_out = s_asc_w_ref.shape[1]
    nc_pad = f_w_ref.shape[1]

    bag = bag_ref[...].astype(f32)                                      # (BT*N, agg_in)

    # ---- fused layer-1: [AttentionInBag.ascend_dim | ins_info.Linear1], one MXU dot ----
    z = _leaky(jnp.dot(bag, w_ai_ref[...], preferred_element_type=f32)
               + bias_ref[0:1, :p_ai])                                  # (BT*N, p_ai)
    h2 = z[:, :agg_out]                                                 # aligned prefix slice

    # ---- AttentionInBag: per-bag softmax over the N instances ----
    # (a_e_b is a constant shift shared by every logit of a bag -> cancels in the softmax)
    e = jnp.dot(h2, a_e_w_ref[...], preferred_element_type=f32)         # (BT*N, 1)
    e3 = e.reshape(bt, n_ins, 1)                                        # (BT, N, 1)
    m = jnp.max(e3, axis=1, keepdims=True)
    p = jnp.exp(e3 - m)
    alpha = p / jnp.sum(p, axis=1, keepdims=True)                       # (BT, N, 1)
    h3 = h2.reshape(bt, n_ins, agg_out)
    x_bag = jnp.sum(alpha * h3, axis=1)                                 # (BT, agg_out)

    # ---- bag_info MLP tail ----
    bi = _leaky(x_bag)
    bi = _leaky(jnp.dot(bi, b1_w_ref[...], preferred_element_type=f32)
                + bias_ref[1:2, :b1_dim])
    bag_info = (jnp.dot(bi, b2_w_ref[...], preferred_element_type=f32)
                + bias_ref[2:3, :self_in])                              # (BT, self_in)

    # ---- ins_info layer-2: i2_w is zero-row padded to p_ai rows, so the whole z feeds it
    #      directly (the ascend_dim columns multiply zeros) — no unaligned lane slice.
    ins = (jnp.dot(z, i2p_w_ref[...], preferred_element_type=f32)
           + bias_ref[3:4, :self_in])                                   # (BT*N, self_in)

    # ---- SelfAttention over total_info = [bag_info ; ins_info] per bag -----------------
    # Fused dots: stack the BT center rows on top of the BT*N instance rows (sublane-aligned
    # split since BT % 8 == 0), one dot per weight instead of two.
    total = jnp.concatenate([bag_info, ins], axis=0)                    # (BT + BT*N, self_in)
    h_all = _leaky(jnp.dot(total, s_asc_w_ref[...], preferred_element_type=f32)
                   + bias_ref[4:5, :self_out])                          # (BT + BT*N, self_out)
    # e_i = [center ; h_i] @ W_e + b ; the center@W_top term and b are identical for every i
    # within a bag and cancel in the softmax, leaving only h_i @ W_bot.
    e_all = jnp.dot(h_all, s_e_wb_ref[...], preferred_element_type=f32)  # (BT + BT*N, 1)

    h0 = h_all[:bt]                                                     # (BT, self_out) centers
    hr = h_all[bt:]                                                     # (BT*N, self_out)
    e0 = e_all[:bt].reshape(bt, 1, 1)
    er = e_all[bt:].reshape(bt, n_ins, 1)

    m2 = jnp.maximum(jnp.max(er, axis=1, keepdims=True), e0)            # (BT, 1, 1)
    p0 = jnp.exp(e0 - m2)
    pr = jnp.exp(er - m2)
    denom = p0 + jnp.sum(pr, axis=1, keepdims=True)                     # (BT, 1, 1)
    hr3 = hr.reshape(bt, n_ins, self_out)
    agg = (p0[:, 0, :] * h0 + jnp.sum(pr * hr3, axis=1)) / denom[:, 0, :]  # (BT, self_out)

    # ---- classifier (lane-dense, padded to nc_pad columns) ----
    y = (jnp.dot(_leaky(agg), f_w_ref[...], preferred_element_type=f32)
         + bias_ref[5:6, :nc_pad])                                      # (BT, nc_pad)
    out_ref[...] = y.astype(out_ref.dtype)


# --------------------------------------------------------------------------------------
# Wrapper: packs fused/padded weights, builds the bias slab, grid and BlockSpecs.
# --------------------------------------------------------------------------------------
def net_forward(bags, params, *, bags_per_tile=32):
    """bags: (B, N, agg_in)  ->  logits: (B, n_class)."""
    B, N, agg_in = bags.shape
    agg_out = params["a_asc_w"].shape[1]
    ins_hidden = params["i1_w"].shape[1]
    self_in = params["b2_w"].shape[1]
    self_out = params["s_asc_w"].shape[1]
    n_class = params["f_w"].shape[1]

    assert bags_per_tile % 8 == 0, "bags_per_tile must be a multiple of 8"
    bt = min(bags_per_tile, _round_up(B, 8))
    b_pad = _round_up(B, bt)
    if b_pad != B:
        bags = jnp.pad(bags, ((0, b_pad - B), (0, 0), (0, 0)))

    # HBM reshape is free metadata: DMA lands directly in matmul-LHS layout.
    bags2d = bags.reshape(b_pad * N, agg_in).astype(jnp.float32)

    # Fused layer-1 weights/biases: [ascend_dim | ins layer-1] packed contiguously.
    w_ai = jnp.concatenate([params["a_asc_w"], params["i1_w"]], axis=1)   # (agg_in, p_ai)
    b_ai = jnp.concatenate([params["a_asc_b"], params["i1_b"]], axis=1)   # (1, p_ai)
    p_ai = agg_out + ins_hidden

    # ins layer-2 weight zero-row padded so the whole fused z can feed it (exact, no slice).
    i2p_w = jnp.zeros((p_ai, self_in), jnp.float32).at[agg_out:, :].set(params["i2_w"])

    # Lane-dense classifier: pad n_class columns up to a multiple of 128.
    nc_pad = _round_up(max(n_class, 1), 128)
    f_w = jnp.zeros((self_out, nc_pad), jnp.float32).at[:, :n_class].set(params["f_w"])
    f_b = jnp.zeros((1, nc_pad), jnp.float32).at[:, :n_class].set(params["f_b"])

    # All (1, X) biases packed into one slab (row r = bias r, zero-padded lanes).
    bias_rows = [b_ai, params["b1_b"], params["b2_b"], params["i2_b"], params["s_asc_b"], f_b]
    slab_w = _round_up(max(b.shape[1] for b in bias_rows), 128)
    bias = jnp.zeros((8, slab_w), jnp.float32)
    for r, b in enumerate(bias_rows):
        bias = bias.at[r:r + 1, :b.shape[1]].set(b)

    weight_args = (w_ai, params["a_e_w"],
                   params["b1_w"], params["b2_w"],
                   i2p_w,
                   params["s_asc_w"], params["s_e_wb"],
                   f_w, bias)

    # Weights/bias slab: constant index_map -> DMA'd once, resident in VMEM across the grid.
    weight_specs = [pl.BlockSpec(w.shape, lambda b: (0, 0)) for w in weight_args]
    bag_spec = pl.BlockSpec((bt * N, agg_in), lambda b: (b, 0))
    out_spec = pl.BlockSpec((bt, nc_pad), lambda b: (b, 0))

    kernel = functools.partial(net_kernel, bt=bt, n_ins=N)

    out = pl.pallas_call(
        kernel,
        out_shape=jax.ShapeDtypeStruct((b_pad, nc_pad), jnp.float32),
        grid_spec=pltpu.PrefetchScalarGridSpec(
            num_scalar_prefetch=0,
            grid=(b_pad // bt,),
            in_specs=[bag_spec] + weight_specs,
            out_specs=out_spec,
        ),
        compiler_params=pltpu.CompilerParams(
            dimension_semantics=("parallel",)),   # v7x: bag tiles split across both TCs
    )(bags2d, *weight_args)
    return out[:B, :n_class]


# ---------------- deterministic parameter init (PyTorch-Linear-style uniform) ----------------
def _linear(key, fan_in, fan_out):
    kw, kb = jax.random.split(key)
    bound = 1.0 / np.sqrt(fan_in)
    w = jax.random.uniform(kw, (fan_in, fan_out), jnp.float32, -bound, bound)   # stored (in, out)
    b = jax.random.uniform(kb, (1, fan_out), jnp.float32, -bound, bound)
    return w, b


def init_params(key, agg_in, agg_out, self_in, self_out, n_class):
    keys = jax.random.split(key, 9)
    p = {}
    p["a_asc_w"], p["a_asc_b"] = _linear(keys[0], agg_in, agg_out)
    p["a_e_w"], p["a_e_b"] = _linear(keys[1], agg_out, 1)
    p["b1_w"], p["b1_b"] = _linear(keys[2], agg_out, agg_out // 10)
    p["b2_w"], p["b2_b"] = _linear(keys[3], agg_out // 10, self_in)
    p["i1_w"], p["i1_b"] = _linear(keys[4], agg_in, agg_in // 2)
    p["i2_w"], p["i2_b"] = _linear(keys[5], agg_in // 2, self_in)
    p["s_asc_w"], p["s_asc_b"] = _linear(keys[6], self_in, self_out)
    s_e_w, p["s_e_b"] = _linear(keys[7], 2 * self_out, 1)
    p["s_e_wt"] = s_e_w[:self_out]        # multiplies the repeated center instance
    p["s_e_wb"] = s_e_w[self_out:]        # multiplies each row of the (ascended) bag
    p["f_w"], p["f_b"] = _linear(keys[8], self_out, n_class)
    return p


# ---------------- pure-JAX reference (mirrors the PyTorch forward literally) ----------------
def net_reference(bag, p):
    leaky = lambda x: jnp.where(x > 0, x, 0.2 * x)
    h = leaky(bag @ p["a_asc_w"] + p["a_asc_b"])
    e = (h @ p["a_e_w"] + p["a_e_b"]).reshape(1, -1)
    alpha = jax.nn.softmax(e, axis=1)
    x_bag = alpha @ h
    bi = leaky(x_bag)
    bi = leaky(bi @ p["b1_w"] + p["b1_b"])
    bag_info = bi @ p["b2_w"] + p["b2_b"]
    ii = leaky(bag @ p["i1_w"] + p["i1_b"])
    ins_info = ii @ p["i2_w"] + p["i2_b"]
    total = jnp.concatenate([bag_info, ins_info], axis=0)
    hh = leaky(total @ p["s_asc_w"] + p["s_asc_b"])
    center = jnp.tile(hh[0:1], (hh.shape[0], 1))
    sn = jnp.concatenate([center, hh], axis=1)
    s_e_w = jnp.concatenate([p["s_e_wt"], p["s_e_wb"]], axis=0)
    e2 = (sn @ s_e_w + p["s_e_b"]).reshape(1, -1)
    alpha2 = jax.nn.softmax(e2, axis=1)
    agg = alpha2 @ hh
    x = leaky(agg)
    return x @ p["f_w"] + p["f_b"]


if __name__ == "__main__":
    # B bags, each with N instances of agg_in features.
    B, N = 64, 8
    agg_in, agg_out, self_in, self_out, n_class = 32, 40, 16, 16, 2

    key = jax.random.PRNGKey(0)
    k_bag, k_par = jax.random.split(key)
    bags = jax.random.normal(k_bag, (B, N, agg_in), dtype=jnp.float32)
    params = init_params(k_par, agg_in, agg_out, self_in, self_out, n_class)

    y = net_forward(bags, params, bags_per_tile=32)   # grid=(2,): both v7x TCs get work
    y = jax.block_until_ready(y)

    y_ref = jax.vmap(lambda b: net_reference(b, params)[0])(bags)   # (B, n_class)
    assert y.shape == (B, n_class)
    assert np.allclose(np.asarray(y), np.asarray(y_ref), atol=1e-4, rtol=1e-4), (y, y_ref)

    print("KERNEL_OK")
</pallas_src>

<mosaic_0001>
module attributes {stable_mosaic.version = 11 : i64} {
  func.func @net_kernel(%arg0: i32, %arg1: memref<256x32xf32, #tpu.memory_space<vmem>>, %arg2: memref<32x56xf32, #tpu.memory_space<vmem>>, %arg3: memref<40x1xf32, #tpu.memory_space<vmem>>, %arg4: memref<40x4xf32, #tpu.memory_space<vmem>>, %arg5: memref<4x16xf32, #tpu.memory_space<vmem>>, %arg6: memref<56x16xf32, #tpu.memory_space<vmem>>, %arg7: memref<16x16xf32, #tpu.memory_space<vmem>>, %arg8: memref<16x1xf32, #tpu.memory_space<vmem>>, %arg9: memref<16x128xf32, #tpu.memory_space<vmem>>, %arg10: memref<8x128xf32, #tpu.memory_space<vmem>>, %arg11: memref<32x128xf32, #tpu.memory_space<vmem>>) attributes {dimension_semantics = [#tpu.dimension_semantics<parallel>], iteration_bounds = array<i64: 2>, scalar_prefetch = 0 : i64, scratch_operands = 0 : i64, tpu.core_type = #tpu.core_type<tc>, window_params = [{transform_indices = @transform_0, window_bounds = array<i64: 256, 32>}, {pipeline_mode = #tpu.pipeline_mode<synchronous>, transform_indices = @transform_1, window_bounds = array<i64: 32, 56>}, {pipeline_mode = #tpu.pipeline_mode<synchronous>, transform_indices = @transform_2, window_bounds = array<i64: 40, 1>}, {pipeline_mode = #tpu.pipeline_mode<synchronous>, transform_indices = @transform_3, window_bounds = array<i64: 40, 4>}, {pipeline_mode = #tpu.pipeline_mode<synchronous>, transform_indices = @transform_4, window_bounds = array<i64: 4, 16>}, {pipeline_mode = #tpu.pipeline_mode<synchronous>, transform_indices = @transform_5, window_bounds = array<i64: 56, 16>}, {pipeline_mode = #tpu.pipeline_mode<synchronous>, transform_indices = @transform_6, window_bounds = array<i64: 16, 16>}, {pipeline_mode = #tpu.pipeline_mode<synchronous>, transform_indices = @transform_7, window_bounds = array<i64: 16, 1>}, {pipeline_mode = #tpu.pipeline_mode<synchronous>, transform_indices = @transform_8, window_bounds = array<i64: 16, 128>}, {pipeline_mode = #tpu.pipeline_mode<synchronous>, transform_indices = @transform_9, window_bounds = array<i64: 8, 128>}, {transform_indices = @transform_10, window_bounds = array<i64: 32, 128>}]} {
    %c0 = arith.constant 0 : index
    %c0_0 = arith.constant 0 : index
    %0 = vector.load %arg1[%c0, %c0_0] : memref<256x32xf32, #tpu.memory_space<vmem>>, vector<256x32xf32>
    %c0_1 = arith.constant 0 : index
    %c0_2 = arith.constant 0 : index
    %1 = vector.load %arg2[%c0_1, %c0_2] : memref<32x56xf32, #tpu.memory_space<vmem>>, vector<32x56xf32>
    %cst = arith.constant dense<0.000000e+00> : vector<256x56xf32>
    %2 = tpu.matmul %0, %1, %cst {dimension_numbers = #tpu.dot_dimension_numbers<[1], [0], [0], [1], [0, 0, 1, 1], [], []>} : vector<256x32xf32>, vector<32x56xf32>, vector<256x56xf32> -> vector<256x56xf32>
    %c0_3 = arith.constant 0 : index
    %c0_4 = arith.constant 0 : index
    %3 = vector.load %arg10[%c0_3, %c0_4] : memref<8x128xf32, #tpu.memory_space<vmem>>, vector<1x56xf32>
    %4 = vector.broadcast %3 : vector<1x56xf32> to vector<256x56xf32>
    %5 = arith.addf %2, %4 : vector<256x56xf32>
    %cst_5 = arith.constant 0.000000e+00 : f32
    %6 = vector.broadcast %cst_5 : f32 to vector<256x56xf32>
    %7 = arith.cmpf ogt, %5, %6 : vector<256x56xf32>
    %cst_6 = arith.constant 2.000000e-01 : f32
    %8 = vector.broadcast %cst_6 : f32 to vector<256x56xf32>
    %9 = arith.mulf %8, %5 : vector<256x56xf32>
    %10 = arith.select %7, %5, %9 : vector<256x56xi1>, vector<256x56xf32>
    %11 = vector.extract_strided_slice %10 {offsets = [0, 0], sizes = [256, 40], strides = [1, 1]} : vector<256x56xf32> to vector<256x40xf32>
    %c0_7 = arith.constant 0 : index
    %c0_8 = arith.constant 0 : index
    %12 = vector.load %arg3[%c0_7, %c0_8] : memref<40x1xf32, #tpu.memory_space<vmem>>, vector<40x1xf32>
    %cst_9 = arith.constant dense<0.000000e+00> : vector<256x1xf32>
    %13 = tpu.matmul %11, %12, %cst_9 {dimension_numbers = #tpu.dot_dimension_numbers<[1], [0], [0], [1], [0, 0, 1, 1], [], []>} : vector<256x40xf32>, vector<40x1xf32>, vector<256x1xf32> -> vector<256x1xf32>
    %14 = vector.shape_cast %13 : vector<256x1xf32> to vector<32x8x1xf32>
    %cst_10 = arith.constant dense<0xFF800000> : vector<32x1xf32>
    %15 = vector.multi_reduction <maximumf>, %14, %cst_10 [1] : vector<32x8x1xf32> to vector<32x1xf32>
    %16 = vector.shape_cast %15 : vector<32x1xf32> to vector<32x1x1xf32>
    %17 = vector.broadcast %16 : vector<32x1x1xf32> to vector<32x8x1xf32>
    %18 = arith.subf %14, %17 : vector<32x8x1xf32>
    %19 = math.exp %18 : vector<32x8x1xf32>
    %cst_11 = arith.constant dense<0.000000e+00> : vector<32x1xf32>
    %20 = vector.multi_reduction <add>, %19, %cst_11 [1] : vector<32x8x1xf32> to vector<32x1xf32>
    %21 = vector.shape_cast %20 : vector<32x1xf32> to vector<32x1x1xf32>
    %22 = vector.broadcast %21 : vector<32x1x1xf32> to vector<32x8x1xf32>
    %23 = arith.divf %19, %22 : vector<32x8x1xf32>
    %24 = vector.shape_cast %11 : vector<256x40xf32> to vector<32x8x40xf32>
    %25 = vector.broadcast %23 : vector<32x8x1xf32> to vector<32x8x40xf32>
    %26 = arith.mulf %25, %24 : vector<32x8x40xf32>
    %cst_12 = arith.constant dense<0.000000e+00> : vector<32x40xf32>
    %27 = vector.multi_reduction <add>, %26, %cst_12 [1] : vector<32x8x40xf32> to vector<32x40xf32>
    %cst_13 = arith.constant 0.000000e+00 : f32
    %28 = vector.broadcast %cst_13 : f32 to vector<32x40xf32>
    %29 = arith.cmpf ogt, %27, %28 : vector<32x40xf32>
    %cst_14 = arith.constant 2.000000e-01 : f32
    %30 = vector.broadcast %cst_14 : f32 to vector<32x40xf32>
    %31 = arith.mulf %30, %27 : vector<32x40xf32>
    %32 = arith.select %29, %27, %31 : vector<32x40xi1>, vector<32x40xf32>
    %c0_15 = arith.constant 0 : index
    %c0_16 = arith.constant 0 : index
    %33 = vector.load %arg4[%c0_15, %c0_16] : memref<40x4xf32, #tpu.memory_space<vmem>>, vector<40x4xf32>
    %cst_17 = arith.constant dense<0.000000e+00> : vector<32x4xf32>
    %34 = tpu.matmul %32, %33, %cst_17 {dimension_numbers = #tpu.dot_dimension_numbers<[1], [0], [0], [1], [0, 0, 1, 1], [], []>} : vector<32x40xf32>, vector<40x4xf32>, vector<32x4xf32> -> vector<32x4xf32>
    %c1 = arith.constant 1 : index
    %c0_18 = arith.constant 0 : index
    %35 = vector.load %arg10[%c1, %c0_18] : memref<8x128xf32, #tpu.memory_space<vmem>>, vector<1x4xf32>
    %36 = vector.broadcast %35 : vector<1x4xf32> to vector<32x4xf32>
    %37 = arith.addf %34, %36 : vector<32x4xf32>
    %cst_19 = arith.constant 0.000000e+00 : f32
    %38 = vector.broadcast %cst_19 : f32 to vector<32x4xf32>
    %39 = arith.cmpf ogt, %37, %38 : vector<32x4xf32>
    %cst_20 = arith.constant 2.000000e-01 : f32
    %40 = vector.broadcast %cst_20 : f32 to vector<32x4xf32>
    %41 = arith.mulf %40, %37 : vector<32x4xf32>
    %42 = arith.select %39, %37, %41 : vector<32x4xi1>, vector<32x4xf32>
    %c0_21 = arith.constant 0 : index
    %c0_22 = arith.constant 0 : index
    %43 = vector.load %arg5[%c0_21, %c0_22] : memref<4x16xf32, #tpu.memory_space<vmem>>, vector<4x16xf32>
    %cst_23 = arith.constant dense<0.000000e+00> : vector<32x16xf32>
    %44 = tpu.matmul %42, %43, %cst_23 {dimension_numbers = #tpu.dot_dimension_numbers<[1], [0], [0], [1], [0, 0, 1, 1], [], []>} : vector<32x4xf32>, vector<4x16xf32>, vector<32x16xf32> -> vector<32x16xf32>
    %c2 = arith.constant 2 : index
    %c0_24 = arith.constant 0 : index
    %45 = vector.load %arg10[%c2, %c0_24] : memref<8x128xf32, #tpu.memory_space<vmem>>, vector<1x16xf32>
    %46 = vector.broadcast %45 : vector<1x16xf32> to vector<32x16xf32>
    %47 = arith.addf %44, %46 : vector<32x16xf32>
    %c0_25 = arith.constant 0 : index
    %c0_26 = arith.constant 0 : index
    %48 = vector.load %arg6[%c0_25, %c0_26] : memref<56x16xf32, #tpu.memory_space<vmem>>, vector<56x16xf32>
    %cst_27 = arith.constant dense<0.000000e+00> : vector<256x16xf32>
    %49 = tpu.matmul %10, %48, %cst_27 {dimension_numbers = #tpu.dot_dimension_numbers<[1], [0], [0], [1], [0, 0, 1, 1], [], []>} : vector<256x56xf32>, vector<56x16xf32>, vector<256x16xf32> -> vector<256x16xf32>
    %c3 = arith.constant 3 : index
    %c0_28 = arith.constant 0 : index
    %50 = vector.load %arg10[%c3, %c0_28] : memref<8x128xf32, #tpu.memory_space<vmem>>, vector<1x16xf32>
    %51 = vector.broadcast %50 : vector<1x16xf32> to vector<256x16xf32>
    %52 = arith.addf %49, %51 : vector<256x16xf32>
    %53 = tpu.concatenate %47, %52 in 0 : vector<32x16xf32>, vector<256x16xf32> -> vector<288x16xf32>
    %c0_29 = arith.constant 0 : index
    %c0_30 = arith.constant 0 : index
    %54 = vector.load %arg7[%c0_29, %c0_30] : memref<16x16xf32, #tpu.memory_space<vmem>>, vector<16x16xf32>
    %cst_31 = arith.constant dense<0.000000e+00> : vector<288x16xf32>
    %55 = tpu.matmul %53, %54, %cst_31 {dimension_numbers = #tpu.dot_dimension_numbers<[1], [0], [0], [1], [0, 0, 1, 1], [], []>} : vector<288x16xf32>, vector<16x16xf32>, vector<288x16xf32> -> vector<288x16xf32>
    %c4 = arith.constant 4 : index
    %c0_32 = arith.constant 0 : index
    %56 = vector.load %arg10[%c4, %c0_32] : memref<8x128xf32, #tpu.memory_space<vmem>>, vector<1x16xf32>
    %57 = vector.broadcast %56 : vector<1x16xf32> to vector<288x16xf32>
    %58 = arith.addf %55, %57 : vector<288x16xf32>
    %cst_33 = arith.constant 0.000000e+00 : f32
    %59 = vector.broadcast %cst_33 : f32 to vector<288x16xf32>
    %60 = arith.cmpf ogt, %58, %59 : vector<288x16xf32>
    %cst_34 = arith.constant 2.000000e-01 : f32
    %61 = vector.broadcast %cst_34 : f32 to vector<288x16xf32>
    %62 = arith.mulf %61, %58 : vector<288x16xf32>
    %63 = arith.select %60, %58, %62 : vector<288x16xi1>, vector<288x16xf32>
    %c0_35 = arith.constant 0 : index
    %c0_36 = arith.constant 0 : index
    %64 = vector.load %arg8[%c0_35, %c0_36] : memref<16x1xf32, #tpu.memory_space<vmem>>, vector<16x1xf32>
    %cst_37 = arith.constant dense<0.000000e+00> : vector<288x1xf32>
    %65 = tpu.matmul %63, %64, %cst_37 {dimension_numbers = #tpu.dot_dimension_numbers<[1], [0], [0], [1], [0, 0, 1, 1], [], []>} : vector<288x16xf32>, vector<16x1xf32>, vector<288x1xf32> -> vector<288x1xf32>
    %66 = vector.extract_strided_slice %63 {offsets = [0, 0], sizes = [32, 16], strides = [1, 1]} : vector<288x16xf32> to vector<32x16xf32>
    %67 = vector.extract_strided_slice %63 {offsets = [32, 0], sizes = [256, 16], strides = [1, 1]} : vector<288x16xf32> to vector<256x16xf32>
    %68 = vector.extract_strided_slice %65 {offsets = [0, 0], sizes = [32, 1], strides = [1, 1]} : vector<288x1xf32> to vector<32x1xf32>
    %69 = vector.shape_cast %68 : vector<32x1xf32> to vector<32x1x1xf32>
    %70 = vector.extract_strided_slice %65 {offsets = [32, 0], sizes = [256, 1], strides = [1, 1]} : vector<288x1xf32> to vector<256x1xf32>
    %71 = vector.shape_cast %70 : vector<256x1xf32> to vector<32x8x1xf32>
    %cst_38 = arith.constant dense<0xFF800000> : vector<32x1xf32>
    %72 = vector.multi_reduction <maximumf>, %71, %cst_38 [1] : vector<32x8x1xf32> to vector<32x1xf32>
    %73 = vector.shape_cast %72 : vector<32x1xf32> to vector<32x1x1xf32>
    %74 = arith.maximumf %73, %69 : vector<32x1x1xf32>
    %75 = arith.subf %69, %74 : vector<32x1x1xf32>
    %76 = math.exp %75 : vector<32x1x1xf32>
    %77 = vector.broadcast %74 : vector<32x1x1xf32> to vector<32x8x1xf32>
    %78 = arith.subf %71, %77 : vector<32x8x1xf32>
    %79 = math.exp %78 : vector<32x8x1xf32>
    %cst_39 = arith.constant dense<0.000000e+00> : vector<32x1xf32>
    %80 = vector.multi_reduction <add>, %79, %cst_39 [1] : vector<32x8x1xf32> to vector<32x1xf32>
    %81 = vector.shape_cast %80 : vector<32x1xf32> to vector<32x1x1xf32>
    %82 = arith.addf %76, %81 : vector<32x1x1xf32>
    %83 = vector.shape_cast %67 : vector<256x16xf32> to vector<32x8x16xf32>
    %84 = vector.shape_cast %76 : vector<32x1x1xf32> to vector<32x1xf32>
    %85 = vector.broadcast %84 : vector<32x1xf32> to vector<32x16xf32>
    %86 = arith.mulf %85, %66 : vector<32x16xf32>
    %87 = vector.broadcast %79 : vector<32x8x1xf32> to vector<32x8x16xf32>
    %88 = arith.mulf %87, %83 : vector<32x8x16xf32>
    %cst_40 = arith.constant dense<0.000000e+00> : vector<32x16xf32>
    %89 = vector.multi_reduction <add>, %88, %cst_40 [1] : vector<32x8x16xf32> to vector<32x16xf32>
    %90 = arith.addf %86, %89 : vector<32x16xf32>
    %91 = vector.shape_cast %82 : vector<32x1x1xf32> to vector<32x1xf32>
    %92 = vector.broadcast %91 : vector<32x1xf32> to vector<32x16xf32>
    %93 = arith.divf %90, %92 : vector<32x16xf32>
    %cst_41 = arith.constant 0.000000e+00 : f32
    %94 = vector.broadcast %cst_41 : f32 to vector<32x16xf32>
    %95 = arith.cmpf ogt, %93, %94 : vector<32x16xf32>
    %cst_42 = arith.constant 2.000000e-01 : f32
    %96 = vector.broadcast %cst_42 : f32 to vector<32x16xf32>
    %97 = arith.mulf %96, %93 : vector<32x16xf32>
    %98 = arith.select %95, %93, %97 : vector<32x16xi1>, vector<32x16xf32>
    %c0_43 = arith.constant 0 : index
    %c0_44 = arith.constant 0 : index
    %99 = vector.load %arg9[%c0_43, %c0_44] : memref<16x128xf32, #tpu.memory_space<vmem>>, vector<16x128xf32>
    %cst_45 = arith.constant dense<0.000000e+00> : vector<32x128xf32>
    %100 = tpu.matmul %98, %99, %cst_45 {dimension_numbers = #tpu.dot_dimension_numbers<[1], [0], [0], [1], [0, 0, 1, 1], [], []>} : vector<32x16xf32>, vector<16x128xf32>, vector<32x128xf32> -> vector<32x128xf32>
    %c5 = arith.constant 5 : index
    %c0_46 = arith.constant 0 : index
    %101 = vector.load %arg10[%c5, %c0_46] : memref<8x128xf32, #tpu.memory_space<vmem>>, vector<1x128xf32>
    %102 = vector.broadcast %101 : vector<1x128xf32> to vector<32x128xf32>
    %103 = arith.addf %100, %102 : vector<32x128xf32>
    %c0_47 = arith.constant 0 : index
    %c0_48 = arith.constant 0 : index
    %104 = vector.load %arg11[%c0_47, %c0_48] : memref<32x128xf32, #tpu.memory_space<vmem>>, vector<32x128xf32>
    tpu.vector_store %arg11[%c0_47, %c0_48], %103 {strides = array<i32>} : memref<32x128xf32, #tpu.memory_space<vmem>>, vector<32x128xf32>,
    return
  }
  func.func @transform_0(%arg0: i32) -> (i32, i32) {
    %c0_i32 = arith.constant 0 : i32
    %c0_i32_0 = arith.constant 0 : i32
    return %arg0, %c0_i32 : i32, i32
  }
  func.func @transform_1(%arg0: i32) -> (i32, i32) {
    %c0_i32 = arith.constant 0 : i32
    %c0_i32_0 = arith.constant 0 : i32
    %c0_i32_1 = arith.constant 0 : i32
    return %c0_i32, %c0_i32_0 : i32, i32
  }
  func.func @transform_2(%arg0: i32) -> (i32, i32) {
    %c0_i32 = arith.constant 0 : i32
    %c0_i32_0 = arith.constant 0 : i32
    %c0_i32_1 = arith.constant 0 : i32
    return %c0_i32, %c0_i32_0 : i32, i32
  }
  func.func @transform_3(%arg0: i32) -> (i32, i32) {
    %c0_i32 = arith.constant 0 : i32
    %c0_i32_0 = arith.constant 0 : i32
    %c0_i32_1 = arith.constant 0 : i32
    return %c0_i32, %c0_i32_0 : i32, i32
  }
  func.func @transform_4(%arg0: i32) -> (i32, i32) {
    %c0_i32 = arith.constant 0 : i32
    %c0_i32_0 = arith.constant 0 : i32
    %c0_i32_1 = arith.constant 0 : i32
    return %c0_i32, %c0_i32_0 : i32, i32
  }
  func.func @transform_5(%arg0: i32) -> (i32, i32) {
    %c0_i32 = arith.constant 0 : i32
    %c0_i32_0 = arith.constant 0 : i32
    %c0_i32_1 = arith.constant 0 : i32
    return %c0_i32, %c0_i32_0 : i32, i32
  }
  func.func @transform_6(%arg0: i32) -> (i32, i32) {
    %c0_i32 = arith.constant 0 : i32
    %c0_i32_0 = arith.constant 0 : i32
    %c0_i32_1 = arith.constant 0 : i32
    return %c0_i32, %c0_i32_0 : i32, i32
  }
  func.func @transform_7(%arg0: i32) -> (i32, i32) {
    %c0_i32 = arith.constant 0 : i32
    %c0_i32_0 = arith.constant 0 : i32
    %c0_i32_1 = arith.constant 0 : i32
    return %c0_i32, %c0_i32_0 : i32, i32
  }
  func.func @transform_8(%arg0: i32) -> (i32, i32) {
    %c0_i32 = arith.constant 0 : i32
    %c0_i32_0 = arith.constant 0 : i32
    %c0_i32_1 = arith.constant 0 : i32
    return %c0_i32, %c0_i32_0 : i32, i32
  }
  func.func @transform_9(%arg0: i32) -> (i32, i32) {
    %c0_i32 = arith.constant 0 : i32
    %c0_i32_0 = arith.constant 0 : i32
    %c0_i32_1 = arith.constant 0 : i32
    return %c0_i32, %c0_i32_0 : i32, i32
  }
  func.func @transform_10(%arg0: i32) -> (i32, i32) {
    %c0_i32 = arith.constant 0 : i32
    %c0_i32_0 = arith.constant 0 : i32
    return %arg0, %c0_i32 : i32, i32
  }
}

</mosaic_0001>

<llo_original>
// kernel: tpu_custom_call.1
$region0: #{tpu_custom_call.1}
  #allocation0 [shape = 'u32[]', space=smem, size = 0x4, offset = 0x4, fixed_abs, tag = 'smem constant byte address 0x4 - core index']
  #allocation1 [shape = 'u32[72,128]{1,0:T(1,128)}', space=vmem, size = 0x9000, scoped, tag = 'internal scratch']
  %s0 = inlined_call_operand.vmem [shape: f32[512,32], index: 0, kind: input, shape index: {}]
  %s1 = inlined_call_operand.vmem [shape: f32[32,56], index: 1, kind: input, shape index: {}]
  %s2 = inlined_call_operand.vmem [shape: f32[40,1], index: 2, kind: input, shape index: {}]
  %s3 = inlined_call_operand.vmem [shape: f32[40,4], index: 3, kind: input, shape index: {}]
  %s4 = inlined_call_operand.vmem [shape: f32[4,16], index: 4, kind: input, shape index: {}]
  %s5 = inlined_call_operand.vmem [shape: f32[56,16], index: 5, kind: input, shape index: {}]
  %s6 = inlined_call_operand.vmem [shape: f32[16,16], index: 6, kind: input, shape index: {}]
  %s7 = inlined_call_operand.vmem [shape: f32[16,1], index: 7, kind: input, shape index: {}]
  %s8 = inlined_call_operand.vmem [shape: f32[16,128], index: 8, kind: input, shape index: {}]
  %s9 = inlined_call_operand.vmem [shape: f32[8,128], index: 9, kind: input, shape index: {}]
  %s10 = inlined_call_operand.hbm [shape: f32[64,128], index: 10, kind: output, shape index: {}]
  %s11 = sld [smem:[#allocation0]]
  $region73: #{tpu_custom_call.1} parent=0
    _
  %s13 = ssub.s32 1, %s11
  %s14 = scalar_select 0, %s13, %s11
  $region1: #{tpu_custom_call.1} parent=0
    #allocation2 [shape = 'u8[32768]{0}', space=vmem, size = 0x8000, scoped, tag = 'output window, operand 0']
    #allocation3 [shape = 's32[2]{0}', space=sflag, size = 0x8, scoped, tag = 'scoped memory for tpu_custom_call.1']
    %15 = vsyncpa [#allocation3], 0
    %s16 = scalar_lea.sflag [#allocation3], 1
    %17 = vsyncpa %s16, 0
    loop: start=0, step=1, limit=4
    $region2: #{tpu_custom_call.1} parent=1 // loop_pre_header
      _
    $region3: #{tpu_custom_call.1} parent=1 // loop_header
      %s19 = sphi 0, %s23
      %p20 = scmp.ge.s32.totalorder %s19, 4
      %s29 = sphi 0, %s31
      %s32 = sphi 0, %s29
      %s33 = sphi 0, %s32
      %s49 = sphi 0, %s33
      %s53 = sphi 0, %s53
      %s55 = sphi 0, %s53
      %s56 = sphi 0, %s55
      %s70 = sphi 0, %s56
      %s74 = sphi 0, %s74
      %s76 = sphi 0, %s74
      %s77 = sphi 0, %s76
      %s91 = sphi 0, %s77
      %s95 = sphi 0, %s95
      %s97 = sphi 0, %s95
      %s98 = sphi 0, %s97
      %s112 = sphi 0, %s98
      %s116 = sphi 0, %s116
      %s118 = sphi 0, %s116
      %s119 = sphi 0, %s118
      %s133 = sphi 0, %s119
      %s137 = sphi 0, %s137
      %s139 = sphi 0, %s137
      %s140 = sphi 0, %s139
      %s154 = sphi 0, %s140
      %s158 = sphi 0, %s158
      %s160 = sphi 0, %s158
      %s161 = sphi 0, %s160
      %s175 = sphi 0, %s161
      %s179 = sphi 0, %s179
      %s181 = sphi 0, %s179
      %s182 = sphi 0, %s181
      %s196 = sphi 0, %s182
      %s200 = sphi 0, %s200
      %s202 = sphi 0, %s200
      %s203 = sphi 0, %s202
      %s217 = sphi 0, %s203
      %s221 = sphi 0, %s221
      %s223 = sphi 0, %s221
      %s224 = sphi 0, %s223
      %s238 = sphi 0, %s224
      %s244 = sphi 0, %s246
      %s247 = sphi 0, %s244
      %s248 = sphi 0, %s247
      %s264 = sphi 0, %s248
    $region4: #{tpu_custom_call.1} parent=1 // loop_header_branch
      %22 = sbr.rel (%p20) target = $region8
    $region5: #{tpu_custom_call.1} parent=1 // loop_body
      %s24 = ssub.s32 %s19, 1
      %s25 = ssub.s32 %s19, 2
      %s26 = sadd.s32 %s19, 1
      %s27 = ssub.s32 %s19, %s26
      %p28 = scmp.eq.s32.totalorder %s27, 0
      %s30 = sadd.s32 %s29, 1
      %s31 = scalar_select %p28, %s29, %s30
      %p34 = pneg %p28
      %p35 = scmp.eq.s32.totalorder %s19, 1
      %p36 = por %p34, %p35
      %p37 = scmp.ne.s32.totalorder %s29, %s32
      %p38 = scmp.eq.s32.totalorder %s19, 0
      %p39 = por %p37, %p38
      %p40 = scmp.ne.s32.totalorder %s29, %s32
      %p41 = scmp.eq.s32.totalorder %s24, 1
      %p42 = por %p40, %p41
      %p43 = scmp.ne.s32.totalorder %s32, %s33
      %p44 = scmp.eq.s32.totalorder %s24, 0
      %p45 = por %p43, %p44
      %p46 = scmp.ne.s32.totalorder %s32, %s33
      %p47 = scmp.eq.s32.totalorder %s25, 1
      %p48 = por %p46, %p47
      %p50 = scmp.ne.s32.totalorder %s33, %s49
      %p51 = scmp.eq.s32.totalorder %s25, 0
      %p52 = por %p50, %p51
      %s54 = sadd.s32 %s53, 1
      %p57 = scmp.eq.s32.totalorder %s19, 1
      %p58 = scmp.ne.s32.totalorder %s53, %s55
      %p59 = scmp.eq.s32.totalorder %s19, 0
      %p60 = por %p58, %p59
      %p61 = scmp.ne.s32.totalorder %s53, %s55
      %p62 = scmp.eq.s32.totalorder %s24, 1
      %p63 = por %p61, %p62
      %p64 = scmp.ne.s32.totalorder %s55, %s56
      %p65 = scmp.eq.s32.totalorder %s24, 0
      %p66 = por %p64, %p65
      %p67 = scmp.ne.s32.totalorder %s55, %s56
      %p68 = scmp.eq.s32.totalorder %s25, 1
      %p69 = por %p67, %p68
      %p71 = scmp.ne.s32.totalorder %s56, %s70
      %p72 = scmp.eq.s32.totalorder %s25, 0
      %p73 = por %p71, %p72
      %s75 = sadd.s32 %s74, 1
      %p78 = scmp.eq.s32.totalorder %s19, 1
      %p79 = scmp.ne.s32.totalorder %s74, %s76
      %p80 = scmp.eq.s32.totalorder %s19, 0
      %p81 = por %p79, %p80
      %p82 = scmp.ne.s32.totalorder %s74, %s76
      %p83 = scmp.eq.s32.totalorder %s24, 1
      %p84 = por %p82, %p83
      %p85 = scmp.ne.s32.totalorder %s76, %s77
      %p86 = scmp.eq.s32.totalorder %s24, 0
      %p87 = por %p85, %p86
      %p88 = scmp.ne.s32.totalorder %s76, %s77
      %p89 = scmp.eq.s32.totalorder %s25, 1
      %p90 = por %p88, %p89
      %p92 = scmp.ne.s32.totalorder %s77, %s91
      %p93 = scmp.eq.s32.totalorder %s25, 0
      %p94 = por %p92, %p93
      %s96 = sadd.s32 %s95, 1
      %p99 = scmp.eq.s32.totalorder %s19, 1
      %p100 = scmp.ne.s32.totalorder %s95, %s97
      %p101 = scmp.eq.s32.totalorder %s19, 0
      %p102 = por %p100, %p101
      %p103 = scmp.ne.s32.totalorder %s95, %s97
      %p104 = scmp.eq.s32.totalorder %s24, 1
      %p105 = por %p103, %p104
      %p106 = scmp.ne.s32.totalorder %s97, %s98
      %p107 = scmp.eq.s32.totalorder %s24, 0
      %p108 = por %p106, %p107
      %p109 = scmp.ne.s32.totalorder %s97, %s98
      %p110 = scmp.eq.s32.totalorder %s25, 1
      %p111 = por %p109, %p110
      %p113 = scmp.ne.s32.totalorder %s98, %s112
      %p114 = scmp.eq.s32.totalorder %s25, 0
      %p115 = por %p113, %p114
      %s117 = sadd.s32 %s116, 1
      %p120 = scmp.eq.s32.totalorder %s19, 1
      %p121 = scmp.ne.s32.totalorder %s116, %s118
      %p122 = scmp.eq.s32.totalorder %s19, 0
      %p123 = por %p121, %p122
      %p124 = scmp.ne.s32.totalorder %s116, %s118
      %p125 = scmp.eq.s32.totalorder %s24, 1
      %p126 = por %p124, %p125
      %p127 = scmp.ne.s32.totalorder %s118, %s119
      %p128 = scmp.eq.s32.totalorder %s24, 0
      %p129 = por %p127, %p128
      %p130 = scmp.ne.s32.totalorder %s118, %s119
      %p131 = scmp.eq.s32.totalorder %s25, 1
      %p132 = por %p130, %p131
      %p134 = scmp.ne.s32.totalorder %s119, %s133
      %p135 = scmp.eq.s32.totalorder %s25, 0
      %p136 = por %p134, %p135
      %s138 = sadd.s32 %s137, 1
      %p141 = scmp.eq.s32.totalorder %s19, 1
      %p142 = scmp.ne.s32.totalorder %s137, %s139
      %p143 = scmp.eq.s32.totalorder %s19, 0
      %p144 = por %p142, %p143
      %p145 = scmp.ne.s32.totalorder %s137, %s139
      %p146 = scmp.eq.s32.totalorder %s24, 1
      %p147 = por %p145, %p146
      %p148 = scmp.ne.s32.totalorder %s139, %s140
      %p149 = scmp.eq.s32.totalorder %s24, 0
      %p150 = por %p148, %p149
      %p151 = scmp.ne.s32.totalorder %s139, %s140
      %p152 = scmp.eq.s32.totalorder %s25, 1
      %p153 = por %p151, %p152
      %p155 = scmp.ne.s32.totalorder %s140, %s154
      %p156 = scmp.eq.s32.totalorder %s25, 0
      %p157 = por %p155, %p156
      %s159 = sadd.s32 %s158, 1
      %p162 = scmp.eq.s32.totalorder %s19, 1
      %p163 = scmp.ne.s32.totalorder %s158, %s160
      %p164 = scmp.eq.s32.totalorder %s19, 0
      %p165 = por %p163, %p164
      %p166 = scmp.ne.s32.totalorder %s158, %s160
      %p167 = scmp.eq.s32.totalorder %s24, 1
      %p168 = por %p166, %p167
      %p169 = scmp.ne.s32.totalorder %s160, %s161
      %p170 = scmp.eq.s32.totalorder %s24, 0
      %p171 = por %p169, %p170
      %p172 = scmp.ne.s32.totalorder %s160, %s161
      %p173 = scmp.eq.s32.totalorder %s25, 1
      %p174 = por %p172, %p173
      %p176 = scmp.ne.s32.totalorder %s161, %s175
      %p177 = scmp.eq.s32.totalorder %s25, 0
      %p178 = por %p176, %p177
      %s180 = sadd.s32 %s179, 1
      %p183 = scmp.eq.s32.totalorder %s19, 1
      %p184 = scmp.ne.s32.totalorder %s179, %s181
      %p185 = scmp.eq.s32.totalorder %s19, 0
      %p186 = por %p184, %p185
      %p187 = scmp.ne.s32.totalorder %s179, %s181
      %p188 = scmp.eq.s32.totalorder %s24, 1
      %p189 = por %p187, %p188
      %p190 = scmp.ne.s32.totalorder %s181, %s182
      %p191 = scmp.eq.s32.totalorder %s24, 0
      %p192 = por %p190, %p191
      %p193 = scmp.ne.s32.totalorder %s181, %s182
      %p194 = scmp.eq.s32.totalorder %s25, 1
      %p195 = por %p193, %p194
      %p197 = scmp.ne.s32.totalorder %s182, %s196
      %p198 = scmp.eq.s32.totalorder %s25, 0
      %p199 = por %p197, %p198
      %s201 = sadd.s32 %s200, 1
      %p204 = scmp.eq.s32.totalorder %s19, 1
      %p205 = scmp.ne.s32.totalorder %s200, %s202
      %p206 = scmp.eq.s32.totalorder %s19, 0
      %p207 = por %p205, %p206
      %p208 = scmp.ne.s32.totalorder %s200, %s202
      %p209 = scmp.eq.s32.totalorder %s24, 1
      %p210 = por %p208, %p209
      %p211 = scmp.ne.s32.totalorder %s202, %s203
      %p212 = scmp.eq.s32.totalorder %s24, 0
      %p213 = por %p211, %p212
      %p214 = scmp.ne.s32.totalorder %s202, %s203
      %p215 = scmp.eq.s32.totalorder %s25, 1
      %p216 = por %p214, %p215
      %p218 = scmp.ne.s32.totalorder %s203, %s217
      %p219 = scmp.eq.s32.totalorder %s25, 0
      %p220 = por %p218, %p219
      %s222 = sadd.s32 %s221, 1
      %p225 = scmp.eq.s32.totalorder %s19, 1
      %p226 = scmp.ne.s32.totalorder %s221, %s223
      %p227 = scmp.eq.s32.totalorder %s19, 0
      %p228 = por %p226, %p227
      %p229 = scmp.ne.s32.totalorder %s221, %s223
      %p230 = scmp.eq.s32.totalorder %s24, 1
      %p231 = por %p229, %p230
      %p232 = scmp.ne.s32.totalorder %s223, %s224
      %p233 = scmp.eq.s32.totalorder %s24, 0
      %p234 = por %p232, %p233
      %p235 = scmp.ne.s32.totalorder %s223, %s224
      %p236 = scmp.eq.s32.totalorder %s25, 1
      %p237 = por %p235, %p236
      %p239 = scmp.ne.s32.totalorder %s224, %s238
      %p240 = scmp.eq.s32.totalorder %s25, 0
      %p241 = por %p239, %p240
      %s242 = ssub.s32 %s19, %s26
      %p243 = scmp.eq.s32.totalorder %s242, 0
      %s245 = sadd.s32 %s244, 1
      %s246 = scalar_select %p243, %s244, %s245
      %p249 = pneg %p243
      %p250 = scmp.eq.s32.totalorder %s19, 1
      %p251 = por %p249, %p250
      %p252 = scmp.ne.s32.totalorder %s244, %s247
      %p253 = scmp.eq.s32.totalorder %s19, 0
      %p254 = por %p252, %p253
      %p255 = scmp.ne.s32.totalorder %s244, %s247
      %p256 = scmp.eq.s32.totalorder %s24, 1
      %p257 = por %p255, %p256
      %p258 = scmp.ne.s32.totalorder %s247, %s248
      %p259 = scmp.eq.s32.totalorder %s24, 0
      %p260 = por %p258, %p259
      %p261 = scmp.ne.s32.totalorder %s247, %s248
      %p262 = scmp.eq.s32.totalorder %s25, 1
      %p263 = por %p261, %p262
      %p265 = scmp.ne.s32.totalorder %s248, %s264
      %p266 = scmp.eq.s32.totalorder %s25, 0
      %p267 = por %p265, %p266
      %p268 = scmp.le.s32.totalorder 1, %s19
      %p269 = scmp.lt.s32.totalorder %s19, 3
      %p270 = pnand %p268, %p269
      %p271 = pneg %p270
      // Predicated region
      $region9: #{tpu_custom_call.1} parent=5 // pred_check
        _
      $region10: #{tpu_custom_call.1} parent=5 // pred_check_branch
        %273 = sbr.rel (%p270) target = $region12
      $region11: #{tpu_custom_call.1} parent=5 // pred_region
        %s274 = ssub.s32 %s19, 1
        // Predicated region
        $region13: #{tpu_custom_call.1} parent=11 // pred_check
          %p275 = pneg %p66
        $region14: #{tpu_custom_call.1} parent=11 // pred_check_branch
          %277 = sbr.rel (%p275) target = $region16
        $region15: #{tpu_custom_call.1} parent=11 // pred_region
          _
        $region16: #{tpu_custom_call.1} parent=11 // pred_fallthru
          _
        // Predicated region
        $region17: #{tpu_custom_call.1} parent=11 // pred_check
          %p278 = pneg %p87
        $region18: #{tpu_custom_call.1} parent=11 // pred_check_branch
          %280 = sbr.rel (%p278) target = $region20
        $region19: #{tpu_custom_call.1} parent=11 // pred_region
          _
        $region20: #{tpu_custom_call.1} parent=11 // pred_fallthru
          _
        // Predicated region
        $region21: #{tpu_custom_call.1} parent=11 // pred_check
          %p281 = pneg %p108
        $region22: #{tpu_custom_call.1} parent=11 // pred_check_branch
          %283 = sbr.rel (%p281) target = $region24
        $region23: #{tpu_custom_call.1} parent=11 // pred_region
          _
        $region24: #{tpu_custom_call.1} parent=11 // pred_fallthru
          _
        // Predicated region
        $region25: #{tpu_custom_call.1} parent=11 // pred_check
          %p284 = pneg %p129
        $region26: #{tpu_custom_call.1} parent=11 // pred_check_branch
          %286 = sbr.rel (%p284) target = $region28
        $region27: #{tpu_custom_call.1} parent=11 // pred_region
          _
        $region28: #{tpu_custom_call.1} parent=11 // pred_fallthru
          _
        // Predicated region
        $region29: #{tpu_custom_call.1} parent=11 // pred_check
          %p287 = pneg %p150
        $region30: #{tpu_custom_call.1} parent=11 // pred_check_branch
          %289 = sbr.rel (%p287) target = $region32
        $region31: #{tpu_custom_call.1} parent=11 // pred_region
          _
        $region32: #{tpu_custom_call.1} parent=11 // pred_fallthru
          _
        // Predicated region
        $region33: #{tpu_custom_call.1} parent=11 // pred_check
          %p290 = pneg %p171
        $region34: #{tpu_custom_call.1} parent=11 // pred_check_branch
          %292 = sbr.rel (%p290) target = $region36
        $region35: #{tpu_custom_call.1} parent=11 // pred_region
          _
        $region36: #{tpu_custom_call.1} parent=11 // pred_fallthru
          _
        // Predicated region
        $region37: #{tpu_custom_call.1} parent=11 // pred_check
          %p293 = pneg %p192
        $region38: #{tpu_custom_call.1} parent=11 // pred_check_branch
          %295 = sbr.rel (%p293) target = $region40
        $region39: #{tpu_custom_call.1} parent=11 // pred_region
          _
        $region40: #{tpu_custom_call.1} parent=11 // pred_fallthru
          _
        // Predicated region
        $region41: #{tpu_custom_call.1} parent=11 // pred_check
          %p296 = pneg %p213
        $region42: #{tpu_custom_call.1} parent=11 // pred_check_branch
          %298 = sbr.rel (%p296) target = $region44
        $region43: #{tpu_custom_call.1} parent=11 // pred_region
          _
        $region44: #{tpu_custom_call.1} parent=11 // pred_fallthru
          _
        // Predicated region
        $region45: #{tpu_custom_call.1} parent=11 // pred_check
          %p299 = pneg %p234
        $region46: #{tpu_custom_call.1} parent=11 // pred_check_branch
          %301 = sbr.rel (%p299) target = $region48
        $region47: #{tpu_custom_call.1} parent=11 // pred_region
          _
        $region48: #{tpu_custom_call.1} parent=11 // pred_fallthru
          _
      $region12: #{tpu_custom_call.1} parent=5 // pred_fallthru
        _
      %p302 = scmp.lt.s32.totalorder %s19, 2
      // Predicated region
      $region49: #{tpu_custom_call.1} parent=5 // pred_check
        %p303 = pneg %p302
      $region50: #{tpu_custom_call.1} parent=5 // pred_check_branch
        %305 = sbr.rel (%p303) target = $region52
      $region51: #{tpu_custom_call.1} parent=5 // pred_region
        // Predicated region
        $region53: #{tpu_custom_call.1} parent=51 // pred_check
          %p306 = pneg %p39
        $region54: #{tpu_custom_call.1} parent=51 // pred_check_branch
          %308 = sbr.rel (%p306) target = $region56
        $region55: #{tpu_custom_call.1} parent=51 // pred_region
          %s309 = smul.u32 32, %s19
          %p310 = scmp.lt.s32.totalorder %s309, 63
          %s311 = scalar_select %p310, %s309, 63
          %s312 = smul.addr %s311, 8
          %s313 = scalar_lea.vmem %s0, %s312
          %s314 = smul.u32 32, %s19
        $region56: #{tpu_custom_call.1} parent=51 // pred_fallthru
          _
      $region52: #{tpu_custom_call.1} parent=5 // pred_fallthru
        _
      %p315 = scmp.le.s32.totalorder 1, %s19
      %p316 = scmp.lt.s32.totalorder %s19, 3
      %p317 = pnand %p315, %p316
      %p318 = pneg %p317
      // Predicated region
      $region57: #{tpu_custom_call.1} parent=5 // pred_check
        _
      $region58: #{tpu_custom_call.1} parent=5 // pred_check_branch
        %320 = sbr.rel (%p317) target = $region60
      $region59: #{tpu_custom_call.1} parent=5 // pred_region
        %s321 = ssub.s32 %s19, 1
        %s322 = smul.u32 32, %s24
        %p323 = scmp.lt.s32.totalorder %s322, 63
        %s324 = scalar_select %p323, %s322, 63
        %s325 = smul.addr %s324, 8
        %s326 = scalar_lea.vmem %s0, %s325
        %p327 = pneg %p45
        %p328 = pneg %p42
        %p329 = pneg %p66
        %p330 = pneg %p63
        %p331 = pneg %p87
        %p332 = pneg %p84
        %p333 = pneg %p108
        %p334 = pneg %p105
        %p335 = pneg %p129
        %p336 = pneg %p126
        %p337 = pneg %p150
        %p338 = pneg %p147
        %p339 = pneg %p171
        %p340 = pneg %p168
        %p341 = pneg %p192
        %p342 = pneg %p189
        %p343 = pneg %p213
        %p344 = pneg %p210
        %p345 = pneg %p234
        %p346 = pneg %p231
        %p347 = pneg %p260
        %p348 = pneg %p257
        %s349 = sand.u32 %s247, 1
        %s350 = scalar_lea.sflag [#allocation3], %s349
        %s351 = sand.u32 %s247, 1
        %s352 = smul.addr %s351, 32
        %s353 = scalar_lea.vmem [#allocation2], %s352
        %s354 = smul.u32 32, %s24
        %p355 = scmp.lt.s32.totalorder %s354, 63
        %s356 = scalar_select %p355, %s354, 63
        %s357 = smul.addr %s356, 8
        %s358 = scalar_lea.vmem %s0, %s357
        %s359 = smul.u32 32, %s24
        %s360 = smul.u32 4, %s24
        %v361 = vld [vmem:[%s358] sm:$0xff]
        %v362 = vld [vmem:[%s358 + $0x8] sm:$0xff]
        %v363 = vld [vmem:[%s358 + $0x10] sm:$0xff]
        %v364 = vld [vmem:[%s358 + $0x18] sm:$0xff]
        %v365 = vld [vmem:[%s358 + $0x20] sm:$0xff]
        %v366 = vld [vmem:[%s358 + $0x28] sm:$0xff]
        %v367 = vld [vmem:[%s358 + $0x30] sm:$0xff]
        %v368 = vld [vmem:[%s358 + $0x38] sm:$0xff]
        %v369 = vld [vmem:[%s358 + $0x40] sm:$0xff]
        %v370 = vld [vmem:[%s358 + $0x48] sm:$0xff]
        %v371 = vld [vmem:[%s358 + $0x50] sm:$0xff]
        %v372 = vld [vmem:[%s358 + $0x58] sm:$0xff]
        %v373 = vld [vmem:[%s358 + $0x60] sm:$0xff]
        %v374 = vld [vmem:[%s358 + $0x68] sm:$0xff]
        %v375 = vld [vmem:[%s358 + $0x70] sm:$0xff]
        %v376 = vld [vmem:[%s358 + $0x78] sm:$0xff]
        %v377 = vld [vmem:[%s358 + $0x80] sm:$0xff]
        %v378 = vld [vmem:[%s358 + $0x88] sm:$0xff]
        %v379 = vld [vmem:[%s358 + $0x90] sm:$0xff]
        %v380 = vld [vmem:[%s358 + $0x98] sm:$0xff]
        %v381 = vld [vmem:[%s358 + $0xa0] sm:$0xff]
        %v382 = vld [vmem:[%s358 + $0xa8] sm:$0xff]
        %v383 = vld [vmem:[%s358 + $0xb0] sm:$0xff]
        %v384 = vld [vmem:[%s358 + $0xb8] sm:$0xff]
        %v385 = vld [vmem:[%s358 + $0xc0] sm:$0xff]
        %v386 = vld [vmem:[%s358 + $0xc8] sm:$0xff]
        %v387 = vld [vmem:[%s358 + $0xd0] sm:$0xff]
        %v388 = vld [vmem:[%s358 + $0xd8] sm:$0xff]
        %v389 = vld [vmem:[%s358 + $0xe0] sm:$0xff]
        %v390 = vld [vmem:[%s358 + $0xe8] sm:$0xff]
        %v391 = vld [vmem:[%s358 + $0xf0] sm:$0xff]
        %v392 = vld [vmem:[%s358 + $0xf8] sm:$0xff]
        %v393 = vld [vmem:[%s1] sm:$0xff]
        %v394 = vld [vmem:[%s1 + $0x8] sm:$0xff]
        %v395 = vld [vmem:[%s1 + $0x10] sm:$0xff]
        %v396 = vld [vmem:[%s1 + $0x18] sm:$0xff]
        %v397 = vld [vmem:[%s9] sm:$0x1]
        %v398 = vperm.slane %v397, 0
        %vm399 = vcmask 261120
        %v401 = vsel %vm399, %v361, 0
        %v404 = vsel %vm399, %v362, 0
        %v407 = vsel %vm399, %v363, 0
        %v410 = vsel %vm399, %v364, 0
        %v413 = vsel %vm399, %v365, 0
        %v416 = vsel %vm399, %v366, 0
        %v419 = vsel %vm399, %v367, 0
        %v422 = vsel %vm399, %v368, 0
        %v425 = vsel %vm399, %v369, 0
        %v428 = vsel %vm399, %v370, 0
        %v431 = vsel %vm399, %v371, 0
        %v434 = vsel %vm399, %v372, 0
        %v437 = vsel %vm399, %v373, 0
        %v440 = vsel %vm399, %v374, 0
        %v443 = vsel %vm399, %v375, 0
        %v446 = vsel %vm399, %v376, 0
        %v449 = vsel %vm399, %v377, 0
        %v452 = vsel %vm399, %v378, 0
        %v455 = vsel %vm399, %v379, 0
        %v458 = vsel %vm399, %v380, 0
        %v461 = vsel %vm399, %v381, 0
        %v464 = vsel %vm399, %v382, 0
        %v467 = vsel %vm399, %v383, 0
        %v470 = vsel %vm399, %v384, 0
        %v473 = vsel %vm399, %v385, 0
        %v476 = vsel %vm399, %v386, 0
        %v479 = vsel %vm399, %v387, 0
        %v482 = vsel %vm399, %v388, 0
        %v485 = vsel %vm399, %v389, 0
        %v488 = vsel %vm399, %v390, 0
        %v491 = vsel %vm399, %v391, 0
        %v494 = vsel %vm399, %v392, 0
        %496 = vmatpush.msra.mxu0 0.0
        %497 = vmatpush.msra.mxu0 0.0
        %498 = vmatpush.msra.mxu0 0.0
        %499 = vmatpush.msra.mxu0 0.0
        %500 = vmatpush.msra.mxu0 0.0
        %501 = vmatpush.msra.mxu0 0.0
        %502 = vmatpush.msra.mxu0 0.0
        %503 = vmatpush.msra.mxu0 0.0
        %504 = vmatpush.msra.mxu0 0.0
        %505 = vmatpush.msra.mxu0 0.0
        %506 = vmatpush.msra.mxu0 0.0
        %507 = vmatpush.msra.mxu0 0.0
        %508 = vmatpush.msra.mxu0 %v396
        %509 = vmatpush.msra.mxu0 %v395
        %510 = vmatpush.msra.mxu0 %v394
        %511 = vmatpush.msra.mxu0 %v393
        %512 = vmatmul.f32.gmra.mxu0 %v401
        %v513 = vpop.f32.mrf.mxu0
        %v514 = vadd.f32 %v398, %v513
        %515 = vmatmul.f32.gmra.mxu0 %v404
        %v516 = vpop.f32.mrf.mxu0
        %v517 = vadd.f32 %v398, %v516
        %518 = vmatmul.f32.gmra.mxu0 %v407
        %v519 = vpop.f32.mrf.mxu0
        %v520 = vadd.f32 %v398, %v519
        %521 = vmatmul.f32.gmra.mxu0 %v410
        %v522 = vpop.f32.mrf.mxu0
        %v523 = vadd.f32 %v398, %v522
        %524 = vmatmul.f32.gmra.mxu0 %v413
        %v525 = vpop.f32.mrf.mxu0
        %v526 = vadd.f32 %v398, %v525
        %527 = vmatmul.f32.gmra.mxu0 %v416
        %v528 = vpop.f32.mrf.mxu0
        %v529 = vadd.f32 %v398, %v528
        %530 = vmatmul.f32.gmra.mxu0 %v419
        %v531 = vpop.f32.mrf.mxu0
        %v532 = vadd.f32 %v398, %v531
        %533 = vmatmul.f32.gmra.mxu0 %v422
        %v534 = vpop.f32.mrf.mxu0
        %v535 = vadd.f32 %v398, %v534
        %536 = vmatmul.f32.gmra.mxu0 %v425
        %v537 = vpop.f32.mrf.mxu0
        %v538 = vadd.f32 %v398, %v537
        %539 = vmatmul.f32.gmra.mxu0 %v428
        %v540 = vpop.f32.mrf.mxu0
        %v541 = vadd.f32 %v398, %v540
        %542 = vmatmul.f32.gmra.mxu0 %v431
        %v543 = vpop.f32.mrf.mxu0
        %v544 = vadd.f32 %v398, %v543
        %545 = vmatmul.f32.gmra.mxu0 %v434
        %v546 = vpop.f32.mrf.mxu0
        %v547 = vadd.f32 %v398, %v546
        %548 = vmatmul.f32.gmra.mxu0 %v437
        %v549 = vpop.f32.mrf.mxu0
        %v550 = vadd.f32 %v398, %v549
        %551 = vmatmul.f32.gmra.mxu0 %v440
        %v552 = vpop.f32.mrf.mxu0
        %v553 = vadd.f32 %v398, %v552
        %554 = vmatmul.f32.gmra.mxu0 %v443
        %v555 = vpop.f32.mrf.mxu0
        %v556 = vadd.f32 %v398, %v555
        %557 = vmatmul.f32.gmra.mxu0 %v446
        %v558 = vpop.f32.mrf.mxu0
        %v559 = vadd.f32 %v398, %v558
        %560 = vmatmul.f32.gmra.mxu0 %v449
        %v561 = vpop.f32.mrf.mxu0
        %v562 = vadd.f32 %v398, %v561
        %563 = vmatmul.f32.gmra.mxu0 %v452
        %v564 = vpop.f32.mrf.mxu0
        %v565 = vadd.f32 %v398, %v564
        %566 = vmatmul.f32.gmra.mxu0 %v455
        %v567 = vpop.f32.mrf.mxu0
        %v568 = vadd.f32 %v398, %v567
        %569 = vmatmul.f32.gmra.mxu0 %v458
        %v570 = vpop.f32.mrf.mxu0
        %v571 = vadd.f32 %v398, %v570
        %572 = vmatmul.f32.gmra.mxu0 %v461
        %v573 = vpop.f32.mrf.mxu0
        %v574 = vadd.f32 %v398, %v573
        %575 = vmatmul.f32.gmra.mxu0 %v464
        %v576 = vpop.f32.mrf.mxu0
        %v577 = vadd.f32 %v398, %v576
        %578 = vmatmul.f32.gmra.mxu0 %v467
        %v579 = vpop.f32.mrf.mxu0
        %v580 = vadd.f32 %v398, %v579
        %581 = vmatmul.f32.gmra.mxu0 %v470
        %v582 = vpop.f32.mrf.mxu0
        %v583 = vadd.f32 %v398, %v582
        %584 = vmatmul.f32.gmra.mxu0 %v473
        %v585 = vpop.f32.mrf.mxu0
        %v586 = vadd.f32 %v398, %v585
        %587 = vmatmul.f32.gmra.mxu0 %v476
        %v588 = vpop.f32.mrf.mxu0
        %v589 = vadd.f32 %v398, %v588
        %590 = vmatmul.f32.gmra.mxu0 %v479
        %v591 = vpop.f32.mrf.mxu0
        %v592 = vadd.f32 %v398, %v591
        %593 = vmatmul.f32.gmra.mxu0 %v482
        %v594 = vpop.f32.mrf.mxu0
        %v595 = vadd.f32 %v398, %v594
        %596 = vmatmul.f32.gmra.mxu0 %v485
        %v597 = vpop.f32.mrf.mxu0
        %v598 = vadd.f32 %v398, %v597
        %599 = vmatmul.f32.gmra.mxu0 %v488
        %v600 = vpop.f32.mrf.mxu0
        %v601 = vadd.f32 %v398, %v600
        %602 = vmatmul.f32.gmra.mxu0 %v491
        %v603 = vpop.f32.mrf.mxu0
        %v604 = vadd.f32 %v398, %v603
        %605 = vmatmul.f32.gmra.mxu0 %v494
        %v606 = vpop.f32.mrf.mxu0
        %v607 = vadd.f32 %v398, %v606
        %608 = vdwg.mxu0
        %vm609 = vcmp.gt.f32.partialorder %v514, 0.0
        %vm610 = vcmp.gt.f32.partialorder %v517, 0.0
        %vm611 = vcmp.gt.f32.partialorder %v520, 0.0
        %vm612 = vcmp.gt.f32.partialorder %v523, 0.0
        %vm613 = vcmp.gt.f32.partialorder %v526, 0.0
        %vm614 = vcmp.gt.f32.partialorder %v529, 0.0
        %vm615 = vcmp.gt.f32.partialorder %v532, 0.0
        %vm616 = vcmp.gt.f32.partialorder %v535, 0.0
        %vm617 = vcmp.gt.f32.partialorder %v538, 0.0
        %vm618 = vcmp.gt.f32.partialorder %v541, 0.0
        %vm619 = vcmp.gt.f32.partialorder %v544, 0.0
        %vm620 = vcmp.gt.f32.partialorder %v547, 0.0
        %vm621 = vcmp.gt.f32.partialorder %v550, 0.0
        %vm622 = vcmp.gt.f32.partialorder %v553, 0.0
        %vm623 = vcmp.gt.f32.partialorder %v556, 0.0
        %vm624 = vcmp.gt.f32.partialorder %v559, 0.0
        %vm625 = vcmp.gt.f32.partialorder %v562, 0.0
        %vm626 = vcmp.gt.f32.partialorder %v565, 0.0
        %vm627 = vcmp.gt.f32.partialorder %v568, 0.0
        %vm628 = vcmp.gt.f32.partialorder %v571, 0.0
        %vm629 = vcmp.gt.f32.partialorder %v574, 0.0
        %vm630 = vcmp.gt.f32.partialorder %v577, 0.0
        %vm631 = vcmp.gt.f32.partialorder %v580, 0.0
        %vm632 = vcmp.gt.f32.partialorder %v583, 0.0
        %vm633 = vcmp.gt.f32.partialorder %v586, 0.0
        %vm634 = vcmp.gt.f32.partialorder %v589, 0.0
        %vm635 = vcmp.gt.f32.partialorder %v592, 0.0
        %vm636 = vcmp.gt.f32.partialorder %v595, 0.0
        %vm637 = vcmp.gt.f32.partialorder %v598, 0.0
        %vm638 = vcmp.gt.f32.partialorder %v601, 0.0
        %vm639 = vcmp.gt.f32.partialorder %v604, 0.0
        %vm640 = vcmp.gt.f32.partialorder %v607, 0.0
        %v641 = vmul.f32 %v514, 0.2
        %v642 = vmul.f32 %v517, 0.2
        %v643 = vmul.f32 %v520, 0.2
        %v644 = vmul.f32 %v523, 0.2
        %v645 = vmul.f32 %v526, 0.2
        %v646 = vmul.f32 %v529, 0.2
        %v647 = vmul.f32 %v532, 0.2
        %v648 = vmul.f32 %v535, 0.2
        %v649 = vmul.f32 %v538, 0.2
        %v650 = vmul.f32 %v541, 0.2
        %v651 = vmul.f32 %v544, 0.2
        %v652 = vmul.f32 %v547, 0.2
        %v653 = vmul.f32 %v550, 0.2
        %v654 = vmul.f32 %v553, 0.2
        %v655 = vmul.f32 %v556, 0.2
        %v656 = vmul.f32 %v559, 0.2
        %v657 = vmul.f32 %v562, 0.2
        %v658 = vmul.f32 %v565, 0.2
        %v659 = vmul.f32 %v568, 0.2
        %v660 = vmul.f32 %v571, 0.2
        %v661 = vmul.f32 %v574, 0.2
        %v662 = vmul.f32 %v577, 0.2
        %v663 = vmul.f32 %v580, 0.2
        %v664 = vmul.f32 %v583, 0.2
        %v665 = vmul.f32 %v586, 0.2
        %v666 = vmul.f32 %v589, 0.2
        %v667 = vmul.f32 %v592, 0.2
        %v668 = vmul.f32 %v595, 0.2
        %v669 = vmul.f32 %v598, 0.2
        %v670 = vmul.f32 %v601, 0.2
        %v671 = vmul.f32 %v604, 0.2
        %v672 = vmul.f32 %v607, 0.2
        %v673 = vsel %vm609, %v514, %v641
        %v674 = vsel %vm610, %v517, %v642
        %v675 = vsel %vm611, %v520, %v643
        %v676 = vsel %vm612, %v523, %v644
        %v677 = vsel %vm613, %v526, %v645
        %v678 = vsel %vm614, %v529, %v646
        %v679 = vsel %vm615, %v532, %v647
        %v680 = vsel %vm616, %v535, %v648
        %v681 = vsel %vm617, %v538, %v649
        %v682 = vsel %vm618, %v541, %v650
        %v683 = vsel %vm619, %v544, %v651
        %v684 = vsel %vm620, %v547, %v652
        %v685 = vsel %vm621, %v550, %v653
        %v686 = vsel %vm622, %v553, %v654
        %v687 = vsel %vm623, %v556, %v655
        %v688 = vsel %vm624, %v559, %v656
        %v689 = vsel %vm625, %v562, %v657
        %v690 = vsel %vm626, %v565, %v658
        %v691 = vsel %vm627, %v568, %v659
        %v692 = vsel %vm628, %v571, %v660
        %v693 = vsel %vm629, %v574, %v661
        %v694 = vsel %vm630, %v577, %v662
        %v695 = vsel %vm631, %v580, %v663
        %v696 = vsel %vm632, %v583, %v664
        %v697 = vsel %vm633, %v586, %v665
        %v698 = vsel %vm634, %v589, %v666
        %v699 = vsel %vm635, %v592, %v667
        %v700 = vsel %vm636, %v595, %v668
        %v701 = vsel %vm637, %v598, %v669
        %v702 = vsel %vm638, %v601, %v670
        %v703 = vsel %vm639, %v604, %v671
        %v704 = vsel %vm640, %v607, %v672
        %v705 = vld [vmem:[%s2] sm:$0xff]
        %v706 = vld [vmem:[%s2 + $0x8] sm:$0xff]
        %v707 = vld [vmem:[%s2 + $0x10] sm:$0xff]
        %v708 = vld [vmem:[%s2 + $0x18] sm:$0xff]
        %v709 = vld [vmem:[%s2 + $0x20] sm:$0xff]
        %vm710 = vcmask 326656
        %v712 = vsel %vm710, %v673, 0
        %v715 = vsel %vm710, %v674, 0
        %v718 = vsel %vm710, %v675, 0
        %v721 = vsel %vm710, %v676, 0
        %v724 = vsel %vm710, %v677, 0
        %v727 = vsel %vm710, %v678, 0
        %v730 = vsel %vm710, %v679, 0
        %v733 = vsel %vm710, %v680, 0
        %v736 = vsel %vm710, %v681, 0
        %v739 = vsel %vm710, %v682, 0
        %v742 = vsel %vm710, %v683, 0
        %v745 = vsel %vm710, %v684, 0
        %v748 = vsel %vm710, %v685, 0
        %v751 = vsel %vm710, %v686, 0
        %v754 = vsel %vm710, %v687, 0
        %v757 = vsel %vm710, %v688, 0
        %v760 = vsel %vm710, %v689, 0
        %v763 = vsel %vm710, %v690, 0
        %v766 = vsel %vm710, %v691, 0
        %v769 = vsel %vm710, %v692, 0
        %v772 = vsel %vm710, %v693, 0
        %v775 = vsel %vm710, %v694, 0
        %v778 = vsel %vm710, %v695, 0
        %v781 = vsel %vm710, %v696, 0
        %v784 = vsel %vm710, %v697, 0
        %v787 = vsel %vm710, %v698, 0
        %v790 = vsel %vm710, %v699, 0
        %v793 = vsel %vm710, %v700, 0
        %v796 = vsel %vm710, %v701, 0
        %v799 = vsel %vm710, %v702, 0
        %v802 = vsel %vm710, %v703, 0
        %v805 = vsel %vm710, %v704, 0
        %807 = vmatpush.msra.mxu0 0.0
        %808 = vmatpush.msra.mxu0 0.0
        %809 = vmatpush.msra.mxu0 0.0
        %810 = vmatpush.msra.mxu0 0.0
        %811 = vmatpush.msra.mxu0 0.0
        %812 = vmatpush.msra.mxu0 0.0
        %813 = vmatpush.msra.mxu0 0.0
        %814 = vmatpush.msra.mxu0 0.0
        %815 = vmatpush.msra.mxu0 0.0
        %816 = vmatpush.msra.mxu0 0.0
        %817 = vmatpush.msra.mxu0 0.0
        %818 = vmatpush.msra.mxu0 %v709
        %819 = vmatpush.msra.mxu0 %v708
        %820 = vmatpush.msra.mxu0 %v707
        %821 = vmatpush.msra.mxu0 %v706
        %822 = vmatpush.msra.mxu0 %v705
        %823 = vmatmul.f32.gmra.mxu0 %v712
        %v824 = vpop.f32.mrf.mxu0
        %v825 = vadd.f32 0.0, %v824
        %826 = vmatmul.f32.gmra.mxu0 %v715
        %v827 = vpop.f32.mrf.mxu0
        %v828 = vadd.f32 0.0, %v827
        %829 = vmatmul.f32.gmra.mxu0 %v718
        %v830 = vpop.f32.mrf.mxu0
        %v831 = vadd.f32 0.0, %v830
        %832 = vmatmul.f32.gmra.mxu0 %v721
        %v833 = vpop.f32.mrf.mxu0
        %v834 = vadd.f32 0.0, %v833
        %835 = vmatmul.f32.gmra.mxu0 %v724
        %v836 = vpop.f32.mrf.mxu0
        %v837 = vadd.f32 0.0, %v836
        %838 = vmatmul.f32.gmra.mxu0 %v727
        %v839 = vpop.f32.mrf.mxu0
        %v840 = vadd.f32 0.0, %v839
        %841 = vmatmul.f32.gmra.mxu0 %v730
        %v842 = vpop.f32.mrf.mxu0
        %v843 = vadd.f32 0.0, %v842
        %844 = vmatmul.f32.gmra.mxu0 %v733
        %v845 = vpop.f32.mrf.mxu0
        %v846 = vadd.f32 0.0, %v845
        %847 = vmatmul.f32.gmra.mxu0 %v736
        %v848 = vpop.f32.mrf.mxu0
        %v849 = vadd.f32 0.0, %v848
        %850 = vmatmul.f32.gmra.mxu0 %v739
        %v851 = vpop.f32.mrf.mxu0
        %v852 = vadd.f32 0.0, %v851
        %853 = vmatmul.f32.gmra.mxu0 %v742
        %v854 = vpop.f32.mrf.mxu0
        %v855 = vadd.f32 0.0, %v854
        %856 = vmatmul.f32.gmra.mxu0 %v745
        %v857 = vpop.f32.mrf.mxu0
        %v858 = vadd.f32 0.0, %v857
        %859 = vmatmul.f32.gmra.mxu0 %v748
        %v860 = vpop.f32.mrf.mxu0
        %v861 = vadd.f32 0.0, %v860
        %862 = vmatmul.f32.gmra.mxu0 %v751
        %v863 = vpop.f32.mrf.mxu0
        %v864 = vadd.f32 0.0, %v863
        %865 = vmatmul.f32.gmra.mxu0 %v754
        %v866 = vpop.f32.mrf.mxu0
        %v867 = vadd.f32 0.0, %v866
        %868 = vmatmul.f32.gmra.mxu0 %v757
        %v869 = vpop.f32.mrf.mxu0
        %v870 = vadd.f32 0.0, %v869
        %871 = vmatmul.f32.gmra.mxu0 %v760
        %v872 = vpop.f32.mrf.mxu0
        %v873 = vadd.f32 0.0, %v872
        %874 = vmatmul.f32.gmra.mxu0 %v763
        %v875 = vpop.f32.mrf.mxu0
        %v876 = vadd.f32 0.0, %v875
        %877 = vmatmul.f32.gmra.mxu0 %v766
        %v878 = vpop.f32.mrf.mxu0
        %v879 = vadd.f32 0.0, %v878
        %880 = vmatmul.f32.gmra.mxu0 %v769
        %v881 = vpop.f32.mrf.mxu0
        %v882 = vadd.f32 0.0, %v881
        %883 = vmatmul.f32.gmra.mxu0 %v772
        %v884 = vpop.f32.mrf.mxu0
        %v885 = vadd.f32 0.0, %v884
        %886 = vmatmul.f32.gmra.mxu0 %v775
        %v887 = vpop.f32.mrf.mxu0
        %v888 = vadd.f32 0.0, %v887
        %889 = vmatmul.f32.gmra.mxu0 %v778
        %v890 = vpop.f32.mrf.mxu0
        %v891 = vadd.f32 0.0, %v890
        %892 = vmatmul.f32.gmra.mxu0 %v781
        %v893 = vpop.f32.mrf.mxu0
        %v894 = vadd.f32 0.0, %v893
        %895 = vmatmul.f32.gmra.mxu0 %v784
        %v896 = vpop.f32.mrf.mxu0
        %v897 = vadd.f32 0.0, %v896
        %898 = vmatmul.f32.gmra.mxu0 %v787
        %v899 = vpop.f32.mrf.mxu0
        %v900 = vadd.f32 0.0, %v899
        %901 = vmatmul.f32.gmra.mxu0 %v790
        %v902 = vpop.f32.mrf.mxu0
        %v903 = vadd.f32 0.0, %v902
        %904 = vmatmul.f32.gmra.mxu0 %v793
        %v905 = vpop.f32.mrf.mxu0
        %v906 = vadd.f32 0.0, %v905
        %907 = vmatmul.f32.gmra.mxu0 %v796
        %v908 = vpop.f32.mrf.mxu0
        %v909 = vadd.f32 0.0, %v908
        %910 = vmatmul.f32.gmra.mxu0 %v799
        %v911 = vpop.f32.mrf.mxu0
        %v912 = vadd.f32 0.0, %v911
        %913 = vmatmul.f32.gmra.mxu0 %v802
        %v914 = vpop.f32.mrf.mxu0
        %v915 = vadd.f32 0.0, %v914
        %916 = vmatmul.f32.gmra.mxu0 %v805
        %v917 = vpop.f32.mrf.mxu0
        %v918 = vadd.f32 0.0, %v917
        %919 = vdwg.mxu0
        %vm920 = vcmask 7168
        %v921 = vsel %vm920, %v825, -inf
        %v922 = vrot.slane %v921, 4
        %v923 = vmax.f32 %v921, %v922
        %v924 = vrot.slane %v923, 2
        %v925 = vmax.f32 %v923, %v924
        %v926 = vrot.slane %v925, 1
        %v927 = vmax.f32 %v925, %v926
        %v928 = vsel %vm920, %v828, -inf
        %v929 = vrot.slane %v928, 4
        %v930 = vmax.f32 %v928, %v929
        %v931 = vrot.slane %v930, 2
        %v932 = vmax.f32 %v930, %v931
        %v933 = vrot.slane %v932, 1
        %v934 = vmax.f32 %v932, %v933
        %v935 = vsel %vm920, %v831, -inf
        %v936 = vrot.slane %v935, 4
        %v937 = vmax.f32 %v935, %v936
        %v938 = vrot.slane %v937, 2
        %v939 = vmax.f32 %v937, %v938
        %v940 = vrot.slane %v939, 1
        %v941 = vmax.f32 %v939, %v940
        %v942 = vsel %vm920, %v834, -inf
        %v943 = vrot.slane %v942, 4
        %v944 = vmax.f32 %v942, %v943
        %v945 = vrot.slane %v944, 2
        %v946 = vmax.f32 %v944, %v945
        %v947 = vrot.slane %v946, 1
        %v948 = vmax.f32 %v946, %v947
        %v949 = vsel %vm920, %v837, -inf
        %v950 = vrot.slane %v949, 4
        %v951 = vmax.f32 %v949, %v950
        %v952 = vrot.slane %v951, 2
        %v953 = vmax.f32 %v951, %v952
        %v954 = vrot.slane %v953, 1
        %v955 = vmax.f32 %v953, %v954
        %v956 = vsel %vm920, %v840, -inf
        %v957 = vrot.slane %v956, 4
        %v958 = vmax.f32 %v956, %v957
        %v959 = vrot.slane %v958, 2
        %v960 = vmax.f32 %v958, %v959
        %v961 = vrot.slane %v960, 1
        %v962 = vmax.f32 %v960, %v961
        %v963 = vsel %vm920, %v843, -inf
        %v964 = vrot.slane %v963, 4
        %v965 = vmax.f32 %v963, %v964
        %v966 = vrot.slane %v965, 2
        %v967 = vmax.f32 %v965, %v966
        %v968 = vrot.slane %v967, 1
        %v969 = vmax.f32 %v967, %v968
        %v970 = vsel %vm920, %v846, -inf
        %v971 = vrot.slane %v970, 4
        %v972 = vmax.f32 %v970, %v971
        %v973 = vrot.slane %v972, 2
        %v974 = vmax.f32 %v972, %v973
        %v975 = vrot.slane %v974, 1
        %v976 = vmax.f32 %v974, %v975
        %v977 = vsel %vm920, %v849, -inf
        %v978 = vrot.slane %v977, 4
        %v979 = vmax.f32 %v977, %v978
        %v980 = vrot.slane %v979, 2
        %v981 = vmax.f32 %v979, %v980
        %v982 = vrot.slane %v981, 1
        %v983 = vmax.f32 %v981, %v982
        %v984 = vsel %vm920, %v852, -inf
        %v985 = vrot.slane %v984, 4
        %v986 = vmax.f32 %v984, %v985
        %v987 = vrot.slane %v986, 2
        %v988 = vmax.f32 %v986, %v987
        %v989 = vrot.slane %v988, 1
        %v990 = vmax.f32 %v988, %v989
        %v991 = vsel %vm920, %v855, -inf
        %v992 = vrot.slane %v991, 4
        %v993 = vmax.f32 %v991, %v992
        %v994 = vrot.slane %v993, 2
        %v995 = vmax.f32 %v993, %v994
        %v996 = vrot.slane %v995, 1
        %v997 = vmax.f32 %v995, %v996
        %v998 = vsel %vm920, %v858, -inf
        %v999 = vrot.slane %v998, 4
        %v1000 = vmax.f32 %v998, %v999
        %v1001 = vrot.slane %v1000, 2
        %v1002 = vmax.f32 %v1000, %v1001
        %v1003 = vrot.slane %v1002, 1
        %v1004 = vmax.f32 %v1002, %v1003
        %v1005 = vsel %vm920, %v861, -inf
        %v1006 = vrot.slane %v1005, 4
        %v1007 = vmax.f32 %v1005, %v1006
        %v1008 = vrot.slane %v1007, 2
        %v1009 = vmax.f32 %v1007, %v1008
        %v1010 = vrot.slane %v1009, 1
        %v1011 = vmax.f32 %v1009, %v1010
        %v1012 = vsel %vm920, %v864, -inf
        %v1013 = vrot.slane %v1012, 4
        %v1014 = vmax.f32 %v1012, %v1013
        %v1015 = vrot.slane %v1014, 2
        %v1016 = vmax.f32 %v1014, %v1015
        %v1017 = vrot.slane %v1016, 1
        %v1018 = vmax.f32 %v1016, %v1017
        %v1019 = vsel %vm920, %v867, -inf
        %v1020 = vrot.slane %v1019, 4
        %v1021 = vmax.f32 %v1019, %v1020
        %v1022 = vrot.slane %v1021, 2
        %v1023 = vmax.f32 %v1021, %v1022
        %v1024 = vrot.slane %v1023, 1
        %v1025 = vmax.f32 %v1023, %v1024
        %v1026 = vsel %vm920, %v870, -inf
        %v1027 = vrot.slane %v1026, 4
        %v1028 = vmax.f32 %v1026, %v1027
        %v1029 = vrot.slane %v1028, 2
        %v1030 = vmax.f32 %v1028, %v1029
        %v1031 = vrot.slane %v1030, 1
        %v1032 = vmax.f32 %v1030, %v1031
        %v1033 = vsel %vm920, %v873, -inf
        %v1034 = vrot.slane %v1033, 4
        %v1035 = vmax.f32 %v1033, %v1034
        %v1036 = vrot.slane %v1035, 2
        %v1037 = vmax.f32 %v1035, %v1036
        %v1038 = vrot.slane %v1037, 1
        %v1039 = vmax.f32 %v1037, %v1038
        %v1040 = vsel %vm920, %v876, -inf
        %v1041 = vrot.slane %v1040, 4
        %v1042 = vmax.f32 %v1040, %v1041
        %v1043 = vrot.slane %v1042, 2
        %v1044 = vmax.f32 %v1042, %v1043
        %v1045 = vrot.slane %v1044, 1
        %v1046 = vmax.f32 %v1044, %v1045
        %v1047 = vsel %vm920, %v879, -inf
        %v1048 = vrot.slane %v1047, 4
        %v1049 = vmax.f32 %v1047, %v1048
        %v1050 = vrot.slane %v1049, 2
        %v1051 = vmax.f32 %v1049, %v1050
        %v1052 = vrot.slane %v1051, 1
        %v1053 = vmax.f32 %v1051, %v1052
        %v1054 = vsel %vm920, %v882, -inf
        %v1055 = vrot.slane %v1054, 4
        %v1056 = vmax.f32 %v1054, %v1055
        %v1057 = vrot.slane %v1056, 2
        %v1058 = vmax.f32 %v1056, %v1057
        %v1059 = vrot.slane %v1058, 1
        %v1060 = vmax.f32 %v1058, %v1059
        %v1061 = vsel %vm920, %v885, -inf
        %v1062 = vrot.slane %v1061, 4
        %v1063 = vmax.f32 %v1061, %v1062
        %v1064 = vrot.slane %v1063, 2
        %v1065 = vmax.f32 %v1063, %v1064
        %v1066 = vrot.slane %v1065, 1
        %v1067 = vmax.f32 %v1065, %v1066
        %v1068 = vsel %vm920, %v888, -inf
        %v1069 = vrot.slane %v1068, 4
        %v1070 = vmax.f32 %v1068, %v1069
        %v1071 = vrot.slane %v1070, 2
        %v1072 = vmax.f32 %v1070, %v1071
        %v1073 = vrot.slane %v1072, 1
        %v1074 = vmax.f32 %v1072, %v1073
        %v1075 = vsel %vm920, %v891, -inf
        %v1076 = vrot.slane %v1075, 4
        %v1077 = vmax.f32 %v1075, %v1076
        %v1078 = vrot.slane %v1077, 2
        %v1079 = vmax.f32 %v1077, %v1078
        %v1080 = vrot.slane %v1079, 1
        %v1081 = vmax.f32 %v1079, %v1080
        %v1082 = vsel %vm920, %v894, -inf
        %v1083 = vrot.slane %v1082, 4
        %v1084 = vmax.f32 %v1082, %v1083
        %v1085 = vrot.slane %v1084, 2
        %v1086 = vmax.f32 %v1084, %v1085
        %v1087 = vrot.slane %v1086, 1
        %v1088 = vmax.f32 %v1086, %v1087
        %v1089 = vsel %vm920, %v897, -inf
        %v1090 = vrot.slane %v1089, 4
        %v1091 = vmax.f32 %v1089, %v1090
        %v1092 = vrot.slane %v1091, 2
        %v1093 = vmax.f32 %v1091, %v1092
        %v1094 = vrot.slane %v1093, 1
        %v1095 = vmax.f32 %v1093, %v1094
        %v1096 = vsel %vm920, %v900, -inf
        %v1097 = vrot.slane %v1096, 4
        %v1098 = vmax.f32 %v1096, %v1097
        %v1099 = vrot.slane %v1098, 2
        %v1100 = vmax.f32 %v1098, %v1099
        %v1101 = vrot.slane %v1100, 1
        %v1102 = vmax.f32 %v1100, %v1101
        %v1103 = vsel %vm920, %v903, -inf
        %v1104 = vrot.slane %v1103, 4
        %v1105 = vmax.f32 %v1103, %v1104
        %v1106 = vrot.slane %v1105, 2
        %v1107 = vmax.f32 %v1105, %v1106
        %v1108 = vrot.slane %v1107, 1
        %v1109 = vmax.f32 %v1107, %v1108
        %v1110 = vsel %vm920, %v906, -inf
        %v1111 = vrot.slane %v1110, 4
        %v1112 = vmax.f32 %v1110, %v1111
        %v1113 = vrot.slane %v1112, 2
        %v1114 = vmax.f32 %v1112, %v1113
        %v1115 = vrot.slane %v1114, 1
        %v1116 = vmax.f32 %v1114, %v1115
        %v1117 = vsel %vm920, %v909, -inf
        %v1118 = vrot.slane %v1117, 4
        %v1119 = vmax.f32 %v1117, %v1118
        %v1120 = vrot.slane %v1119, 2
        %v1121 = vmax.f32 %v1119, %v1120
        %v1122 = vrot.slane %v1121, 1
        %v1123 = vmax.f32 %v1121, %v1122
        %v1124 = vsel %vm920, %v912, -inf
        %v1125 = vrot.slane %v1124, 4
        %v1126 = vmax.f32 %v1124, %v1125
        %v1127 = vrot.slane %v1126, 2
        %v1128 = vmax.f32 %v1126, %v1127
        %v1129 = vrot.slane %v1128, 1
        %v1130 = vmax.f32 %v1128, %v1129
        %v1131 = vsel %vm920, %v915, -inf
        %v1132 = vrot.slane %v1131, 4
        %v1133 = vmax.f32 %v1131, %v1132
        %v1134 = vrot.slane %v1133, 2
        %v1135 = vmax.f32 %v1133, %v1134
        %v1136 = vrot.slane %v1135, 1
        %v1137 = vmax.f32 %v1135, %v1136
        %v1138 = vsel %vm920, %v918, -inf
        %v1139 = vrot.slane %v1138, 4
        %v1140 = vmax.f32 %v1138, %v1139
        %v1141 = vrot.slane %v1140, 2
        %v1142 = vmax.f32 %v1140, %v1141
        %v1143 = vrot.slane %v1142, 1
        %v1144 = vmax.f32 %v1142, %v1143
        %v1145 = vsub.f32 %v825, %v927
        %v1146 = vsub.f32 %v828, %v934
        %v1147 = vsub.f32 %v831, %v941
        %v1148 = vsub.f32 %v834, %v948
        %v1149 = vsub.f32 %v837, %v955
        %v1150 = vsub.f32 %v840, %v962
        %v1151 = vsub.f32 %v843, %v969
        %v1152 = vsub.f32 %v846, %v976
        %v1153 = vsub.f32 %v849, %v983
        %v1154 = vsub.f32 %v852, %v990
        %v1155 = vsub.f32 %v855, %v997
        %v1156 = vsub.f32 %v858, %v1004
        %v1157 = vsub.f32 %v861, %v1011
        %v1158 = vsub.f32 %v864, %v1018
        %v1159 = vsub.f32 %v867, %v1025
        %v1160 = vsub.f32 %v870, %v1032
        %v1161 = vsub.f32 %v873, %v1039
        %v1162 = vsub.f32 %v876, %v1046
        %v1163 = vsub.f32 %v879, %v1053
        %v1164 = vsub.f32 %v882, %v1060
        %v1165 = vsub.f32 %v885, %v1067
        %v1166 = vsub.f32 %v888, %v1074
        %v1167 = vsub.f32 %v891, %v1081
        %v1168 = vsub.f32 %v894, %v1088
        %v1169 = vsub.f32 %v897, %v1095
        %v1170 = vsub.f32 %v900, %v1102
        %v1171 = vsub.f32 %v903, %v1109
        %v1172 = vsub.f32 %v906, %v1116
        %v1173 = vsub.f32 %v909, %v1123
        %v1174 = vsub.f32 %v912, %v1130
        %v1175 = vsub.f32 %v915, %v1137
        %v1176 = vsub.f32 %v918, %v1144
        %v1177 = vmul.f32 %v1145, 1.442695
        %v1178 = vpow.pop %v1177
        %v1179 = vmul.f32 %v1146, 1.442695
        %v1180 = vpow.pop %v1179
        %v1181 = vmul.f32 %v1147, 1.442695
        %v1182 = vpow.pop %v1181
        %v1183 = vmul.f32 %v1148, 1.442695
        %v1184 = vpow.pop %v1183
        %v1185 = vmul.f32 %v1149, 1.442695
        %v1186 = vpow.pop %v1185
        %v1187 = vmul.f32 %v1150, 1.442695
        %v1188 = vpow.pop %v1187
        %v1189 = vmul.f32 %v1151, 1.442695
        %v1190 = vpow.pop %v1189
        %v1191 = vmul.f32 %v1152, 1.442695
        %v1192 = vpow.pop %v1191
        %v1193 = vmul.f32 %v1153, 1.442695
        %v1194 = vpow.pop %v1193
        %v1195 = vmul.f32 %v1154, 1.442695
        %v1196 = vpow.pop %v1195
        %v1197 = vmul.f32 %v1155, 1.442695
        %v1198 = vpow.pop %v1197
        %v1199 = vmul.f32 %v1156, 1.442695
        %v1200 = vpow.pop %v1199
        %v1201 = vmul.f32 %v1157, 1.442695
        %v1202 = vpow.pop %v1201
        %v1203 = vmul.f32 %v1158, 1.442695
        %v1204 = vpow.pop %v1203
        %v1205 = vmul.f32 %v1159, 1.442695
        %v1206 = vpow.pop %v1205
        %v1207 = vmul.f32 %v1160, 1.442695
        %v1208 = vpow.pop %v1207
        %v1209 = vmul.f32 %v1161, 1.442695
        %v1210 = vpow.pop %v1209
        %v1211 = vmul.f32 %v1162, 1.442695
        %v1212 = vpow.pop %v1211
        %v1213 = vmul.f32 %v1163, 1.442695
        %v1214 = vpow.pop %v1213
        %v1215 = vmul.f32 %v1164, 1.442695
        %v1216 = vpow.pop %v1215
        %v1217 = vmul.f32 %v1165, 1.442695
        %v1218 = vpow.pop %v1217
        %v1219 = vmul.f32 %v1166, 1.442695
        %v1220 = vpow.pop %v1219
        %v1221 = vmul.f32 %v1167, 1.442695
        %v1222 = vpow.pop %v1221
        %v1223 = vmul.f32 %v1168, 1.442695
        %v1224 = vpow.pop %v1223
        %v1225 = vmul.f32 %v1169, 1.442695
        %v1226 = vpow.pop %v1225
        %v1227 = vmul.f32 %v1170, 1.442695
        %v1228 = vpow.pop %v1227
        %v1229 = vmul.f32 %v1171, 1.442695
        %v1230 = vpow.pop %v1229
        %v1231 = vmul.f32 %v1172, 1.442695
        %v1232 = vpow.pop %v1231
        %v1233 = vmul.f32 %v1173, 1.442695
        %v1234 = vpow.pop %v1233
        %v1235 = vmul.f32 %v1174, 1.442695
        %v1236 = vpow.pop %v1235
        %v1237 = vmul.f32 %v1175, 1.442695
        %v1238 = vpow.pop %v1237
        %v1239 = vmul.f32 %v1176, 1.442695
        %v1240 = vpow.pop %v1239
        %v1241 = vsel %vm920, %v1178, 0.0
        %v1242 = vrot.slane %v1241, 4
        %v1243 = vadd.f32 %v1241, %v1242
        %v1244 = vrot.slane %v1243, 2
        %v1245 = vadd.f32 %v1243, %v1244
        %v1246 = vrot.slane %v1245, 1
        %v1247 = vadd.f32 %v1245, %v1246
        %v1248 = vsel %vm920, %v1180, 0.0
        %v1249 = vrot.slane %v1248, 4
        %v1250 = vadd.f32 %v1248, %v1249
        %v1251 = vrot.slane %v1250, 2
        %v1252 = vadd.f32 %v1250, %v1251
        %v1253 = vrot.slane %v1252, 1
        %v1254 = vadd.f32 %v1252, %v1253
        %v1255 = vsel %vm920, %v1182, 0.0
        %v1256 = vrot.slane %v1255, 4
        %v1257 = vadd.f32 %v1255, %v1256
        %v1258 = vrot.slane %v1257, 2
        %v1259 = vadd.f32 %v1257, %v1258
        %v1260 = vrot.slane %v1259, 1
        %v1261 = vadd.f32 %v1259, %v1260
        %v1262 = vsel %vm920, %v1184, 0.0
        %v1263 = vrot.slane %v1262, 4
        %v1264 = vadd.f32 %v1262, %v1263
        %v1265 = vrot.slane %v1264, 2
        %v1266 = vadd.f32 %v1264, %v1265
        %v1267 = vrot.slane %v1266, 1
        %v1268 = vadd.f32 %v1266, %v1267
        %v1269 = vsel %vm920, %v1186, 0.0
        %v1270 = vrot.slane %v1269, 4
        %v1271 = vadd.f32 %v1269, %v1270
        %v1272 = vrot.slane %v1271, 2
        %v1273 = vadd.f32 %v1271, %v1272
        %v1274 = vrot.slane %v1273, 1
        %v1275 = vadd.f32 %v1273, %v1274
        %v1276 = vsel %vm920, %v1188, 0.0
        %v1277 = vrot.slane %v1276, 4
        %v1278 = vadd.f32 %v1276, %v1277
        %v1279 = vrot.slane %v1278, 2
        %v1280 = vadd.f32 %v1278, %v1279
        %v1281 = vrot.slane %v1280, 1
        %v1282 = vadd.f32 %v1280, %v1281
        %v1283 = vsel %vm920, %v1190, 0.0
        %v1284 = vrot.slane %v1283, 4
        %v1285 = vadd.f32 %v1283, %v1284
        %v1286 = vrot.slane %v1285, 2
        %v1287 = vadd.f32 %v1285, %v1286
        %v1288 = vrot.slane %v1287, 1
        %v1289 = vadd.f32 %v1287, %v1288
        %v1290 = vsel %vm920, %v1192, 0.0
        %v1291 = vrot.slane %v1290, 4
        %v1292 = vadd.f32 %v1290, %v1291
        %v1293 = vrot.slane %v1292, 2
        %v1294 = vadd.f32 %v1292, %v1293
        %v1295 = vrot.slane %v1294, 1
        %v1296 = vadd.f32 %v1294, %v1295
        %v1297 = vsel %vm920, %v1194, 0.0
        %v1298 = vrot.slane %v1297, 4
        %v1299 = vadd.f32 %v1297, %v1298
        %v1300 = vrot.slane %v1299, 2
        %v1301 = vadd.f32 %v1299, %v1300
        %v1302 = vrot.slane %v1301, 1
        %v1303 = vadd.f32 %v1301, %v1302
        %v1304 = vsel %vm920, %v1196, 0.0
        %v1305 = vrot.slane %v1304, 4
        %v1306 = vadd.f32 %v1304, %v1305
        %v1307 = vrot.slane %v1306, 2
        %v1308 = vadd.f32 %v1306, %v1307
        %v1309 = vrot.slane %v1308, 1
        %v1310 = vadd.f32 %v1308, %v1309
        %v1311 = vsel %vm920, %v1198, 0.0
        %v1312 = vrot.slane %v1311, 4
        %v1313 = vadd.f32 %v1311, %v1312
        %v1314 = vrot.slane %v1313, 2
        %v1315 = vadd.f32 %v1313, %v1314
        %v1316 = vrot.slane %v1315, 1
        %v1317 = vadd.f32 %v1315, %v1316
        %v1318 = vsel %vm920, %v1200, 0.0
        %v1319 = vrot.slane %v1318, 4
        %v1320 = vadd.f32 %v1318, %v1319
        %v1321 = vrot.slane %v1320, 2
        %v1322 = vadd.f32 %v1320, %v1321
        %v1323 = vrot.slane %v1322, 1
        %v1324 = vadd.f32 %v1322, %v1323
        %v1325 = vsel %vm920, %v1202, 0.0
        %v1326 = vrot.slane %v1325, 4
        %v1327 = vadd.f32 %v1325, %v1326
        %v1328 = vrot.slane %v1327, 2
        %v1329 = vadd.f32 %v1327, %v1328
        %v1330 = vrot.slane %v1329, 1
        %v1331 = vadd.f32 %v1329, %v1330
        %v1332 = vsel %vm920, %v1204, 0.0
        %v1333 = vrot.slane %v1332, 4
        %v1334 = vadd.f32 %v1332, %v1333
        %v1335 = vrot.slane %v1334, 2
        %v1336 = vadd.f32 %v1334, %v1335
        %v1337 = vrot.slane %v1336, 1
        %v1338 = vadd.f32 %v1336, %v1337
        %v1339 = vsel %vm920, %v1206, 0.0
        %v1340 = vrot.slane %v1339, 4
        %v1341 = vadd.f32 %v1339, %v1340
        %v1342 = vrot.slane %v1341, 2
        %v1343 = vadd.f32 %v1341, %v1342
        %v1344 = vrot.slane %v1343, 1
        %v1345 = vadd.f32 %v1343, %v1344
        %v1346 = vsel %vm920, %v1208, 0.0
        %v1347 = vrot.slane %v1346, 4
        %v1348 = vadd.f32 %v1346, %v1347
        %v1349 = vrot.slane %v1348, 2
        %v1350 = vadd.f32 %v1348, %v1349
        %v1351 = vrot.slane %v1350, 1
        %v1352 = vadd.f32 %v1350, %v1351
        %v1353 = vsel %vm920, %v1210, 0.0
        %v1354 = vrot.slane %v1353, 4
        %v1355 = vadd.f32 %v1353, %v1354
        %v1356 = vrot.slane %v1355, 2
        %v1357 = vadd.f32 %v1355, %v1356
        %v1358 = vrot.slane %v1357, 1
        %v1359 = vadd.f32 %v1357, %v1358
        %v1360 = vsel %vm920, %v1212, 0.0
        %v1361 = vrot.slane %v1360, 4
        %v1362 = vadd.f32 %v1360, %v1361
        %v1363 = vrot.slane %v1362, 2
        %v1364 = vadd.f32 %v1362, %v1363
        %v1365 = vrot.slane %v1364, 1
        %v1366 = vadd.f32 %v1364, %v1365
        %v1367 = vsel %vm920, %v1214, 0.0
        %v1368 = vrot.slane %v1367, 4
        %v1369 = vadd.f32 %v1367, %v1368
        %v1370 = vrot.slane %v1369, 2
        %v1371 = vadd.f32 %v1369, %v1370
        %v1372 = vrot.slane %v1371, 1
        %v1373 = vadd.f32 %v1371, %v1372
        %v1374 = vsel %vm920, %v1216, 0.0
        %v1375 = vrot.slane %v1374, 4
        %v1376 = vadd.f32 %v1374, %v1375
        %v1377 = vrot.slane %v1376, 2
        %v1378 = vadd.f32 %v1376, %v1377
        %v1379 = vrot.slane %v1378, 1
        %v1380 = vadd.f32 %v1378, %v1379
        %v1381 = vsel %vm920, %v1218, 0.0
        %v1382 = vrot.slane %v1381, 4
        %v1383 = vadd.f32 %v1381, %v1382
        %v1384 = vrot.slane %v1383, 2
        %v1385 = vadd.f32 %v1383, %v1384
        %v1386 = vrot.slane %v1385, 1
        %v1387 = vadd.f32 %v1385, %v1386
        %v1388 = vsel %vm920, %v1220, 0.0
        %v1389 = vrot.slane %v1388, 4
        %v1390 = vadd.f32 %v1388, %v1389
        %v1391 = vrot.slane %v1390, 2
        %v1392 = vadd.f32 %v1390, %v1391
        %v1393 = vrot.slane %v1392, 1
        %v1394 = vadd.f32 %v1392, %v1393
        %v1395 = vsel %vm920, %v1222, 0.0
        %v1396 = vrot.slane %v1395, 4
        %v1397 = vadd.f32 %v1395, %v1396
        %v1398 = vrot.slane %v1397, 2
        %v1399 = vadd.f32 %v1397, %v1398
        %v1400 = vrot.slane %v1399, 1
        %v1401 = vadd.f32 %v1399, %v1400
        %v1402 = vsel %vm920, %v1224, 0.0
        %v1403 = vrot.slane %v1402, 4
        %v1404 = vadd.f32 %v1402, %v1403
        %v1405 = vrot.slane %v1404, 2
        %v1406 = vadd.f32 %v1404, %v1405
        %v1407 = vrot.slane %v1406, 1
        %v1408 = vadd.f32 %v1406, %v1407
        %v1409 = vsel %vm920, %v1226, 0.0
        %v1410 = vrot.slane %v1409, 4
        %v1411 = vadd.f32 %v1409, %v1410
        %v1412 = vrot.slane %v1411, 2
        %v1413 = vadd.f32 %v1411, %v1412
        %v1414 = vrot.slane %v1413, 1
        %v1415 = vadd.f32 %v1413, %v1414
        %v1416 = vsel %vm920, %v1228, 0.0
        %v1417 = vrot.slane %v1416, 4
        %v1418 = vadd.f32 %v1416, %v1417
        %v1419 = vrot.slane %v1418, 2
        %v1420 = vadd.f32 %v1418, %v1419
        %v1421 = vrot.slane %v1420, 1
        %v1422 = vadd.f32 %v1420, %v1421
        %v1423 = vsel %vm920, %v1230, 0.0
        %v1424 = vrot.slane %v1423, 4
        %v1425 = vadd.f32 %v1423, %v1424
        %v1426 = vrot.slane %v1425, 2
        %v1427 = vadd.f32 %v1425, %v1426
        %v1428 = vrot.slane %v1427, 1
        %v1429 = vadd.f32 %v1427, %v1428
        %v1430 = vsel %vm920, %v1232, 0.0
        %v1431 = vrot.slane %v1430, 4
        %v1432 = vadd.f32 %v1430, %v1431
        %v1433 = vrot.slane %v1432, 2
        %v1434 = vadd.f32 %v1432, %v1433
        %v1435 = vrot.slane %v1434, 1
        %v1436 = vadd.f32 %v1434, %v1435
        %v1437 = vsel %vm920, %v1234, 0.0
        %v1438 = vrot.slane %v1437, 4
        %v1439 = vadd.f32 %v1437, %v1438
        %v1440 = vrot.slane %v1439, 2
        %v1441 = vadd.f32 %v1439, %v1440
        %v1442 = vrot.slane %v1441, 1
        %v1443 = vadd.f32 %v1441, %v1442
        %v1444 = vsel %vm920, %v1236, 0.0
        %v1445 = vrot.slane %v1444, 4
        %v1446 = vadd.f32 %v1444, %v1445
        %v1447 = vrot.slane %v1446, 2
        %v1448 = vadd.f32 %v1446, %v1447
        %v1449 = vrot.slane %v1448, 1
        %v1450 = vadd.f32 %v1448, %v1449
        %v1451 = vsel %vm920, %v1238, 0.0
        %v1452 = vrot.slane %v1451, 4
        %v1453 = vadd.f32 %v1451, %v1452
        %v1454 = vrot.slane %v1453, 2
        %v1455 = vadd.f32 %v1453, %v1454
        %v1456 = vrot.slane %v1455, 1
        %v1457 = vadd.f32 %v1455, %v1456
        %v1458 = vsel %vm920, %v1240, 0.0
        %v1459 = vrot.slane %v1458, 4
        %v1460 = vadd.f32 %v1458, %v1459
        %v1461 = vrot.slane %v1460, 2
        %v1462 = vadd.f32 %v1460, %v1461
        %v1463 = vrot.slane %v1462, 1
        %v1464 = vadd.f32 %v1462, %v1463
        %v1465 = vrcp.pop %v1247
        %v1466 = vmul.f32 %v1247, %v1465
        %v1467 = vsub.f32 1.0, %v1466
        %v1468 = vmul.f32 %v1465, %v1467
        %v1469 = vadd.f32 %v1465, %v1468
        %vm1470 = vweird.f32 %v1247
        %vm1471 = vweird.f32 %v1465
        %vm1472 = vmor %vm1470, %vm1471
        %v1473 = vsel %vm1472, %v1465, %v1469
        %v1474 = vand.u32 2147483647, %v1247
        %vm1475 = vcmp.eq.f32.partialorder %v1474, 8.507059e+37
        %v1476 = vand.u32 %v1247, 2147483648
        %v1477 = vor.u32 1.1754944e-38, %v1476
        %v1478 = vsel %vm1475, %v1477, %v1473
        %v1479 = vmul.f32 %v1178, %v1478
        %v1480 = vrcp.pop %v1254
        %v1481 = vmul.f32 %v1254, %v1480
        %v1482 = vsub.f32 1.0, %v1481
        %v1483 = vmul.f32 %v1480, %v1482
        %v1484 = vadd.f32 %v1480, %v1483
        %vm1485 = vweird.f32 %v1254
        %vm1486 = vweird.f32 %v1480
        %vm1487 = vmor %vm1485, %vm1486
        %v1488 = vsel %vm1487, %v1480, %v1484
        %v1489 = vand.u32 2147483647, %v1254
        %vm1490 = vcmp.eq.f32.partialorder %v1489, 8.507059e+37
        %v1491 = vand.u32 %v1254, 2147483648
        %v1492 = vor.u32 1.1754944e-38, %v1491
        %v1493 = vsel %vm1490, %v1492, %v1488
        %v1494 = vmul.f32 %v1180, %v1493
        %v1495 = vrcp.pop %v1261
        %v1496 = vmul.f32 %v1261, %v1495
        %v1497 = vsub.f32 1.0, %v1496
        %v1498 = vmul.f32 %v1495, %v1497
        %v1499 = vadd.f32 %v1495, %v1498
        %vm1500 = vweird.f32 %v1261
        %vm1501 = vweird.f32 %v1495
        %vm1502 = vmor %vm1500, %vm1501
        %v1503 = vsel %vm1502, %v1495, %v1499
        %v1504 = vand.u32 2147483647, %v1261
        %vm1505 = vcmp.eq.f32.partialorder %v1504, 8.507059e+37
        %v1506 = vand.u32 %v1261, 2147483648
        %v1507 = vor.u32 1.1754944e-38, %v1506
        %v1508 = vsel %vm1505, %v1507, %v1503
        %v1509 = vmul.f32 %v1182, %v1508
        %v1510 = vrcp.pop %v1268
        %v1511 = vmul.f32 %v1268, %v1510
        %v1512 = vsub.f32 1.0, %v1511
        %v1513 = vmul.f32 %v1510, %v1512
        %v1514 = vadd.f32 %v1510, %v1513
        %vm1515 = vweird.f32 %v1268
        %vm1516 = vweird.f32 %v1510
        %vm1517 = vmor %vm1515, %vm1516
        %v1518 = vsel %vm1517, %v1510, %v1514
        %v1519 = vand.u32 2147483647, %v1268
        %vm1520 = vcmp.eq.f32.partialorder %v1519, 8.507059e+37
        %v1521 = vand.u32 %v1268, 2147483648
        %v1522 = vor.u32 1.1754944e-38, %v1521
        %v1523 = vsel %vm1520, %v1522, %v1518
        %v1524 = vmul.f32 %v1184, %v1523
        %v1525 = vrcp.pop %v1275
        %v1526 = vmul.f32 %v1275, %v1525
        %v1527 = vsub.f32 1.0, %v1526
        %v1528 = vmul.f32 %v1525, %v1527
        %v1529 = vadd.f32 %v1525, %v1528
        %vm1530 = vweird.f32 %v1275
        %vm1531 = vweird.f32 %v1525
        %vm1532 = vmor %vm1530, %vm1531
        %v1533 = vsel %vm1532, %v1525, %v1529
        %v1534 = vand.u32 2147483647, %v1275
        %vm1535 = vcmp.eq.f32.partialorder %v1534, 8.507059e+37
        %v1536 = vand.u32 %v1275, 2147483648
        %v1537 = vor.u32 1.1754944e-38, %v1536
        %v1538 = vsel %vm1535, %v1537, %v1533
        %v1539 = vmul.f32 %v1186, %v1538
        %v1540 = vrcp.pop %v1282
        %v1541 = vmul.f32 %v1282, %v1540
        %v1542 = vsub.f32 1.0, %v1541
        %v1543 = vmul.f32 %v1540, %v1542
        %v1544 = vadd.f32 %v1540, %v1543
        %vm1545 = vweird.f32 %v1282
        %vm1546 = vweird.f32 %v1540
        %vm1547 = vmor %vm1545, %vm1546
        %v1548 = vsel %vm1547, %v1540, %v1544
        %v1549 = vand.u32 2147483647, %v1282
        %vm1550 = vcmp.eq.f32.partialorder %v1549, 8.507059e+37
        %v1551 = vand.u32 %v1282, 2147483648
        %v1552 = vor.u32 1.1754944e-38, %v1551
        %v1553 = vsel %vm1550, %v1552, %v1548
        %v1554 = vmul.f32 %v1188, %v1553
        %v1555 = vrcp.pop %v1289
        %v1556 = vmul.f32 %v1289, %v1555
        %v1557 = vsub.f32 1.0, %v1556
        %v1558 = vmul.f32 %v1555, %v1557
        %v1559 = vadd.f32 %v1555, %v1558
        %vm1560 = vweird.f32 %v1289
        %vm1561 = vweird.f32 %v1555
        %vm1562 = vmor %vm1560, %vm1561
        %v1563 = vsel %vm1562, %v1555, %v1559
        %v1564 = vand.u32 2147483647, %v1289
        %vm1565 = vcmp.eq.f32.partialorder %v1564, 8.507059e+37
        %v1566 = vand.u32 %v1289, 2147483648
        %v1567 = vor.u32 1.1754944e-38, %v1566
        %v1568 = vsel %vm1565, %v1567, %v1563
        %v1569 = vmul.f32 %v1190, %v1568
        %v1570 = vrcp.pop %v1296
        %v1571 = vmul.f32 %v1296, %v1570
        %v1572 = vsub.f32 1.0, %v1571
        %v1573 = vmul.f32 %v1570, %v1572
        %v1574 = vadd.f32 %v1570, %v1573
        %vm1575 = vweird.f32 %v1296
        %vm1576 = vweird.f32 %v1570
        %vm1577 = vmor %vm1575, %vm1576
        %v1578 = vsel %vm1577, %v1570, %v1574
        %v1579 = vand.u32 2147483647, %v1296
        %vm1580 = vcmp.eq.f32.partialorder %v1579, 8.507059e+37
        %v1581 = vand.u32 %v1296, 2147483648
        %v1582 = vor.u32 1.1754944e-38, %v1581
        %v1583 = vsel %vm1580, %v1582, %v1578
        %v1584 = vmul.f32 %v1192, %v1583
        %v1585 = vrcp.pop %v1303
        %v1586 = vmul.f32 %v1303, %v1585
        %v1587 = vsub.f32 1.0, %v1586
        %v1588 = vmul.f32 %v1585, %v1587
        %v1589 = vadd.f32 %v1585, %v1588
        %vm1590 = vweird.f32 %v1303
        %vm1591 = vweird.f32 %v1585
        %vm1592 = vmor %vm1590, %vm1591
        %v1593 = vsel %vm1592, %v1585, %v1589
        %v1594 = vand.u32 2147483647, %v1303
        %vm1595 = vcmp.eq.f32.partialorder %v1594, 8.507059e+37
        %v1596 = vand.u32 %v1303, 2147483648
        %v1597 = vor.u32 1.1754944e-38, %v1596
        %v1598 = vsel %vm1595, %v1597, %v1593
        %v1599 = vmul.f32 %v1194, %v1598
        %v1600 = vrcp.pop %v1310
        %v1601 = vmul.f32 %v1310, %v1600
        %v1602 = vsub.f32 1.0, %v1601
        %v1603 = vmul.f32 %v1600, %v1602
        %v1604 = vadd.f32 %v1600, %v1603
        %vm1605 = vweird.f32 %v1310
        %vm1606 = vweird.f32 %v1600
        %vm1607 = vmor %vm1605, %vm1606
        %v1608 = vsel %vm1607, %v1600, %v1604
        %v1609 = vand.u32 2147483647, %v1310
        %vm1610 = vcmp.eq.f32.partialorder %v1609, 8.507059e+37
        %v1611 = vand.u32 %v1310, 2147483648
        %v1612 = vor.u32 1.1754944e-38, %v1611
        %v1613 = vsel %vm1610, %v1612, %v1608
        %v1614 = vmul.f32 %v1196, %v1613
        %v1615 = vrcp.pop %v1317
        %v1616 = vmul.f32 %v1317, %v1615
        %v1617 = vsub.f32 1.0, %v1616
        %v1618 = vmul.f32 %v1615, %v1617
        %v1619 = vadd.f32 %v1615, %v1618
        %vm1620 = vweird.f32 %v1317
        %vm1621 = vweird.f32 %v1615
        %vm1622 = vmor %vm1620, %vm1621
        %v1623 = vsel %vm1622, %v1615, %v1619
        %v1624 = vand.u32 2147483647, %v1317
        %vm1625 = vcmp.eq.f32.partialorder %v1624, 8.507059e+37
        %v1626 = vand.u32 %v1317, 2147483648
        %v1627 = vor.u32 1.1754944e-38, %v1626
        %v1628 = vsel %vm1625, %v1627, %v1623
        %v1629 = vmul.f32 %v1198, %v1628
        %v1630 = vrcp.pop %v1324
        %v1631 = vmul.f32 %v1324, %v1630
        %v1632 = vsub.f32 1.0, %v1631
        %v1633 = vmul.f32 %v1630, %v1632
        %v1634 = vadd.f32 %v1630, %v1633
        %vm1635 = vweird.f32 %v1324
        %vm1636 = vweird.f32 %v1630
        %vm1637 = vmor %vm1635, %vm1636
        %v1638 = vsel %vm1637, %v1630, %v1634
        %v1639 = vand.u32 2147483647, %v1324
        %vm1640 = vcmp.eq.f32.partialorder %v1639, 8.507059e+37
        %v1641 = vand.u32 %v1324, 2147483648
        %v1642 = vor.u32 1.1754944e-38, %v1641
        %v1643 = vsel %vm1640, %v1642, %v1638
        %v1644 = vmul.f32 %v1200, %v1643
        %v1645 = vrcp.pop %v1331
        %v1646 = vmul.f32 %v1331, %v1645
        %v1647 = vsub.f32 1.0, %v1646
        %v1648 = vmul.f32 %v1645, %v1647
        %v1649 = vadd.f32 %v1645, %v1648
        %vm1650 = vweird.f32 %v1331
        %vm1651 = vweird.f32 %v1645
        %vm1652 = vmor %vm1650, %vm1651
        %v1653 = vsel %vm1652, %v1645, %v1649
        %v1654 = vand.u32 2147483647, %v1331
        %vm1655 = vcmp.eq.f32.partialorder %v1654, 8.507059e+37
        %v1656 = vand.u32 %v1331, 2147483648
        %v1657 = vor.u32 1.1754944e-38, %v1656
        %v1658 = vsel %vm1655, %v1657, %v1653
        %v1659 = vmul.f32 %v1202, %v1658
        %v1660 = vrcp.pop %v1338
        %v1661 = vmul.f32 %v1338, %v1660
        %v1662 = vsub.f32 1.0, %v1661
        %v1663 = vmul.f32 %v1660, %v1662
        %v1664 = vadd.f32 %v1660, %v1663
        %vm1665 = vweird.f32 %v1338
        %vm1666 = vweird.f32 %v1660
        %vm1667 = vmor %vm1665, %vm1666
        %v1668 = vsel %vm1667, %v1660, %v1664
        %v1669 = vand.u32 2147483647, %v1338
        %vm1670 = vcmp.eq.f32.partialorder %v1669, 8.507059e+37
        %v1671 = vand.u32 %v1338, 2147483648
        %v1672 = vor.u32 1.1754944e-38, %v1671
        %v1673 = vsel %vm1670, %v1672, %v1668
        %v1674 = vmul.f32 %v1204, %v1673
        %v1675 = vrcp.pop %v1345
        %v1676 = vmul.f32 %v1345, %v1675
        %v1677 = vsub.f32 1.0, %v1676
        %v1678 = vmul.f32 %v1675, %v1677
        %v1679 = vadd.f32 %v1675, %v1678
        %vm1680 = vweird.f32 %v1345
        %vm1681 = vweird.f32 %v1675
        %vm1682 = vmor %vm1680, %vm1681
        %v1683 = vsel %vm1682, %v1675, %v1679
        %v1684 = vand.u32 2147483647, %v1345
        %vm1685 = vcmp.eq.f32.partialorder %v1684, 8.507059e+37
        %v1686 = vand.u32 %v1345, 2147483648
        %v1687 = vor.u32 1.1754944e-38, %v1686
        %v1688 = vsel %vm1685, %v1687, %v1683
        %v1689 = vmul.f32 %v1206, %v1688
        %v1690 = vrcp.pop %v1352
        %v1691 = vmul.f32 %v1352, %v1690
        %v1692 = vsub.f32 1.0, %v1691
        %v1693 = vmul.f32 %v1690, %v1692
        %v1694 = vadd.f32 %v1690, %v1693
        %vm1695 = vweird.f32 %v1352
        %vm1696 = vweird.f32 %v1690
        %vm1697 = vmor %vm1695, %vm1696
        %v1698 = vsel %vm1697, %v1690, %v1694
        %v1699 = vand.u32 2147483647, %v1352
        %vm1700 = vcmp.eq.f32.partialorder %v1699, 8.507059e+37
        %v1701 = vand.u32 %v1352, 2147483648
        %v1702 = vor.u32 1.1754944e-38, %v1701
        %v1703 = vsel %vm1700, %v1702, %v1698
        %v1704 = vmul.f32 %v1208, %v1703
        %v1705 = vrcp.pop %v1359
        %v1706 = vmul.f32 %v1359, %v1705
        %v1707 = vsub.f32 1.0, %v1706
        %v1708 = vmul.f32 %v1705, %v1707
        %v1709 = vadd.f32 %v1705, %v1708
        %vm1710 = vweird.f32 %v1359
        %vm1711 = vweird.f32 %v1705
        %vm1712 = vmor %vm1710, %vm1711
        %v1713 = vsel %vm1712, %v1705, %v1709
        %v1714 = vand.u32 2147483647, %v1359
        %vm1715 = vcmp.eq.f32.partialorder %v1714, 8.507059e+37
        %v1716 = vand.u32 %v1359, 2147483648
        %v1717 = vor.u32 1.1754944e-38, %v1716
        %v1718 = vsel %vm1715, %v1717, %v1713
        %v1719 = vmul.f32 %v1210, %v1718
        %v1720 = vrcp.pop %v1366
        %v1721 = vmul.f32 %v1366, %v1720
        %v1722 = vsub.f32 1.0, %v1721
        %v1723 = vmul.f32 %v1720, %v1722
        %v1724 = vadd.f32 %v1720, %v1723
        %vm1725 = vweird.f32 %v1366
        %vm1726 = vweird.f32 %v1720
        %vm1727 = vmor %vm1725, %vm1726
        %v1728 = vsel %vm1727, %v1720, %v1724
        %v1729 = vand.u32 2147483647, %v1366
        %vm1730 = vcmp.eq.f32.partialorder %v1729, 8.507059e+37
        %v1731 = vand.u32 %v1366, 2147483648
        %v1732 = vor.u32 1.1754944e-38, %v1731
        %v1733 = vsel %vm1730, %v1732, %v1728
        %v1734 = vmul.f32 %v1212, %v1733
        %v1735 = vrcp.pop %v1373
        %v1736 = vmul.f32 %v1373, %v1735
        %v1737 = vsub.f32 1.0, %v1736
        %v1738 = vmul.f32 %v1735, %v1737
        %v1739 = vadd.f32 %v1735, %v1738
        %vm1740 = vweird.f32 %v1373
        %vm1741 = vweird.f32 %v1735
        %vm1742 = vmor %vm1740, %vm1741
        %v1743 = vsel %vm1742, %v1735, %v1739
        %v1744 = vand.u32 2147483647, %v1373
        %vm1745 = vcmp.eq.f32.partialorder %v1744, 8.507059e+37
        %v1746 = vand.u32 %v1373, 2147483648
        %v1747 = vor.u32 1.1754944e-38, %v1746
        %v1748 = vsel %vm1745, %v1747, %v1743
        %v1749 = vmul.f32 %v1214, %v1748
        %v1750 = vrcp.pop %v1380
        %v1751 = vmul.f32 %v1380, %v1750
        %v1752 = vsub.f32 1.0, %v1751
        %v1753 = vmul.f32 %v1750, %v1752
        %v1754 = vadd.f32 %v1750, %v1753
        %vm1755 = vweird.f32 %v1380
        %vm1756 = vweird.f32 %v1750
        %vm1757 = vmor %vm1755, %vm1756
        %v1758 = vsel %vm1757, %v1750, %v1754
        %v1759 = vand.u32 2147483647, %v1380
        %vm1760 = vcmp.eq.f32.partialorder %v1759, 8.507059e+37
        %v1761 = vand.u32 %v1380, 2147483648
        %v1762 = vor.u32 1.1754944e-38, %v1761
        %v1763 = vsel %vm1760, %v1762, %v1758
        %v1764 = vmul.f32 %v1216, %v1763
        %v1765 = vrcp.pop %v1387
        %v1766 = vmul.f32 %v1387, %v1765
        %v1767 = vsub.f32 1.0, %v1766
        %v1768 = vmul.f32 %v1765, %v1767
        %v1769 = vadd.f32 %v1765, %v1768
        %vm1770 = vweird.f32 %v1387
        %vm1771 = vweird.f32 %v1765
        %vm1772 = vmor %vm1770, %vm1771
        %v1773 = vsel %vm1772, %v1765, %v1769
        %v1774 = vand.u32 2147483647, %v1387
        %vm1775 = vcmp.eq.f32.partialorder %v1774, 8.507059e+37
        %v1776 = vand.u32 %v1387, 2147483648
        %v1777 = vor.u32 1.1754944e-38, %v1776
        %v1778 = vsel %vm1775, %v1777, %v1773
        %v1779 = vmul.f32 %v1218, %v1778
        %v1780 = vrcp.pop %v1394
        %v1781 = vmul.f32 %v1394, %v1780
        %v1782 = vsub.f32 1.0, %v1781
        %v1783 = vmul.f32 %v1780, %v1782
        %v1784 = vadd.f32 %v1780, %v1783
        %vm1785 = vweird.f32 %v1394
        %vm1786 = vweird.f32 %v1780
        %vm1787 = vmor %vm1785, %vm1786
        %v1788 = vsel %vm1787, %v1780, %v1784
        %v1789 = vand.u32 2147483647, %v1394
        %vm1790 = vcmp.eq.f32.partialorder %v1789, 8.507059e+37
        %v1791 = vand.u32 %v1394, 2147483648
        %v1792 = vor.u32 1.1754944e-38, %v1791
        %v1793 = vsel %vm1790, %v1792, %v1788
        %v1794 = vmul.f32 %v1220, %v1793
        %v1795 = vrcp.pop %v1401
        %v1796 = vmul.f32 %v1401, %v1795
        %v1797 = vsub.f32 1.0, %v1796
        %v1798 = vmul.f32 %v1795, %v1797
        %v1799 = vadd.f32 %v1795, %v1798
        %vm1800 = vweird.f32 %v1401
        %vm1801 = vweird.f32 %v1795
        %vm1802 = vmor %vm1800, %vm1801
        %v1803 = vsel %vm1802, %v1795, %v1799
        %v1804 = vand.u32 2147483647, %v1401
        %vm1805 = vcmp.eq.f32.partialorder %v1804, 8.507059e+37
        %v1806 = vand.u32 %v1401, 2147483648
        %v1807 = vor.u32 1.1754944e-38, %v1806
        %v1808 = vsel %vm1805, %v1807, %v1803
        %v1809 = vmul.f32 %v1222, %v1808
        %v1810 = vrcp.pop %v1408
        %v1811 = vmul.f32 %v1408, %v1810
        %v1812 = vsub.f32 1.0, %v1811
        %v1813 = vmul.f32 %v1810, %v1812
        %v1814 = vadd.f32 %v1810, %v1813
        %vm1815 = vweird.f32 %v1408
        %vm1816 = vweird.f32 %v1810
        %vm1817 = vmor %vm1815, %vm1816
        %v1818 = vsel %vm1817, %v1810, %v1814
        %v1819 = vand.u32 2147483647, %v1408
        %vm1820 = vcmp.eq.f32.partialorder %v1819, 8.507059e+37
        %v1821 = vand.u32 %v1408, 2147483648
        %v1822 = vor.u32 1.1754944e-38, %v1821
        %v1823 = vsel %vm1820, %v1822, %v1818
        %v1824 = vmul.f32 %v1224, %v1823
        %v1825 = vrcp.pop %v1415
        %v1826 = vmul.f32 %v1415, %v1825
        %v1827 = vsub.f32 1.0, %v1826
        %v1828 = vmul.f32 %v1825, %v1827
        %v1829 = vadd.f32 %v1825, %v1828
        %vm1830 = vweird.f32 %v1415
        %vm1831 = vweird.f32 %v1825
        %vm1832 = vmor %vm1830, %vm1831
        %v1833 = vsel %vm1832, %v1825, %v1829
        %v1834 = vand.u32 2147483647, %v1415
        %vm1835 = vcmp.eq.f32.partialorder %v1834, 8.507059e+37
        %v1836 = vand.u32 %v1415, 2147483648
        %v1837 = vor.u32 1.1754944e-38, %v1836
        %v1838 = vsel %vm1835, %v1837, %v1833
        %v1839 = vmul.f32 %v1226, %v1838
        %v1840 = vrcp.pop %v1422
        %v1841 = vmul.f32 %v1422, %v1840
        %v1842 = vsub.f32 1.0, %v1841
        %v1843 = vmul.f32 %v1840, %v1842
        %v1844 = vadd.f32 %v1840, %v1843
        %vm1845 = vweird.f32 %v1422
        %vm1846 = vweird.f32 %v1840
        %vm1847 = vmor %vm1845, %vm1846
        %v1848 = vsel %vm1847, %v1840, %v1844
        %v1849 = vand.u32 2147483647, %v1422
        %vm1850 = vcmp.eq.f32.partialorder %v1849, 8.507059e+37
        %v1851 = vand.u32 %v1422, 2147483648
        %v1852 = vor.u32 1.1754944e-38, %v1851
        %v1853 = vsel %vm1850, %v1852, %v1848
        %v1854 = vmul.f32 %v1228, %v1853
        %v1855 = vrcp.pop %v1429
        %v1856 = vmul.f32 %v1429, %v1855
        %v1857 = vsub.f32 1.0, %v1856
        %v1858 = vmul.f32 %v1855, %v1857
        %v1859 = vadd.f32 %v1855, %v1858
        %vm1860 = vweird.f32 %v1429
        %vm1861 = vweird.f32 %v1855
        %vm1862 = vmor %vm1860, %vm1861
        %v1863 = vsel %vm1862, %v1855, %v1859
        %v1864 = vand.u32 2147483647, %v1429
        %vm1865 = vcmp.eq.f32.partialorder %v1864, 8.507059e+37
        %v1866 = vand.u32 %v1429, 2147483648
        %v1867 = vor.u32 1.1754944e-38, %v1866
        %v1868 = vsel %vm1865, %v1867, %v1863
        %v1869 = vmul.f32 %v1230, %v1868
        %v1870 = vrcp.pop %v1436
        %v1871 = vmul.f32 %v1436, %v1870
        %v1872 = vsub.f32 1.0, %v1871
        %v1873 = vmul.f32 %v1870, %v1872
        %v1874 = vadd.f32 %v1870, %v1873
        %vm1875 = vweird.f32 %v1436
        %vm1876 = vweird.f32 %v1870
        %vm1877 = vmor %vm1875, %vm1876
        %v1878 = vsel %vm1877, %v1870, %v1874
        %v1879 = vand.u32 2147483647, %v1436
        %vm1880 = vcmp.eq.f32.partialorder %v1879, 8.507059e+37
        %v1881 = vand.u32 %v1436, 2147483648
        %v1882 = vor.u32 1.1754944e-38, %v1881
        %v1883 = vsel %vm1880, %v1882, %v1878
        %v1884 = vmul.f32 %v1232, %v1883
        %v1885 = vrcp.pop %v1443
        %v1886 = vmul.f32 %v1443, %v1885
        %v1887 = vsub.f32 1.0, %v1886
        %v1888 = vmul.f32 %v1885, %v1887
        %v1889 = vadd.f32 %v1885, %v1888
        %vm1890 = vweird.f32 %v1443
        %vm1891 = vweird.f32 %v1885
        %vm1892 = vmor %vm1890, %vm1891
        %v1893 = vsel %vm1892, %v1885, %v1889
        %v1894 = vand.u32 2147483647, %v1443
        %vm1895 = vcmp.eq.f32.partialorder %v1894, 8.507059e+37
        %v1896 = vand.u32 %v1443, 2147483648
        %v1897 = vor.u32 1.1754944e-38, %v1896
        %v1898 = vsel %vm1895, %v1897, %v1893
        %v1899 = vmul.f32 %v1234, %v1898
        %v1900 = vrcp.pop %v1450
        %v1901 = vmul.f32 %v1450, %v1900
        %v1902 = vsub.f32 1.0, %v1901
        %v1903 = vmul.f32 %v1900, %v1902
        %v1904 = vadd.f32 %v1900, %v1903
        %vm1905 = vweird.f32 %v1450
        %vm1906 = vweird.f32 %v1900
        %vm1907 = vmor %vm1905, %vm1906
        %v1908 = vsel %vm1907, %v1900, %v1904
        %v1909 = vand.u32 2147483647, %v1450
        %vm1910 = vcmp.eq.f32.partialorder %v1909, 8.507059e+37
        %v1911 = vand.u32 %v1450, 2147483648
        %v1912 = vor.u32 1.1754944e-38, %v1911
        %v1913 = vsel %vm1910, %v1912, %v1908
        %v1914 = vmul.f32 %v1236, %v1913
        %v1915 = vrcp.pop %v1457
        %v1916 = vmul.f32 %v1457, %v1915
        %v1917 = vsub.f32 1.0, %v1916
        %v1918 = vmul.f32 %v1915, %v1917
        %v1919 = vadd.f32 %v1915, %v1918
        %vm1920 = vweird.f32 %v1457
        %vm1921 = vweird.f32 %v1915
        %vm1922 = vmor %vm1920, %vm1921
        %v1923 = vsel %vm1922, %v1915, %v1919
        %v1924 = vand.u32 2147483647, %v1457
        %vm1925 = vcmp.eq.f32.partialorder %v1924, 8.507059e+37
        %v1926 = vand.u32 %v1457, 2147483648
        %v1927 = vor.u32 1.1754944e-38, %v1926
        %v1928 = vsel %vm1925, %v1927, %v1923
        %v1929 = vmul.f32 %v1238, %v1928
        %v1930 = vrcp.pop %v1464
        %v1931 = vmul.f32 %v1464, %v1930
        %v1932 = vsub.f32 1.0, %v1931
        %v1933 = vmul.f32 %v1930, %v1932
        %v1934 = vadd.f32 %v1930, %v1933
        %vm1935 = vweird.f32 %v1464
        %vm1936 = vweird.f32 %v1930
        %vm1937 = vmor %vm1935, %vm1936
        %v1938 = vsel %vm1937, %v1930, %v1934
        %v1939 = vand.u32 2147483647, %v1464
        %vm1940 = vcmp.eq.f32.partialorder %v1939, 8.507059e+37
        %v1941 = vand.u32 %v1464, 2147483648
        %v1942 = vor.u32 1.1754944e-38, %v1941
        %v1943 = vsel %vm1940, %v1942, %v1938
        %v1944 = vmul.f32 %v1240, %v1943
        %1946 = vset.pattern.permute.xlu0 0
        %1947 = vperm.xlu0 %1946, %v1479
        %v1948 = vpop.permute.xlu0 %1947
        %1951 = vset.pattern.permute.xlu0 0
        %1952 = vperm.xlu0 %1951, %v1494
        %v1953 = vpop.permute.xlu0 %1952
        %1956 = vset.pattern.permute.xlu0 0
        %1957 = vperm.xlu0 %1956, %v1509
        %v1958 = vpop.permute.xlu0 %1957
        %1961 = vset.pattern.permute.xlu0 0
        %1962 = vperm.xlu0 %1961, %v1524
        %v1963 = vpop.permute.xlu0 %1962
        %1966 = vset.pattern.permute.xlu0 0
        %1967 = vperm.xlu0 %1966, %v1539
        %v1968 = vpop.permute.xlu0 %1967
        %1971 = vset.pattern.permute.xlu0 0
        %1972 = vperm.xlu0 %1971, %v1554
        %v1973 = vpop.permute.xlu0 %1972
        %1976 = vset.pattern.permute.xlu0 0
        %1977 = vperm.xlu0 %1976, %v1569
        %v1978 = vpop.permute.xlu0 %1977
        %1981 = vset.pattern.permute.xlu0 0
        %1982 = vperm.xlu0 %1981, %v1584
        %v1983 = vpop.permute.xlu0 %1982
        %1986 = vset.pattern.permute.xlu0 0
        %1987 = vperm.xlu0 %1986, %v1599
        %v1988 = vpop.permute.xlu0 %1987
        %1991 = vset.pattern.permute.xlu0 0
        %1992 = vperm.xlu0 %1991, %v1614
        %v1993 = vpop.permute.xlu0 %1992
        %1996 = vset.pattern.permute.xlu0 0
        %1997 = vperm.xlu0 %1996, %v1629
        %v1998 = vpop.permute.xlu0 %1997
        %2001 = vset.pattern.permute.xlu0 0
        %2002 = vperm.xlu0 %2001, %v1644
        %v2003 = vpop.permute.xlu0 %2002
        %2006 = vset.pattern.permute.xlu0 0
        %2007 = vperm.xlu0 %2006, %v1659
        %v2008 = vpop.permute.xlu0 %2007
        %2011 = vset.pattern.permute.xlu0 0
        %2012 = vperm.xlu0 %2011, %v1674
        %v2013 = vpop.permute.xlu0 %2012
        %2016 = vset.pattern.permute.xlu0 0
        %2017 = vperm.xlu0 %2016, %v1689
        %v2018 = vpop.permute.xlu0 %2017
        %2021 = vset.pattern.permute.xlu0 0
        %2022 = vperm.xlu0 %2021, %v1704
        %v2023 = vpop.permute.xlu0 %2022
        %2026 = vset.pattern.permute.xlu0 0
        %2027 = vperm.xlu0 %2026, %v1719
        %v2028 = vpop.permute.xlu0 %2027
        %2031 = vset.pattern.permute.xlu0 0
        %2032 = vperm.xlu0 %2031, %v1734
        %v2033 = vpop.permute.xlu0 %2032
        %2036 = vset.pattern.permute.xlu0 0
        %2037 = vperm.xlu0 %2036, %v1749
        %v2038 = vpop.permute.xlu0 %2037
        %2041 = vset.pattern.permute.xlu0 0
        %2042 = vperm.xlu0 %2041, %v1764
        %v2043 = vpop.permute.xlu0 %2042
        %2046 = vset.pattern.permute.xlu0 0
        %2047 = vperm.xlu0 %2046, %v1779
        %v2048 = vpop.permute.xlu0 %2047
        %2051 = vset.pattern.permute.xlu0 0
        %2052 = vperm.xlu0 %2051, %v1794
        %v2053 = vpop.permute.xlu0 %2052
        %2056 = vset.pattern.permute.xlu0 0
        %2057 = vperm.xlu0 %2056, %v1809
        %v2058 = vpop.permute.xlu0 %2057
        %2061 = vset.pattern.permute.xlu0 0
        %2062 = vperm.xlu0 %2061, %v1824
        %v2063 = vpop.permute.xlu0 %2062
        %2066 = vset.pattern.permute.xlu0 0
        %2067 = vperm.xlu0 %2066, %v1839
        %v2068 = vpop.permute.xlu0 %2067
        %2071 = vset.pattern.permute.xlu0 0
        %2072 = vperm.xlu0 %2071, %v1854
        %v2073 = vpop.permute.xlu0 %2072
        %2076 = vset.pattern.permute.xlu0 0
        %2077 = vperm.xlu0 %2076, %v1869
        %v2078 = vpop.permute.xlu0 %2077
        %2081 = vset.pattern.permute.xlu0 0
        %2082 = vperm.xlu0 %2081, %v1884
        %v2083 = vpop.permute.xlu0 %2082
        %2086 = vset.pattern.permute.xlu0 0
        %2087 = vperm.xlu0 %2086, %v1899
        %v2088 = vpop.permute.xlu0 %2087
        %2091 = vset.pattern.permute.xlu0 0
        %2092 = vperm.xlu0 %2091, %v1914
        %v2093 = vpop.permute.xlu0 %2092
        %2096 = vset.pattern.permute.xlu0 0
        %2097 = vperm.xlu0 %2096, %v1929
        %v2098 = vpop.permute.xlu0 %2097
        %2101 = vset.pattern.permute.xlu0 0
        %2102 = vperm.xlu0 %2101, %v1944
        %v2103 = vpop.permute.xlu0 %2102
        %v2105 = vmul.f32 %v1948, %v673
        %v2106 = vmul.f32 %v1953, %v674
        %v2107 = vmul.f32 %v1958, %v675
        %v2108 = vmul.f32 %v1963, %v676
        %v2109 = vmul.f32 %v1968, %v677
        %v2110 = vmul.f32 %v1973, %v678
        %v2111 = vmul.f32 %v1978, %v679
        %v2112 = vmul.f32 %v1983, %v680
        %v2113 = vmul.f32 %v1988, %v681
        %v2114 = vmul.f32 %v1993, %v682
        %v2115 = vmul.f32 %v1998, %v683
        %v2116 = vmul.f32 %v2003, %v684
        %v2117 = vmul.f32 %v2008, %v685
        %v2118 = vmul.f32 %v2013, %v686
        %v2119 = vmul.f32 %v2018, %v687
        %v2120 = vmul.f32 %v2023, %v688
        %v2121 = vmul.f32 %v2028, %v689
        %v2122 = vmul.f32 %v2033, %v690
        %v2123 = vmul.f32 %v2038, %v691
        %v2124 = vmul.f32 %v2043, %v692
        %v2125 = vmul.f32 %v2048, %v693
        %v2126 = vmul.f32 %v2053, %v694
        %v2127 = vmul.f32 %v2058, %v695
        %v2128 = vmul.f32 %v2063, %v696
        %v2129 = vmul.f32 %v2068, %v697
        %v2130 = vmul.f32 %v2073, %v698
        %v2131 = vmul.f32 %v2078, %v699
        %v2132 = vmul.f32 %v2083, %v700
        %v2133 = vmul.f32 %v2088, %v701
        %v2134 = vmul.f32 %v2093, %v702
        %v2135 = vmul.f32 %v2098, %v703
        %v2136 = vmul.f32 %v2103, %v704
        %v2137 = vsel %vm710, %v2105, 0.0
        %v2138 = vrot.slane %v2137, 4
        %v2139 = vadd.f32 %v2137, %v2138
        %v2140 = vrot.slane %v2139, 2
        %v2141 = vadd.f32 %v2139, %v2140
        %v2142 = vrot.slane %v2141, 1
        %v2143 = vadd.f32 %v2141, %v2142
        %v2144 = vsel %vm710, %v2106, 0.0
        %v2145 = vrot.slane %v2144, 4
        %v2146 = vadd.f32 %v2144, %v2145
        %v2147 = vrot.slane %v2146, 2
        %v2148 = vadd.f32 %v2146, %v2147
        %v2149 = vrot.slane %v2148, 1
        %v2150 = vadd.f32 %v2148, %v2149
        %v2151 = vsel %vm710, %v2107, 0.0
        %v2152 = vrot.slane %v2151, 4
        %v2153 = vadd.f32 %v2151, %v2152
        %v2154 = vrot.slane %v2153, 2
        %v2155 = vadd.f32 %v2153, %v2154
        %v2156 = vrot.slane %v2155, 1
        %v2157 = vadd.f32 %v2155, %v2156
        %v2158 = vsel %vm710, %v2108, 0.0
        %v2159 = vrot.slane %v2158, 4
        %v2160 = vadd.f32 %v2158, %v2159
        %v2161 = vrot.slane %v2160, 2
        %v2162 = vadd.f32 %v2160, %v2161
        %v2163 = vrot.slane %v2162, 1
        %v2164 = vadd.f32 %v2162, %v2163
        %v2165 = vsel %vm710, %v2109, 0.0
        %v2166 = vrot.slane %v2165, 4
        %v2167 = vadd.f32 %v2165, %v2166
        %v2168 = vrot.slane %v2167, 2
        %v2169 = vadd.f32 %v2167, %v2168
        %v2170 = vrot.slane %v2169, 1
        %v2171 = vadd.f32 %v2169, %v2170
        %v2172 = vsel %vm710, %v2110, 0.0
        %v2173 = vrot.slane %v2172, 4
        %v2174 = vadd.f32 %v2172, %v2173
        %v2175 = vrot.slane %v2174, 2
        %v2176 = vadd.f32 %v2174, %v2175
        %v2177 = vrot.slane %v2176, 1
        %v2178 = vadd.f32 %v2176, %v2177
        %v2179 = vsel %vm710, %v2111, 0.0
        %v2180 = vrot.slane %v2179, 4
        %v2181 = vadd.f32 %v2179, %v2180
        %v2182 = vrot.slane %v2181, 2
        %v2183 = vadd.f32 %v2181, %v2182
        %v2184 = vrot.slane %v2183, 1
        %v2185 = vadd.f32 %v2183, %v2184
        %v2186 = vsel %vm710, %v2112, 0.0
        %v2187 = vrot.slane %v2186, 4
        %v2188 = vadd.f32 %v2186, %v2187
        %v2189 = vrot.slane %v2188, 2
        %v2190 = vadd.f32 %v2188, %v2189
        %v2191 = vrot.slane %v2190, 1
        %v2192 = vadd.f32 %v2190, %v2191
        %v2193 = vsel %vm710, %v2113, 0.0
        %v2194 = vrot.slane %v2193, 4
        %v2195 = vadd.f32 %v2193, %v2194
        %v2196 = vrot.slane %v2195, 2
        %v2197 = vadd.f32 %v2195, %v2196
        %v2198 = vrot.slane %v2197, 1
        %v2199 = vadd.f32 %v2197, %v2198
        %v2200 = vsel %vm710, %v2114, 0.0
        %v2201 = vrot.slane %v2200, 4
        %v2202 = vadd.f32 %v2200, %v2201
        %v2203 = vrot.slane %v2202, 2
        %v2204 = vadd.f32 %v2202, %v2203
        %v2205 = vrot.slane %v2204, 1
        %v2206 = vadd.f32 %v2204, %v2205
        %v2207 = vsel %vm710, %v2115, 0.0
        %v2208 = vrot.slane %v2207, 4
        %v2209 = vadd.f32 %v2207, %v2208
        %v2210 = vrot.slane %v2209, 2
        %v2211 = vadd.f32 %v2209, %v2210
        %v2212 = vrot.slane %v2211, 1
        %v2213 = vadd.f32 %v2211, %v2212
        %v2214 = vsel %vm710, %v2116, 0.0
        %v2215 = vrot.slane %v2214, 4
        %v2216 = vadd.f32 %v2214, %v2215
        %v2217 = vrot.slane %v2216, 2
        %v2218 = vadd.f32 %v2216, %v2217
        %v2219 = vrot.slane %v2218, 1
        %v2220 = vadd.f32 %v2218, %v2219
        %v2221 = vsel %vm710, %v2117, 0.0
        %v2222 = vrot.slane %v2221, 4
        %v2223 = vadd.f32 %v2221, %v2222
        %v2224 = vrot.slane %v2223, 2
        %v2225 = vadd.f32 %v2223, %v2224
        %v2226 = vrot.slane %v2225, 1
        %v2227 = vadd.f32 %v2225, %v2226
        %v2228 = vsel %vm710, %v2118, 0.0
        %v2229 = vrot.slane %v2228, 4
        %v2230 = vadd.f32 %v2228, %v2229
        %v2231 = vrot.slane %v2230, 2
        %v2232 = vadd.f32 %v2230, %v2231
        %v2233 = vrot.slane %v2232, 1
        %v2234 = vadd.f32 %v2232, %v2233
        %v2235 = vsel %vm710, %v2119, 0.0
        %v2236 = vrot.slane %v2235, 4
        %v2237 = vadd.f32 %v2235, %v2236
        %v2238 = vrot.slane %v2237, 2
        %v2239 = vadd.f32 %v2237, %v2238
        %v2240 = vrot.slane %v2239, 1
        %v2241 = vadd.f32 %v2239, %v2240
        %v2242 = vsel %vm710, %v2120, 0.0
        %v2243 = vrot.slane %v2242, 4
        %v2244 = vadd.f32 %v2242, %v2243
        %v2245 = vrot.slane %v2244, 2
        %v2246 = vadd.f32 %v2244, %v2245
        %v2247 = vrot.slane %v2246, 1
        %v2248 = vadd.f32 %v2246, %v2247
        %v2249 = vsel %vm710, %v2121, 0.0
        %v2250 = vrot.slane %v2249, 4
        %v2251 = vadd.f32 %v2249, %v2250
        %v2252 = vrot.slane %v2251, 2
        %v2253 = vadd.f32 %v2251, %v2252
        %v2254 = vrot.slane %v2253, 1
        %v2255 = vadd.f32 %v2253, %v2254
        %v2256 = vsel %vm710, %v2122, 0.0
        %v2257 = vrot.slane %v2256, 4
        %v2258 = vadd.f32 %v2256, %v2257
        %v2259 = vrot.slane %v2258, 2
        %v2260 = vadd.f32 %v2258, %v2259
        %v2261 = vrot.slane %v2260, 1
        %v2262 = vadd.f32 %v2260, %v2261
        %v2263 = vsel %vm710, %v2123, 0.0
        %v2264 = vrot.slane %v2263, 4
        %v2265 = vadd.f32 %v2263, %v2264
        %v2266 = vrot.slane %v2265, 2
        %v2267 = vadd.f32 %v2265, %v2266
        %v2268 = vrot.slane %v2267, 1
        %v2269 = vadd.f32 %v2267, %v2268
        %v2270 = vsel %vm710, %v2124, 0.0
        %v2271 = vrot.slane %v2270, 4
        %v2272 = vadd.f32 %v2270, %v2271
        %v2273 = vrot.slane %v2272, 2
        %v2274 = vadd.f32 %v2272, %v2273
        %v2275 = vrot.slane %v2274, 1
        %v2276 = vadd.f32 %v2274, %v2275
        %v2277 = vsel %vm710, %v2125, 0.0
        %v2278 = vrot.slane %v2277, 4
        %v2279 = vadd.f32 %v2277, %v2278
        %v2280 = vrot.slane %v2279, 2
        %v2281 = vadd.f32 %v2279, %v2280
        %v2282 = vrot.slane %v2281, 1
        %v2283 = vadd.f32 %v2281, %v2282
        %v2284 = vsel %vm710, %v2126, 0.0
        %v2285 = vrot.slane %v2284, 4
        %v2286 = vadd.f32 %v2284, %v2285
        %v2287 = vrot.slane %v2286, 2
        %v2288 = vadd.f32 %v2286, %v2287
        %v2289 = vrot.slane %v2288, 1
        %v2290 = vadd.f32 %v2288, %v2289
        %v2291 = vsel %vm710, %v2127, 0.0
        %v2292 = vrot.slane %v2291, 4
        %v2293 = vadd.f32 %v2291, %v2292
        %v2294 = vrot.slane %v2293, 2
        %v2295 = vadd.f32 %v2293, %v2294
        %v2296 = vrot.slane %v2295, 1
        %v2297 = vadd.f32 %v2295, %v2296
        %v2298 = vsel %vm710, %v2128, 0.0
        %v2299 = vrot.slane %v2298, 4
        %v2300 = vadd.f32 %v2298, %v2299
        %v2301 = vrot.slane %v2300, 2
        %v2302 = vadd.f32 %v2300, %v2301
        %v2303 = vrot.slane %v2302, 1
        %v2304 = vadd.f32 %v2302, %v2303
        %v2305 = vsel %vm710, %v2129, 0.0
        %v2306 = vrot.slane %v2305, 4
        %v2307 = vadd.f32 %v2305, %v2306
        %v2308 = vrot.slane %v2307, 2
        %v2309 = vadd.f32 %v2307, %v2308
        %v2310 = vrot.slane %v2309, 1
        %v2311 = vadd.f32 %v2309, %v2310
        %v2312 = vsel %vm710, %v2130, 0.0
        %v2313 = vrot.slane %v2312, 4
        %v2314 = vadd.f32 %v2312, %v2313
        %v2315 = vrot.slane %v2314, 2
        %v2316 = vadd.f32 %v2314, %v2315
        %v2317 = vrot.slane %v2316, 1
        %v2318 = vadd.f32 %v2316, %v2317
        %v2319 = vsel %vm710, %v2131, 0.0
        %v2320 = vrot.slane %v2319, 4
        %v2321 = vadd.f32 %v2319, %v2320
        %v2322 = vrot.slane %v2321, 2
        %v2323 = vadd.f32 %v2321, %v2322
        %v2324 = vrot.slane %v2323, 1
        %v2325 = vadd.f32 %v2323, %v2324
        %v2326 = vsel %vm710, %v2132, 0.0
        %v2327 = vrot.slane %v2326, 4
        %v2328 = vadd.f32 %v2326, %v2327
        %v2329 = vrot.slane %v2328, 2
        %v2330 = vadd.f32 %v2328, %v2329
        %v2331 = vrot.slane %v2330, 1
        %v2332 = vadd.f32 %v2330, %v2331
        %v2333 = vsel %vm710, %v2133, 0.0
        %v2334 = vrot.slane %v2333, 4
        %v2335 = vadd.f32 %v2333, %v2334
        %v2336 = vrot.slane %v2335, 2
        %v2337 = vadd.f32 %v2335, %v2336
        %v2338 = vrot.slane %v2337, 1
        %v2339 = vadd.f32 %v2337, %v2338
        %v2340 = vsel %vm710, %v2134, 0.0
        %v2341 = vrot.slane %v2340, 4
        %v2342 = vadd.f32 %v2340, %v2341
        %v2343 = vrot.slane %v2342, 2
        %v2344 = vadd.f32 %v2342, %v2343
        %v2345 = vrot.slane %v2344, 1
        %v2346 = vadd.f32 %v2344, %v2345
        %v2347 = vsel %vm710, %v2135, 0.0
        %v2348 = vrot.slane %v2347, 4
        %v2349 = vadd.f32 %v2347, %v2348
        %v2350 = vrot.slane %v2349, 2
        %v2351 = vadd.f32 %v2349, %v2350
        %v2352 = vrot.slane %v2351, 1
        %v2353 = vadd.f32 %v2351, %v2352
        %v2354 = vsel %vm710, %v2136, 0.0
        %v2355 = vrot.slane %v2354, 4
        %v2356 = vadd.f32 %v2354, %v2355
        %v2357 = vrot.slane %v2356, 2
        %v2358 = vadd.f32 %v2356, %v2357
        %v2359 = vrot.slane %v2358, 1
        %v2360 = vadd.f32 %v2358, %v2359
        %vm2361 = vcmp.gt.f32.partialorder %v2143, 0.0
        %vm2362 = vcmp.gt.f32.partialorder %v2150, 0.0
        %vm2363 = vcmp.gt.f32.partialorder %v2157, 0.0
        %vm2364 = vcmp.gt.f32.partialorder %v2164, 0.0
        %vm2365 = vcmp.gt.f32.partialorder %v2171, 0.0
        %vm2366 = vcmp.gt.f32.partialorder %v2178, 0.0
        %vm2367 = vcmp.gt.f32.partialorder %v2185, 0.0
        %vm2368 = vcmp.gt.f32.partialorder %v2192, 0.0
        %vm2369 = vcmp.gt.f32.partialorder %v2199, 0.0
        %vm2370 = vcmp.gt.f32.partialorder %v2206, 0.0
        %vm2371 = vcmp.gt.f32.partialorder %v2213, 0.0
        %vm2372 = vcmp.gt.f32.partialorder %v2220, 0.0
        %vm2373 = vcmp.gt.f32.partialorder %v2227, 0.0
        %vm2374 = vcmp.gt.f32.partialorder %v2234, 0.0
        %vm2375 = vcmp.gt.f32.partialorder %v2241, 0.0
        %vm2376 = vcmp.gt.f32.partialorder %v2248, 0.0
        %vm2377 = vcmp.gt.f32.partialorder %v2255, 0.0
        %vm2378 = vcmp.gt.f32.partialorder %v2262, 0.0
        %vm2379 = vcmp.gt.f32.partialorder %v2269, 0.0
        %vm2380 = vcmp.gt.f32.partialorder %v2276, 0.0
        %vm2381 = vcmp.gt.f32.partialorder %v2283, 0.0
        %vm2382 = vcmp.gt.f32.partialorder %v2290, 0.0
        %vm2383 = vcmp.gt.f32.partialorder %v2297, 0.0
        %vm2384 = vcmp.gt.f32.partialorder %v2304, 0.0
        %vm2385 = vcmp.gt.f32.partialorder %v2311, 0.0
        %vm2386 = vcmp.gt.f32.partialorder %v2318, 0.0
        %vm2387 = vcmp.gt.f32.partialorder %v2325, 0.0
        %vm2388 = vcmp.gt.f32.partialorder %v2332, 0.0
        %vm2389 = vcmp.gt.f32.partialorder %v2339, 0.0
        %vm2390 = vcmp.gt.f32.partialorder %v2346, 0.0
        %vm2391 = vcmp.gt.f32.partialorder %v2353, 0.0
        %vm2392 = vcmp.gt.f32.partialorder %v2360, 0.0
        %v2393 = vmul.f32 %v2143, 0.2
        %v2394 = vmul.f32 %v2150, 0.2
        %v2395 = vmul.f32 %v2157, 0.2
        %v2396 = vmul.f32 %v2164, 0.2
        %v2397 = vmul.f32 %v2171, 0.2
        %v2398 = vmul.f32 %v2178, 0.2
        %v2399 = vmul.f32 %v2185, 0.2
        %v2400 = vmul.f32 %v2192, 0.2
        %v2401 = vmul.f32 %v2199, 0.2
        %v2402 = vmul.f32 %v2206, 0.2
        %v2403 = vmul.f32 %v2213, 0.2
        %v2404 = vmul.f32 %v2220, 0.2
        %v2405 = vmul.f32 %v2227, 0.2
        %v2406 = vmul.f32 %v2234, 0.2
        %v2407 = vmul.f32 %v2241, 0.2
        %v2408 = vmul.f32 %v2248, 0.2
        %v2409 = vmul.f32 %v2255, 0.2
        %v2410 = vmul.f32 %v2262, 0.2
        %v2411 = vmul.f32 %v2269, 0.2
        %v2412 = vmul.f32 %v2276, 0.2
        %v2413 = vmul.f32 %v2283, 0.2
        %v2414 = vmul.f32 %v2290, 0.2
        %v2415 = vmul.f32 %v2297, 0.2
        %v2416 = vmul.f32 %v2304, 0.2
        %v2417 = vmul.f32 %v2311, 0.2
        %v2418 = vmul.f32 %v2318, 0.2
        %v2419 = vmul.f32 %v2325, 0.2
        %v2420 = vmul.f32 %v2332, 0.2
        %v2421 = vmul.f32 %v2339, 0.2
        %v2422 = vmul.f32 %v2346, 0.2
        %v2423 = vmul.f32 %v2353, 0.2
        %v2424 = vmul.f32 %v2360, 0.2
        %v2425 = vsel %vm2361, %v2143, %v2393
        %v2426 = vsel %vm2362, %v2150, %v2394
        %v2427 = vsel %vm2363, %v2157, %v2395
        %v2428 = vsel %vm2364, %v2164, %v2396
        %v2429 = vsel %vm2365, %v2171, %v2397
        %v2430 = vsel %vm2366, %v2178, %v2398
        %v2431 = vsel %vm2367, %v2185, %v2399
        %v2432 = vsel %vm2368, %v2192, %v2400
        %v2433 = vsel %vm2369, %v2199, %v2401
        %v2434 = vsel %vm2370, %v2206, %v2402
        %v2435 = vsel %vm2371, %v2213, %v2403
        %v2436 = vsel %vm2372, %v2220, %v2404
        %v2437 = vsel %vm2373, %v2227, %v2405
        %v2438 = vsel %vm2374, %v2234, %v2406
        %v2439 = vsel %vm2375, %v2241, %v2407
        %v2440 = vsel %vm2376, %v2248, %v2408
        %v2441 = vsel %vm2377, %v2255, %v2409
        %v2442 = vsel %vm2378, %v2262, %v2410
        %v2443 = vsel %vm2379, %v2269, %v2411
        %v2444 = vsel %vm2380, %v2276, %v2412
        %v2445 = vsel %vm2381, %v2283, %v2413
        %v2446 = vsel %vm2382, %v2290, %v2414
        %v2447 = vsel %vm2383, %v2297, %v2415
        %v2448 = vsel %vm2384, %v2304, %v2416
        %v2449 = vsel %vm2385, %v2311, %v2417
        %v2450 = vsel %vm2386, %v2318, %v2418
        %v2451 = vsel %vm2387, %v2325, %v2419
        %v2452 = vsel %vm2388, %v2332, %v2420
        %v2453 = vsel %vm2389, %v2339, %v2421
        %v2454 = vsel %vm2390, %v2346, %v2422
        %v2455 = vsel %vm2391, %v2353, %v2423
        %v2456 = vsel %vm2392, %v2360, %v2424
        %v2457 = vld [vmem:[%s3] sm:$0xff]
        %v2458 = vld [vmem:[%s3 + $0x8] sm:$0xff]
        %v2459 = vld [vmem:[%s3 + $0x10] sm:$0xff]
        %v2460 = vld [vmem:[%s3 + $0x18] sm:$0xff]
        %v2461 = vld [vmem:[%s3 + $0x20] sm:$0xff]
        %v2462 = vld [vmem:[%s9 + $0x1] sm:$0x1]
        %v2463 = vperm.slane %v2462, 0
        %vm2496 = vcmask 1041409
        %v2497 = vsel %vm2496, %v2426, %v2425
        %vm2498 = vcmask 1042434
        %v2499 = vsel %vm2498, %v2427, %v2497
        %vm2500 = vcmask 1043459
        %v2501 = vsel %vm2500, %v2428, %v2499
        %vm2502 = vcmask 1044484
        %v2503 = vsel %vm2502, %v2429, %v2501
        %vm2504 = vcmask 1045509
        %v2505 = vsel %vm2504, %v2430, %v2503
        %vm2506 = vcmask 1046534
        %v2507 = vsel %vm2506, %v2431, %v2505
        %vm2508 = vcmask 1047559
        %v2509 = vsel %vm2508, %v2432, %v2507
        %v2510 = vsel %vm2496, %v2434, %v2433
        %v2511 = vsel %vm2498, %v2435, %v2510
        %v2512 = vsel %vm2500, %v2436, %v2511
        %v2513 = vsel %vm2502, %v2437, %v2512
        %v2514 = vsel %vm2504, %v2438, %v2513
        %v2515 = vsel %vm2506, %v2439, %v2514
        %v2516 = vsel %vm2508, %v2440, %v2515
        %v2517 = vsel %vm2496, %v2442, %v2441
        %v2518 = vsel %vm2498, %v2443, %v2517
        %v2519 = vsel %vm2500, %v2444, %v2518
        %v2520 = vsel %vm2502, %v2445, %v2519
        %v2521 = vsel %vm2504, %v2446, %v2520
        %v2522 = vsel %vm2506, %v2447, %v2521
        %v2523 = vsel %vm2508, %v2448, %v2522
        %v2524 = vsel %vm2496, %v2450, %v2449
        %v2525 = vsel %vm2498, %v2451, %v2524
        %v2526 = vsel %vm2500, %v2452, %v2525
        %v2527 = vsel %vm2502, %v2453, %v2526
        %v2528 = vsel %vm2504, %v2454, %v2527
        %v2529 = vsel %vm2506, %v2455, %v2528
        %v2530 = vsel %vm2508, %v2456, %v2529
        %v2531 = vsel %vm710, %v2509, 0
        %v2533 = vsel %vm710, %v2516, 0
        %v2535 = vsel %vm710, %v2523, 0
        %v2537 = vsel %vm710, %v2530, 0
        %2539 = vmatpush.msra.mxu0 0.0
        %2540 = vmatpush.msra.mxu0 0.0
        %2541 = vmatpush.msra.mxu0 0.0
        %2542 = vmatpush.msra.mxu0 0.0
        %2543 = vmatpush.msra.mxu0 0.0
        %2544 = vmatpush.msra.mxu0 0.0
        %2545 = vmatpush.msra.mxu0 0.0
        %2546 = vmatpush.msra.mxu0 0.0
        %2547 = vmatpush.msra.mxu0 0.0
        %2548 = vmatpush.msra.mxu0 0.0
        %2549 = vmatpush.msra.mxu0 0.0
        %2550 = vmatpush.msra.mxu0 %v2461
        %2551 = vmatpush.msra.mxu0 %v2460
        %2552 = vmatpush.msra.mxu0 %v2459
        %2553 = vmatpush.msra.mxu0 %v2458
        %2554 = vmatpush.msra.mxu0 %v2457
        %2555 = vmatmul.f32.gmra.mxu0 %v2531
        %v2556 = vpop.f32.mrf.mxu0
        %v2557 = vadd.f32 %v2463, %v2556
        %2558 = vmatmul.f32.gmra.mxu0 %v2533
        %v2559 = vpop.f32.mrf.mxu0
        %v2560 = vadd.f32 %v2463, %v2559
        %2561 = vmatmul.f32.gmra.mxu0 %v2535
        %v2562 = vpop.f32.mrf.mxu0
        %v2563 = vadd.f32 %v2463, %v2562
        %2564 = vmatmul.f32.gmra.mxu0 %v2537
        %v2565 = vpop.f32.mrf.mxu0
        %v2566 = vadd.f32 %v2463, %v2565
        %2567 = vdwg.mxu0
        %vm2568 = vcmp.gt.f32.partialorder %v2557, 0.0
        %vm2569 = vcmp.gt.f32.partialorder %v2560, 0.0
        %vm2570 = vcmp.gt.f32.partialorder %v2563, 0.0
        %vm2571 = vcmp.gt.f32.partialorder %v2566, 0.0
        %v2572 = vmul.f32 %v2557, 0.2
        %v2573 = vmul.f32 %v2560, 0.2
        %v2574 = vmul.f32 %v2563, 0.2
        %v2575 = vmul.f32 %v2566, 0.2
        %v2576 = vsel %vm2568, %v2557, %v2572
        %v2577 = vsel %vm2569, %v2560, %v2573
        %v2578 = vsel %vm2570, %v2563, %v2574
        %v2579 = vsel %vm2571, %v2566, %v2575
        %v2580 = vld [vmem:[%s4] sm:$0xf]
        %v2581 = vld [vmem:[%s9 + $0x2] sm:$0x1]
        %v2582 = vperm.slane %v2581, 0
        %vm2583 = vcmask 31744
        %v2585 = vsel %vm2583, %v2576, 0
        %v2588 = vsel %vm2583, %v2577, 0
        %v2591 = vsel %vm2583, %v2578, 0
        %v2594 = vsel %vm2583, %v2579, 0
        %vm2596 = vcmask 1043456
        %v2598 = vsel %vm2596, %v2580, 0
        %2600 = vmatpush.msra.mxu0 0.0
        %2601 = vmatpush.msra.mxu0 0.0
        %2602 = vmatpush.msra.mxu0 0.0
        %2603 = vmatpush.msra.mxu0 0.0
        %2604 = vmatpush.msra.mxu0 0.0
        %2605 = vmatpush.msra.mxu0 0.0
        %2606 = vmatpush.msra.mxu0 0.0
        %2607 = vmatpush.msra.mxu0 0.0
        %2608 = vmatpush.msra.mxu0 0.0
        %2609 = vmatpush.msra.mxu0 0.0
        %2610 = vmatpush.msra.mxu0 0.0
        %2611 = vmatpush.msra.mxu0 0.0
        %2612 = vmatpush.msra.mxu0 0.0
        %2613 = vmatpush.msra.mxu0 0.0
        %2614 = vmatpush.msra.mxu0 0.0
        %2615 = vmatpush.msra.mxu0 %v2598
        %2616 = vmatmul.f32.gmra.mxu0 %v2585
        %v2617 = vpop.f32.mrf.mxu0
        %v2618 = vadd.f32 %v2582, %v2617
        %2619 = vmatmul.f32.gmra.mxu0 %v2588
        %v2620 = vpop.f32.mrf.mxu0
        %v2621 = vadd.f32 %v2582, %v2620
        %2622 = vmatmul.f32.gmra.mxu0 %v2591
        %v2623 = vpop.f32.mrf.mxu0
        %v2624 = vadd.f32 %v2582, %v2623
        %2625 = vmatmul.f32.gmra.mxu0 %v2594
        %v2626 = vpop.f32.mrf.mxu0
        %v2627 = vadd.f32 %v2582, %v2626
        %2628 = vdwg.mxu0
        %v2629 = vld [vmem:[%s5] sm:$0xff]
        %v2630 = vld [vmem:[%s5 + $0x8] sm:$0xff]
        %v2631 = vld [vmem:[%s5 + $0x10] sm:$0xff]
        %v2632 = vld [vmem:[%s5 + $0x18] sm:$0xff]
        %v2633 = vld [vmem:[%s5 + $0x20] sm:$0xff]
        %v2634 = vld [vmem:[%s5 + $0x28] sm:$0xff]
        %v2635 = vld [vmem:[%s5 + $0x30] sm:$0xff]
        %v2636 = vld [vmem:[%s9 + $0x3] sm:$0x1]
        %v2637 = vperm.slane %v2636, 0
        %vm2638 = vcmask 457728
        %v2639 = vsel %vm2638, %v673, 0
        %v2641 = vsel %vm2638, %v674, 0
        %v2643 = vsel %vm2638, %v675, 0
        %v2645 = vsel %vm2638, %v676, 0
        %v2647 = vsel %vm2638, %v677, 0
        %v2649 = vsel %vm2638, %v678, 0
        %v2651 = vsel %vm2638, %v679, 0
        %v2653 = vsel %vm2638, %v680, 0
        %v2655 = vsel %vm2638, %v681, 0
        %v2657 = vsel %vm2638, %v682, 0
        %v2659 = vsel %vm2638, %v683, 0
        %v2661 = vsel %vm2638, %v684, 0
        %v2663 = vsel %vm2638, %v685, 0
        %v2665 = vsel %vm2638, %v686, 0
        %v2667 = vsel %vm2638, %v687, 0
        %v2669 = vsel %vm2638, %v688, 0
        %v2671 = vsel %vm2638, %v689, 0
        %v2673 = vsel %vm2638, %v690, 0
        %v2675 = vsel %vm2638, %v691, 0
        %v2677 = vsel %vm2638, %v692, 0
        %v2679 = vsel %vm2638, %v693, 0
        %v2681 = vsel %vm2638, %v694, 0
        %v2683 = vsel %vm2638, %v695, 0
        %v2685 = vsel %vm2638, %v696, 0
        %v2687 = vsel %vm2638, %v697, 0
        %v2689 = vsel %vm2638, %v698, 0
        %v2691 = vsel %vm2638, %v699, 0
        %v2693 = vsel %vm2638, %v700, 0
        %v2695 = vsel %vm2638, %v701, 0
        %v2697 = vsel %vm2638, %v702, 0
        %v2699 = vsel %vm2638, %v703, 0
        %v2701 = vsel %vm2638, %v704, 0
        %2703 = vmatpush.msra.mxu0 0.0
        %2704 = vmatpush.msra.mxu0 0.0
        %2705 = vmatpush.msra.mxu0 0.0
        %2706 = vmatpush.msra.mxu0 0.0
        %2707 = vmatpush.msra.mxu0 0.0
        %2708 = vmatpush.msra.mxu0 0.0
        %2709 = vmatpush.msra.mxu0 0.0
        %2710 = vmatpush.msra.mxu0 0.0
        %2711 = vmatpush.msra.mxu0 0.0
        %2712 = vmatpush.msra.mxu0 %v2635
        %2713 = vmatpush.msra.mxu0 %v2634
        %2714 = vmatpush.msra.mxu0 %v2633
        %2715 = vmatpush.msra.mxu0 %v2632
        %2716 = vmatpush.msra.mxu0 %v2631
        %2717 = vmatpush.msra.mxu0 %v2630
        %2718 = vmatpush.msra.mxu0 %v2629
        %2719 = vmatmul.f32.gmra.mxu0 %v2639
        %v2720 = vpop.f32.mrf.mxu0
        %v2721 = vadd.f32 %v2637, %v2720
        %2722 = vmatmul.f32.gmra.mxu0 %v2641
        %v2723 = vpop.f32.mrf.mxu0
        %v2724 = vadd.f32 %v2637, %v2723
        %2725 = vmatmul.f32.gmra.mxu0 %v2643
        %v2726 = vpop.f32.mrf.mxu0
        %v2727 = vadd.f32 %v2637, %v2726
        %2728 = vmatmul.f32.gmra.mxu0 %v2645
        %v2729 = vpop.f32.mrf.mxu0
        %v2730 = vadd.f32 %v2637, %v2729
        %2731 = vmatmul.f32.gmra.mxu0 %v2647
        %v2732 = vpop.f32.mrf.mxu0
        %v2733 = vadd.f32 %v2637, %v2732
        %2734 = vmatmul.f32.gmra.mxu0 %v2649
        %v2735 = vpop.f32.mrf.mxu0
        %v2736 = vadd.f32 %v2637, %v2735
        %2737 = vmatmul.f32.gmra.mxu0 %v2651
        %v2738 = vpop.f32.mrf.mxu0
        %v2739 = vadd.f32 %v2637, %v2738
        %2740 = vmatmul.f32.gmra.mxu0 %v2653
        %v2741 = vpop.f32.mrf.mxu0
        %v2742 = vadd.f32 %v2637, %v2741
        %2743 = vmatmul.f32.gmra.mxu0 %v2655
        %v2744 = vpop.f32.mrf.mxu0
        %v2745 = vadd.f32 %v2637, %v2744
        %2746 = vmatmul.f32.gmra.mxu0 %v2657
        %v2747 = vpop.f32.mrf.mxu0
        %v2748 = vadd.f32 %v2637, %v2747
        %2749 = vmatmul.f32.gmra.mxu0 %v2659
        %v2750 = vpop.f32.mrf.mxu0
        %v2751 = vadd.f32 %v2637, %v2750
        %2752 = vmatmul.f32.gmra.mxu0 %v2661
        %v2753 = vpop.f32.mrf.mxu0
        %v2754 = vadd.f32 %v2637, %v2753
        %2755 = vmatmul.f32.gmra.mxu0 %v2663
        %v2756 = vpop.f32.mrf.mxu0
        %v2757 = vadd.f32 %v2637, %v2756
        %2758 = vmatmul.f32.gmra.mxu0 %v2665
        %v2759 = vpop.f32.mrf.mxu0
        %v2760 = vadd.f32 %v2637, %v2759
        %2761 = vmatmul.f32.gmra.mxu0 %v2667
        %v2762 = vpop.f32.mrf.mxu0
        %v2763 = vadd.f32 %v2637, %v2762
        %2764 = vmatmul.f32.gmra.mxu0 %v2669
        %v2765 = vpop.f32.mrf.mxu0
        %v2766 = vadd.f32 %v2637, %v2765
        %2767 = vmatmul.f32.gmra.mxu0 %v2671
        %v2768 = vpop.f32.mrf.mxu0
        %v2769 = vadd.f32 %v2637, %v2768
        %2770 = vmatmul.f32.gmra.mxu0 %v2673
        %v2771 = vpop.f32.mrf.mxu0
        %v2772 = vadd.f32 %v2637, %v2771
        %2773 = vmatmul.f32.gmra.mxu0 %v2675
        %v2774 = vpop.f32.mrf.mxu0
        %v2775 = vadd.f32 %v2637, %v2774
        %2776 = vmatmul.f32.gmra.mxu0 %v2677
        %v2777 = vpop.f32.mrf.mxu0
        %v2778 = vadd.f32 %v2637, %v2777
        %2779 = vmatmul.f32.gmra.mxu0 %v2679
        %v2780 = vpop.f32.mrf.mxu0
        %v2781 = vadd.f32 %v2637, %v2780
        %2782 = vmatmul.f32.gmra.mxu0 %v2681
        %v2783 = vpop.f32.mrf.mxu0
        %v2784 = vadd.f32 %v2637, %v2783
        %2785 = vmatmul.f32.gmra.mxu0 %v2683
        %v2786 = vpop.f32.mrf.mxu0
        %v2787 = vadd.f32 %v2637, %v2786
        %2788 = vmatmul.f32.gmra.mxu0 %v2685
        %v2789 = vpop.f32.mrf.mxu0
        %v2790 = vadd.f32 %v2637, %v2789
        %2791 = vmatmul.f32.gmra.mxu0 %v2687
        %v2792 = vpop.f32.mrf.mxu0
        %v2793 = vadd.f32 %v2637, %v2792
        %2794 = vmatmul.f32.gmra.mxu0 %v2689
        %v2795 = vpop.f32.mrf.mxu0
        %v2796 = vadd.f32 %v2637, %v2795
        %2797 = vmatmul.f32.gmra.mxu0 %v2691
        %v2798 = vpop.f32.mrf.mxu0
        %v2799 = vadd.f32 %v2637, %v2798
        %2800 = vmatmul.f32.gmra.mxu0 %v2693
        %v2801 = vpop.f32.mrf.mxu0
        %v2802 = vadd.f32 %v2637, %v2801
        %2803 = vmatmul.f32.gmra.mxu0 %v2695
        %v2804 = vpop.f32.mrf.mxu0
        %v2805 = vadd.f32 %v2637, %v2804
        %2806 = vmatmul.f32.gmra.mxu0 %v2697
        %v2807 = vpop.f32.mrf.mxu0
        %v2808 = vadd.f32 %v2637, %v2807
        %2809 = vmatmul.f32.gmra.mxu0 %v2699
        %v2810 = vpop.f32.mrf.mxu0
        %v2811 = vadd.f32 %v2637, %v2810
        %2812 = vmatmul.f32.gmra.mxu0 %v2701
        %v2813 = vpop.f32.mrf.mxu0
        %v2814 = vadd.f32 %v2637, %v2813
        %2815 = vdwg.mxu0
        %v2816 = vld [vmem:[%s6] sm:$0xff]
        %v2817 = vld [vmem:[%s6 + $0x8] sm:$0xff]
        %v2818 = vld [vmem:[%s9 + $0x4] sm:$0x1]
        %v2819 = vperm.slane %v2818, 0
        %vm2820 = vcmask 130048
        %v2822 = vsel %vm2820, %v2618, 0
        %v2825 = vsel %vm2820, %v2621, 0
        %v2828 = vsel %vm2820, %v2624, 0
        %v2831 = vsel %vm2820, %v2627, 0
        %v2834 = vsel %vm2820, %v2721, 0
        %v2837 = vsel %vm2820, %v2724, 0
        %v2840 = vsel %vm2820, %v2727, 0
        %v2843 = vsel %vm2820, %v2730, 0
        %v2846 = vsel %vm2820, %v2733, 0
        %v2849 = vsel %vm2820, %v2736, 0
        %v2852 = vsel %vm2820, %v2739, 0
        %v2855 = vsel %vm2820, %v2742, 0
        %v2858 = vsel %vm2820, %v2745, 0
        %v2861 = vsel %vm2820, %v2748, 0
        %v2864 = vsel %vm2820, %v2751, 0
        %v2867 = vsel %vm2820, %v2754, 0
        %v2870 = vsel %vm2820, %v2757, 0
        %v2873 = vsel %vm2820, %v2760, 0
        %v2876 = vsel %vm2820, %v2763, 0
        %v2879 = vsel %vm2820, %v2766, 0
        %v2882 = vsel %vm2820, %v2769, 0
        %v2885 = vsel %vm2820, %v2772, 0
        %v2888 = vsel %vm2820, %v2775, 0
        %v2891 = vsel %vm2820, %v2778, 0
        %v2894 = vsel %vm2820, %v2781, 0
        %v2897 = vsel %vm2820, %v2784, 0
        %v2900 = vsel %vm2820, %v2787, 0
        %v2903 = vsel %vm2820, %v2790, 0
        %v2906 = vsel %vm2820, %v2793, 0
        %v2909 = vsel %vm2820, %v2796, 0
        %v2912 = vsel %vm2820, %v2799, 0
        %v2915 = vsel %vm2820, %v2802, 0
        %v2918 = vsel %vm2820, %v2805, 0
        %v2921 = vsel %vm2820, %v2808, 0
        %v2924 = vsel %vm2820, %v2811, 0
        %v2927 = vsel %vm2820, %v2814, 0
        %2929 = vmatpush.msra.mxu0 0.0
        %2930 = vmatpush.msra.mxu0 0.0
        %2931 = vmatpush.msra.mxu0 0.0
        %2932 = vmatpush.msra.mxu0 0.0
        %2933 = vmatpush.msra.mxu0 0.0
        %2934 = vmatpush.msra.mxu0 0.0
        %2935 = vmatpush.msra.mxu0 0.0
        %2936 = vmatpush.msra.mxu0 0.0
        %2937 = vmatpush.msra.mxu0 0.0
        %2938 = vmatpush.msra.mxu0 0.0
        %2939 = vmatpush.msra.mxu0 0.0
        %2940 = vmatpush.msra.mxu0 0.0
        %2941 = vmatpush.msra.mxu0 0.0
        %2942 = vmatpush.msra.mxu0 0.0
        %2943 = vmatpush.msra.mxu0 %v2817
        %2944 = vmatpush.msra.mxu0 %v2816
        %2945 = vmatmul.f32.gmra.mxu0 %v2822
        %v2946 = vpop.f32.mrf.mxu0
        %v2947 = vadd.f32 %v2819, %v2946
        %2948 = vmatmul.f32.gmra.mxu0 %v2825
        %v2949 = vpop.f32.mrf.mxu0
        %v2950 = vadd.f32 %v2819, %v2949
        %2951 = vmatmul.f32.gmra.mxu0 %v2828
        %v2952 = vpop.f32.mrf.mxu0
        %v2953 = vadd.f32 %v2819, %v2952
        %2954 = vmatmul.f32.gmra.mxu0 %v2831
        %v2955 = vpop.f32.mrf.mxu0
        %v2956 = vadd.f32 %v2819, %v2955
        %2957 = vmatmul.f32.gmra.mxu0 %v2834
        %v2958 = vpop.f32.mrf.mxu0
        %v2959 = vadd.f32 %v2819, %v2958
        %2960 = vmatmul.f32.gmra.mxu0 %v2837
        %v2961 = vpop.f32.mrf.mxu0
        %v2962 = vadd.f32 %v2819, %v2961
        %2963 = vmatmul.f32.gmra.mxu0 %v2840
        %v2964 = vpop.f32.mrf.mxu0
        %v2965 = vadd.f32 %v2819, %v2964
        %2966 = vmatmul.f32.gmra.mxu0 %v2843
        %v2967 = vpop.f32.mrf.mxu0
        %v2968 = vadd.f32 %v2819, %v2967
        %2969 = vmatmul.f32.gmra.mxu0 %v2846
        %v2970 = vpop.f32.mrf.mxu0
        %v2971 = vadd.f32 %v2819, %v2970
        %2972 = vmatmul.f32.gmra.mxu0 %v2849
        %v2973 = vpop.f32.mrf.mxu0
        %v2974 = vadd.f32 %v2819, %v2973
        %2975 = vmatmul.f32.gmra.mxu0 %v2852
        %v2976 = vpop.f32.mrf.mxu0
        %v2977 = vadd.f32 %v2819, %v2976
        %2978 = vmatmul.f32.gmra.mxu0 %v2855
        %v2979 = vpop.f32.mrf.mxu0
        %v2980 = vadd.f32 %v2819, %v2979
        %2981 = vmatmul.f32.gmra.mxu0 %v2858
        %v2982 = vpop.f32.mrf.mxu0
        %v2983 = vadd.f32 %v2819, %v2982
        %2984 = vmatmul.f32.gmra.mxu0 %v2861
        %v2985 = vpop.f32.mrf.mxu0
        %v2986 = vadd.f32 %v2819, %v2985
        %2987 = vmatmul.f32.gmra.mxu0 %v2864
        %v2988 = vpop.f32.mrf.mxu0
        %v2989 = vadd.f32 %v2819, %v2988
        %2990 = vmatmul.f32.gmra.mxu0 %v2867
        %v2991 = vpop.f32.mrf.mxu0
        %v2992 = vadd.f32 %v2819, %v2991
        %2993 = vmatmul.f32.gmra.mxu0 %v2870
        %v2994 = vpop.f32.mrf.mxu0
        %v2995 = vadd.f32 %v2819, %v2994
        %2996 = vmatmul.f32.gmra.mxu0 %v2873
        %v2997 = vpop.f32.mrf.mxu0
        %v2998 = vadd.f32 %v2819, %v2997
        %2999 = vmatmul.f32.gmra.mxu0 %v2876
        %v3000 = vpop.f32.mrf.mxu0
        %v3001 = vadd.f32 %v2819, %v3000
        %3002 = vmatmul.f32.gmra.mxu0 %v2879
        %v3003 = vpop.f32.mrf.mxu0
        %v3004 = vadd.f32 %v2819, %v3003
        %3005 = vmatmul.f32.gmra.mxu0 %v2882
        %v3006 = vpop.f32.mrf.mxu0
        %v3007 = vadd.f32 %v2819, %v3006
        %3008 = vmatmul.f32.gmra.mxu0 %v2885
        %v3009 = vpop.f32.mrf.mxu0
        %v3010 = vadd.f32 %v2819, %v3009
        %3011 = vmatmul.f32.gmra.mxu0 %v2888
        %v3012 = vpop.f32.mrf.mxu0
        %v3013 = vadd.f32 %v2819, %v3012
        %3014 = vmatmul.f32.gmra.mxu0 %v2891
        %v3015 = vpop.f32.mrf.mxu0
        %v3016 = vadd.f32 %v2819, %v3015
        %3017 = vmatmul.f32.gmra.mxu0 %v2894
        %v3018 = vpop.f32.mrf.mxu0
        %v3019 = vadd.f32 %v2819, %v3018
        %3020 = vmatmul.f32.gmra.mxu0 %v2897
        %v3021 = vpop.f32.mrf.mxu0
        %v3022 = vadd.f32 %v2819, %v3021
        %3023 = vmatmul.f32.gmra.mxu0 %v2900
        %v3024 = vpop.f32.mrf.mxu0
        %v3025 = vadd.f32 %v2819, %v3024
        %3026 = vmatmul.f32.gmra.mxu0 %v2903
        %v3027 = vpop.f32.mrf.mxu0
        %v3028 = vadd.f32 %v2819, %v3027
        %3029 = vmatmul.f32.gmra.mxu0 %v2906
        %v3030 = vpop.f32.mrf.mxu0
        %v3031 = vadd.f32 %v2819, %v3030
        %3032 = vmatmul.f32.gmra.mxu0 %v2909
        %v3033 = vpop.f32.mrf.mxu0
        %v3034 = vadd.f32 %v2819, %v3033
        %3035 = vmatmul.f32.gmra.mxu0 %v2912
        %v3036 = vpop.f32.mrf.mxu0
        %v3037 = vadd.f32 %v2819, %v3036
        %3038 = vmatmul.f32.gmra.mxu0 %v2915
        %v3039 = vpop.f32.mrf.mxu0
        %v3040 = vadd.f32 %v2819, %v3039
        %3041 = vmatmul.f32.gmra.mxu0 %v2918
        %v3042 = vpop.f32.mrf.mxu0
        %v3043 = vadd.f32 %v2819, %v3042
        %3044 = vmatmul.f32.gmra.mxu0 %v2921
        %v3045 = vpop.f32.mrf.mxu0
        %v3046 = vadd.f32 %v2819, %v3045
        %3047 = vmatmul.f32.gmra.mxu0 %v2924
        %v3048 = vpop.f32.mrf.mxu0
        %v3049 = vadd.f32 %v2819, %v3048
        %3050 = vmatmul.f32.gmra.mxu0 %v2927
        %v3051 = vpop.f32.mrf.mxu0
        %v3052 = vadd.f32 %v2819, %v3051
        %3053 = vdwg.mxu0
        %vm3054 = vcmp.gt.f32.partialorder %v2947, 0.0
        %vm3055 = vcmp.gt.f32.partialorder %v2950, 0.0
        %vm3056 = vcmp.gt.f32.partialorder %v2953, 0.0
        %vm3057 = vcmp.gt.f32.partialorder %v2956, 0.0
        %vm3058 = vcmp.gt.f32.partialorder %v2959, 0.0
        %vm3059 = vcmp.gt.f32.partialorder %v2962, 0.0
        %vm3060 = vcmp.gt.f32.partialorder %v2965, 0.0
        %vm3061 = vcmp.gt.f32.partialorder %v2968, 0.0
        %vm3062 = vcmp.gt.f32.partialorder %v2971, 0.0
        %vm3063 = vcmp.gt.f32.partialorder %v2974, 0.0
        %vm3064 = vcmp.gt.f32.partialorder %v2977, 0.0
        %vm3065 = vcmp.gt.f32.partialorder %v2980, 0.0
        %vm3066 = vcmp.gt.f32.partialorder %v2983, 0.0
        %vm3067 = vcmp.gt.f32.partialorder %v2986, 0.0
        %vm3068 = vcmp.gt.f32.partialorder %v2989, 0.0
        %vm3069 = vcmp.gt.f32.partialorder %v2992, 0.0
        %vm3070 = vcmp.gt.f32.partialorder %v2995, 0.0
        %vm3071 = vcmp.gt.f32.partialorder %v2998, 0.0
        %vm3072 = vcmp.gt.f32.partialorder %v3001, 0.0
        %vm3073 = vcmp.gt.f32.partialorder %v3004, 0.0
        %vm3074 = vcmp.gt.f32.partialorder %v3007, 0.0
        %vm3075 = vcmp.gt.f32.partialorder %v3010, 0.0
        %vm3076 = vcmp.gt.f32.partialorder %v3013, 0.0
        %vm3077 = vcmp.gt.f32.partialorder %v3016, 0.0
        %vm3078 = vcmp.gt.f32.partialorder %v3019, 0.0
        %vm3079 = vcmp.gt.f32.partialorder %v3022, 0.0
        %vm3080 = vcmp.gt.f32.partialorder %v3025, 0.0
        %vm3081 = vcmp.gt.f32.partialorder %v3028, 0.0
        %vm3082 = vcmp.gt.f32.partialorder %v3031, 0.0
        %vm3083 = vcmp.gt.f32.partialorder %v3034, 0.0
        %vm3084 = vcmp.gt.f32.partialorder %v3037, 0.0
        %vm3085 = vcmp.gt.f32.partialorder %v3040, 0.0
        %vm3086 = vcmp.gt.f32.partialorder %v3043, 0.0
        %vm3087 = vcmp.gt.f32.partialorder %v3046, 0.0
        %vm3088 = vcmp.gt.f32.partialorder %v3049, 0.0
        %vm3089 = vcmp.gt.f32.partialorder %v3052, 0.0
        %v3090 = vmul.f32 %v2947, 0.2
        %v3091 = vmul.f32 %v2950, 0.2
        %v3092 = vmul.f32 %v2953, 0.2
        %v3093 = vmul.f32 %v2956, 0.2
        %v3094 = vmul.f32 %v2959, 0.2
        %v3095 = vmul.f32 %v2962, 0.2
        %v3096 = vmul.f32 %v2965, 0.2
        %v3097 = vmul.f32 %v2968, 0.2
        %v3098 = vmul.f32 %v2971, 0.2
        %v3099 = vmul.f32 %v2974, 0.2
        %v3100 = vmul.f32 %v2977, 0.2
        %v3101 = vmul.f32 %v2980, 0.2
        %v3102 = vmul.f32 %v2983, 0.2
        %v3103 = vmul.f32 %v2986, 0.2
        %v3104 = vmul.f32 %v2989, 0.2
        %v3105 = vmul.f32 %v2992, 0.2
        %v3106 = vmul.f32 %v2995, 0.2
        %v3107 = vmul.f32 %v2998, 0.2
        %v3108 = vmul.f32 %v3001, 0.2
        %v3109 = vmul.f32 %v3004, 0.2
        %v3110 = vmul.f32 %v3007, 0.2
        %v3111 = vmul.f32 %v3010, 0.2
        %v3112 = vmul.f32 %v3013, 0.2
        %v3113 = vmul.f32 %v3016, 0.2
        %v3114 = vmul.f32 %v3019, 0.2
        %v3115 = vmul.f32 %v3022, 0.2
        %v3116 = vmul.f32 %v3025, 0.2
        %v3117 = vmul.f32 %v3028, 0.2
        %v3118 = vmul.f32 %v3031, 0.2
        %v3119 = vmul.f32 %v3034, 0.2
        %v3120 = vmul.f32 %v3037, 0.2
        %v3121 = vmul.f32 %v3040, 0.2
        %v3122 = vmul.f32 %v3043, 0.2
        %v3123 = vmul.f32 %v3046, 0.2
        %v3124 = vmul.f32 %v3049, 0.2
        %v3125 = vmul.f32 %v3052, 0.2
        %v3126 = vsel %vm3054, %v2947, %v3090
        %v3127 = vsel %vm3055, %v2950, %v3091
        %v3128 = vsel %vm3056, %v2953, %v3092
        %v3129 = vsel %vm3057, %v2956, %v3093
        %v3130 = vsel %vm3058, %v2959, %v3094
        %v3131 = vsel %vm3059, %v2962, %v3095
        %v3132 = vsel %vm3060, %v2965, %v3096
        %v3133 = vsel %vm3061, %v2968, %v3097
        %v3134 = vsel %vm3062, %v2971, %v3098
        %v3135 = vsel %vm3063, %v2974, %v3099
        %v3136 = vsel %vm3064, %v2977, %v3100
        %v3137 = vsel %vm3065, %v2980, %v3101
        %v3138 = vsel %vm3066, %v2983, %v3102
        %v3139 = vsel %vm3067, %v2986, %v3103
        %v3140 = vsel %vm3068, %v2989, %v3104
        %v3141 = vsel %vm3069, %v2992, %v3105
        %v3142 = vsel %vm3070, %v2995, %v3106
        %v3143 = vsel %vm3071, %v2998, %v3107
        %v3144 = vsel %vm3072, %v3001, %v3108
        %v3145 = vsel %vm3073, %v3004, %v3109
        %v3146 = vsel %vm3074, %v3007, %v3110
        %v3147 = vsel %vm3075, %v3010, %v3111
        %v3148 = vsel %vm3076, %v3013, %v3112
        %v3149 = vsel %vm3077, %v3016, %v3113
        %v3150 = vsel %vm3078, %v3019, %v3114
        %v3151 = vsel %vm3079, %v3022, %v3115
        %v3152 = vsel %vm3080, %v3025, %v3116
        %v3153 = vsel %vm3081, %v3028, %v3117
        %v3154 = vsel %vm3082, %v3031, %v3118
        %v3155 = vsel %vm3083, %v3034, %v3119
        %v3156 = vsel %vm3084, %v3037, %v3120
        %v3157 = vsel %vm3085, %v3040, %v3121
        %v3158 = vsel %vm3086, %v3043, %v3122
        %v3159 = vsel %vm3087, %v3046, %v3123
        %v3160 = vsel %vm3088, %v3049, %v3124
        %v3161 = vsel %vm3089, %v3052, %v3125
        %v3162 = vld [vmem:[%s7] sm:$0xff]
        %v3163 = vld [vmem:[%s7 + $0x8] sm:$0xff]
        %v3165 = vsel %vm2820, %v3126, 0
        %v3168 = vsel %vm2820, %v3127, 0
        %v3171 = vsel %vm2820, %v3128, 0
        %v3174 = vsel %vm2820, %v3129, 0
        %v3177 = vsel %vm2820, %v3130, 0
        %v3180 = vsel %vm2820, %v3131, 0
        %v3183 = vsel %vm2820, %v3132, 0
        %v3186 = vsel %vm2820, %v3133, 0
        %v3189 = vsel %vm2820, %v3134, 0
        %v3192 = vsel %vm2820, %v3135, 0
        %v3195 = vsel %vm2820, %v3136, 0
        %v3198 = vsel %vm2820, %v3137, 0
        %v3201 = vsel %vm2820, %v3138, 0
        %v3204 = vsel %vm2820, %v3139, 0
        %v3207 = vsel %vm2820, %v3140, 0
        %v3210 = vsel %vm2820, %v3141, 0
        %v3213 = vsel %vm2820, %v3142, 0
        %v3216 = vsel %vm2820, %v3143, 0
        %v3219 = vsel %vm2820, %v3144, 0
        %v3222 = vsel %vm2820, %v3145, 0
        %v3225 = vsel %vm2820, %v3146, 0
        %v3228 = vsel %vm2820, %v3147, 0
        %v3231 = vsel %vm2820, %v3148, 0
        %v3234 = vsel %vm2820, %v3149, 0
        %v3237 = vsel %vm2820, %v3150, 0
        %v3240 = vsel %vm2820, %v3151, 0
        %v3243 = vsel %vm2820, %v3152, 0
        %v3246 = vsel %vm2820, %v3153, 0
        %v3249 = vsel %vm2820, %v3154, 0
        %v3252 = vsel %vm2820, %v3155, 0
        %v3255 = vsel %vm2820, %v3156, 0
        %v3258 = vsel %vm2820, %v3157, 0
        %v3261 = vsel %vm2820, %v3158, 0
        %v3264 = vsel %vm2820, %v3159, 0
        %v3267 = vsel %vm2820, %v3160, 0
        %v3270 = vsel %vm2820, %v3161, 0
        %3272 = vmatpush.msra.mxu0 0.0
        %3273 = vmatpush.msra.mxu0 0.0
        %3274 = vmatpush.msra.mxu0 0.0
        %3275 = vmatpush.msra.mxu0 0.0
        %3276 = vmatpush.msra.mxu0 0.0
        %3277 = vmatpush.msra.mxu0 0.0
        %3278 = vmatpush.msra.mxu0 0.0
        %3279 = vmatpush.msra.mxu0 0.0
        %3280 = vmatpush.msra.mxu0 0.0
        %3281 = vmatpush.msra.mxu0 0.0
        %3282 = vmatpush.msra.mxu0 0.0
        %3283 = vmatpush.msra.mxu0 0.0
        %3284 = vmatpush.msra.mxu0 0.0
        %3285 = vmatpush.msra.mxu0 0.0
        %3286 = vmatpush.msra.mxu0 %v3163
        %3287 = vmatpush.msra.mxu0 %v3162
        %3288 = vmatmul.f32.gmra.mxu0 %v3165
        %v3289 = vpop.f32.mrf.mxu0
        %v3290 = vadd.f32 0.0, %v3289
        %3291 = vmatmul.f32.gmra.mxu0 %v3168
        %v3292 = vpop.f32.mrf.mxu0
        %v3293 = vadd.f32 0.0, %v3292
        %3294 = vmatmul.f32.gmra.mxu0 %v3171
        %v3295 = vpop.f32.mrf.mxu0
        %v3296 = vadd.f32 0.0, %v3295
        %3297 = vmatmul.f32.gmra.mxu0 %v3174
        %v3298 = vpop.f32.mrf.mxu0
        %v3299 = vadd.f32 0.0, %v3298
        %3300 = vmatmul.f32.gmra.mxu0 %v3177
        %v3301 = vpop.f32.mrf.mxu0
        %v3302 = vadd.f32 0.0, %v3301
        %3303 = vmatmul.f32.gmra.mxu0 %v3180
        %v3304 = vpop.f32.mrf.mxu0
        %v3305 = vadd.f32 0.0, %v3304
        %3306 = vmatmul.f32.gmra.mxu0 %v3183
        %v3307 = vpop.f32.mrf.mxu0
        %v3308 = vadd.f32 0.0, %v3307
        %3309 = vmatmul.f32.gmra.mxu0 %v3186
        %v3310 = vpop.f32.mrf.mxu0
        %v3311 = vadd.f32 0.0, %v3310
        %3312 = vmatmul.f32.gmra.mxu0 %v3189
        %v3313 = vpop.f32.mrf.mxu0
        %v3314 = vadd.f32 0.0, %v3313
        %3315 = vmatmul.f32.gmra.mxu0 %v3192
        %v3316 = vpop.f32.mrf.mxu0
        %v3317 = vadd.f32 0.0, %v3316
        %3318 = vmatmul.f32.gmra.mxu0 %v3195
        %v3319 = vpop.f32.mrf.mxu0
        %v3320 = vadd.f32 0.0, %v3319
        %3321 = vmatmul.f32.gmra.mxu0 %v3198
        %v3322 = vpop.f32.mrf.mxu0
        %v3323 = vadd.f32 0.0, %v3322
        %3324 = vmatmul.f32.gmra.mxu0 %v3201
        %v3325 = vpop.f32.mrf.mxu0
        %v3326 = vadd.f32 0.0, %v3325
        %3327 = vmatmul.f32.gmra.mxu0 %v3204
        %v3328 = vpop.f32.mrf.mxu0
        %v3329 = vadd.f32 0.0, %v3328
        %3330 = vmatmul.f32.gmra.mxu0 %v3207
        %v3331 = vpop.f32.mrf.mxu0
        %v3332 = vadd.f32 0.0, %v3331
        %3333 = vmatmul.f32.gmra.mxu0 %v3210
        %v3334 = vpop.f32.mrf.mxu0
        %v3335 = vadd.f32 0.0, %v3334
        %3336 = vmatmul.f32.gmra.mxu0 %v3213
        %v3337 = vpop.f32.mrf.mxu0
        %v3338 = vadd.f32 0.0, %v3337
        %3339 = vmatmul.f32.gmra.mxu0 %v3216
        %v3340 = vpop.f32.mrf.mxu0
        %v3341 = vadd.f32 0.0, %v3340
        %3342 = vmatmul.f32.gmra.mxu0 %v3219
        %v3343 = vpop.f32.mrf.mxu0
        %v3344 = vadd.f32 0.0, %v3343
        %3345 = vmatmul.f32.gmra.mxu0 %v3222
        %v3346 = vpop.f32.mrf.mxu0
        %v3347 = vadd.f32 0.0, %v3346
        %3348 = vmatmul.f32.gmra.mxu0 %v3225
        %v3349 = vpop.f32.mrf.mxu0
        %v3350 = vadd.f32 0.0, %v3349
        %3351 = vmatmul.f32.gmra.mxu0 %v3228
        %v3352 = vpop.f32.mrf.mxu0
        %v3353 = vadd.f32 0.0, %v3352
        %3354 = vmatmul.f32.gmra.mxu0 %v3231
        %v3355 = vpop.f32.mrf.mxu0
        %v3356 = vadd.f32 0.0, %v3355
        %3357 = vmatmul.f32.gmra.mxu0 %v3234
        %v3358 = vpop.f32.mrf.mxu0
        %v3359 = vadd.f32 0.0, %v3358
        %3360 = vmatmul.f32.gmra.mxu0 %v3237
        %v3361 = vpop.f32.mrf.mxu0
        %v3362 = vadd.f32 0.0, %v3361
        %3363 = vmatmul.f32.gmra.mxu0 %v3240
        %v3364 = vpop.f32.mrf.mxu0
        %v3365 = vadd.f32 0.0, %v3364
        %3366 = vmatmul.f32.gmra.mxu0 %v3243
        %v3367 = vpop.f32.mrf.mxu0
        %v3368 = vadd.f32 0.0, %v3367
        %3369 = vmatmul.f32.gmra.mxu0 %v3246
        %v3370 = vpop.f32.mrf.mxu0
        %v3371 = vadd.f32 0.0, %v3370
        %3372 = vmatmul.f32.gmra.mxu0 %v3249
        %v3373 = vpop.f32.mrf.mxu0
        %v3374 = vadd.f32 0.0, %v3373
        %3375 = vmatmul.f32.gmra.mxu0 %v3252
        %v3376 = vpop.f32.mrf.mxu0
        %v3377 = vadd.f32 0.0, %v3376
        %3378 = vmatmul.f32.gmra.mxu0 %v3255
        %v3379 = vpop.f32.mrf.mxu0
        %v3380 = vadd.f32 0.0, %v3379
        %3381 = vmatmul.f32.gmra.mxu0 %v3258
        %v3382 = vpop.f32.mrf.mxu0
        %v3383 = vadd.f32 0.0, %v3382
        %3384 = vmatmul.f32.gmra.mxu0 %v3261
        %v3385 = vpop.f32.mrf.mxu0
        %v3386 = vadd.f32 0.0, %v3385
        %3387 = vmatmul.f32.gmra.mxu0 %v3264
        %v3388 = vpop.f32.mrf.mxu0
        %v3389 = vadd.f32 0.0, %v3388
        %3390 = vmatmul.f32.gmra.mxu0 %v3267
        %v3391 = vpop.f32.mrf.mxu0
        %v3392 = vadd.f32 0.0, %v3391
        %3393 = vmatmul.f32.gmra.mxu0 %v3270
        %v3394 = vpop.f32.mrf.mxu0
        %v3395 = vadd.f32 0.0, %v3394
        %3396 = vdwg.mxu0
        %v3401 = vrot.slane %v3290, 1
        %v3402 = vrot.slane %v3290, 2
        %v3403 = vrot.slane %v3290, 3
        %v3404 = vrot.slane %v3290, 4
        %v3405 = vrot.slane %v3290, 5
        %v3406 = vrot.slane %v3290, 6
        %v3407 = vrot.slane %v3290, 7
        %v3408 = vrot.slane %v3293, 1
        %v3409 = vrot.slane %v3293, 2
        %v3410 = vrot.slane %v3293, 3
        %v3411 = vrot.slane %v3293, 4
        %v3412 = vrot.slane %v3293, 5
        %v3413 = vrot.slane %v3293, 6
        %v3414 = vrot.slane %v3293, 7
        %v3415 = vrot.slane %v3296, 1
        %v3416 = vrot.slane %v3296, 2
        %v3417 = vrot.slane %v3296, 3
        %v3418 = vrot.slane %v3296, 4
        %v3419 = vrot.slane %v3296, 5
        %v3420 = vrot.slane %v3296, 6
        %v3421 = vrot.slane %v3296, 7
        %v3422 = vrot.slane %v3299, 1
        %v3423 = vrot.slane %v3299, 2
        %v3424 = vrot.slane %v3299, 3
        %v3425 = vrot.slane %v3299, 4
        %v3426 = vrot.slane %v3299, 5
        %v3427 = vrot.slane %v3299, 6
        %v3428 = vrot.slane %v3299, 7
        %v3457 = vsel %vm920, %v3302, -inf
        %v3458 = vrot.slane %v3457, 4
        %v3459 = vmax.f32 %v3457, %v3458
        %v3460 = vrot.slane %v3459, 2
        %v3461 = vmax.f32 %v3459, %v3460
        %v3462 = vrot.slane %v3461, 1
        %v3463 = vmax.f32 %v3461, %v3462
        %v3464 = vsel %vm920, %v3305, -inf
        %v3465 = vrot.slane %v3464, 4
        %v3466 = vmax.f32 %v3464, %v3465
        %v3467 = vrot.slane %v3466, 2
        %v3468 = vmax.f32 %v3466, %v3467
        %v3469 = vrot.slane %v3468, 1
        %v3470 = vmax.f32 %v3468, %v3469
        %v3471 = vsel %vm920, %v3308, -inf
        %v3472 = vrot.slane %v3471, 4
        %v3473 = vmax.f32 %v3471, %v3472
        %v3474 = vrot.slane %v3473, 2
        %v3475 = vmax.f32 %v3473, %v3474
        %v3476 = vrot.slane %v3475, 1
        %v3477 = vmax.f32 %v3475, %v3476
        %v3478 = vsel %vm920, %v3311, -inf
        %v3479 = vrot.slane %v3478, 4
        %v3480 = vmax.f32 %v3478, %v3479
        %v3481 = vrot.slane %v3480, 2
        %v3482 = vmax.f32 %v3480, %v3481
        %v3483 = vrot.slane %v3482, 1
        %v3484 = vmax.f32 %v3482, %v3483
        %v3485 = vsel %vm920, %v3314, -inf
        %v3486 = vrot.slane %v3485, 4
        %v3487 = vmax.f32 %v3485, %v3486
        %v3488 = vrot.slane %v3487, 2
        %v3489 = vmax.f32 %v3487, %v3488
        %v3490 = vrot.slane %v3489, 1
        %v3491 = vmax.f32 %v3489, %v3490
        %v3492 = vsel %vm920, %v3317, -inf
        %v3493 = vrot.slane %v3492, 4
        %v3494 = vmax.f32 %v3492, %v3493
        %v3495 = vrot.slane %v3494, 2
        %v3496 = vmax.f32 %v3494, %v3495
        %v3497 = vrot.slane %v3496, 1
        %v3498 = vmax.f32 %v3496, %v3497
        %v3499 = vsel %vm920, %v3320, -inf
        %v3500 = vrot.slane %v3499, 4
        %v3501 = vmax.f32 %v3499, %v3500
        %v3502 = vrot.slane %v3501, 2
        %v3503 = vmax.f32 %v3501, %v3502
        %v3504 = vrot.slane %v3503, 1
        %v3505 = vmax.f32 %v3503, %v3504
        %v3506 = vsel %vm920, %v3323, -inf
        %v3507 = vrot.slane %v3506, 4
        %v3508 = vmax.f32 %v3506, %v3507
        %v3509 = vrot.slane %v3508, 2
        %v3510 = vmax.f32 %v3508, %v3509
        %v3511 = vrot.slane %v3510, 1
        %v3512 = vmax.f32 %v3510, %v3511
        %v3513 = vsel %vm920, %v3326, -inf
        %v3514 = vrot.slane %v3513, 4
        %v3515 = vmax.f32 %v3513, %v3514
        %v3516 = vrot.slane %v3515, 2
        %v3517 = vmax.f32 %v3515, %v3516
        %v3518 = vrot.slane %v3517, 1
        %v3519 = vmax.f32 %v3517, %v3518
        %v3520 = vsel %vm920, %v3329, -inf
        %v3521 = vrot.slane %v3520, 4
        %v3522 = vmax.f32 %v3520, %v3521
        %v3523 = vrot.slane %v3522, 2
        %v3524 = vmax.f32 %v3522, %v3523
        %v3525 = vrot.slane %v3524, 1
        %v3526 = vmax.f32 %v3524, %v3525
        %v3527 = vsel %vm920, %v3332, -inf
        %v3528 = vrot.slane %v3527, 4
        %v3529 = vmax.f32 %v3527, %v3528
        %v3530 = vrot.slane %v3529, 2
        %v3531 = vmax.f32 %v3529, %v3530
        %v3532 = vrot.slane %v3531, 1
        %v3533 = vmax.f32 %v3531, %v3532
        %v3534 = vsel %vm920, %v3335, -inf
        %v3535 = vrot.slane %v3534, 4
        %v3536 = vmax.f32 %v3534, %v3535
        %v3537 = vrot.slane %v3536, 2
        %v3538 = vmax.f32 %v3536, %v3537
        %v3539 = vrot.slane %v3538, 1
        %v3540 = vmax.f32 %v3538, %v3539
        %v3541 = vsel %vm920, %v3338, -inf
        %v3542 = vrot.slane %v3541, 4
        %v3543 = vmax.f32 %v3541, %v3542
        %v3544 = vrot.slane %v3543, 2
        %v3545 = vmax.f32 %v3543, %v3544
        %v3546 = vrot.slane %v3545, 1
        %v3547 = vmax.f32 %v3545, %v3546
        %v3548 = vsel %vm920, %v3341, -inf
        %v3549 = vrot.slane %v3548, 4
        %v3550 = vmax.f32 %v3548, %v3549
        %v3551 = vrot.slane %v3550, 2
        %v3552 = vmax.f32 %v3550, %v3551
        %v3553 = vrot.slane %v3552, 1
        %v3554 = vmax.f32 %v3552, %v3553
        %v3555 = vsel %vm920, %v3344, -inf
        %v3556 = vrot.slane %v3555, 4
        %v3557 = vmax.f32 %v3555, %v3556
        %v3558 = vrot.slane %v3557, 2
        %v3559 = vmax.f32 %v3557, %v3558
        %v3560 = vrot.slane %v3559, 1
        %v3561 = vmax.f32 %v3559, %v3560
        %v3562 = vsel %vm920, %v3347, -inf
        %v3563 = vrot.slane %v3562, 4
        %v3564 = vmax.f32 %v3562, %v3563
        %v3565 = vrot.slane %v3564, 2
        %v3566 = vmax.f32 %v3564, %v3565
        %v3567 = vrot.slane %v3566, 1
        %v3568 = vmax.f32 %v3566, %v3567
        %v3569 = vsel %vm920, %v3350, -inf
        %v3570 = vrot.slane %v3569, 4
        %v3571 = vmax.f32 %v3569, %v3570
        %v3572 = vrot.slane %v3571, 2
        %v3573 = vmax.f32 %v3571, %v3572
        %v3574 = vrot.slane %v3573, 1
        %v3575 = vmax.f32 %v3573, %v3574
        %v3576 = vsel %vm920, %v3353, -inf
        %v3577 = vrot.slane %v3576, 4
        %v3578 = vmax.f32 %v3576, %v3577
        %v3579 = vrot.slane %v3578, 2
        %v3580 = vmax.f32 %v3578, %v3579
        %v3581 = vrot.slane %v3580, 1
        %v3582 = vmax.f32 %v3580, %v3581
        %v3583 = vsel %vm920, %v3356, -inf
        %v3584 = vrot.slane %v3583, 4
        %v3585 = vmax.f32 %v3583, %v3584
        %v3586 = vrot.slane %v3585, 2
        %v3587 = vmax.f32 %v3585, %v3586
        %v3588 = vrot.slane %v3587, 1
        %v3589 = vmax.f32 %v3587, %v3588
        %v3590 = vsel %vm920, %v3359, -inf
        %v3591 = vrot.slane %v3590, 4
        %v3592 = vmax.f32 %v3590, %v3591
        %v3593 = vrot.slane %v3592, 2
        %v3594 = vmax.f32 %v3592, %v3593
        %v3595 = vrot.slane %v3594, 1
        %v3596 = vmax.f32 %v3594, %v3595
        %v3597 = vsel %vm920, %v3362, -inf
        %v3598 = vrot.slane %v3597, 4
        %v3599 = vmax.f32 %v3597, %v3598
        %v3600 = vrot.slane %v3599, 2
        %v3601 = vmax.f32 %v3599, %v3600
        %v3602 = vrot.slane %v3601, 1
        %v3603 = vmax.f32 %v3601, %v3602
        %v3604 = vsel %vm920, %v3365, -inf
        %v3605 = vrot.slane %v3604, 4
        %v3606 = vmax.f32 %v3604, %v3605
        %v3607 = vrot.slane %v3606, 2
        %v3608 = vmax.f32 %v3606, %v3607
        %v3609 = vrot.slane %v3608, 1
        %v3610 = vmax.f32 %v3608, %v3609
        %v3611 = vsel %vm920, %v3368, -inf
        %v3612 = vrot.slane %v3611, 4
        %v3613 = vmax.f32 %v3611, %v3612
        %v3614 = vrot.slane %v3613, 2
        %v3615 = vmax.f32 %v3613, %v3614
        %v3616 = vrot.slane %v3615, 1
        %v3617 = vmax.f32 %v3615, %v3616
        %v3618 = vsel %vm920, %v3371, -inf
        %v3619 = vrot.slane %v3618, 4
        %v3620 = vmax.f32 %v3618, %v3619
        %v3621 = vrot.slane %v3620, 2
        %v3622 = vmax.f32 %v3620, %v3621
        %v3623 = vrot.slane %v3622, 1
        %v3624 = vmax.f32 %v3622, %v3623
        %v3625 = vsel %vm920, %v3374, -inf
        %v3626 = vrot.slane %v3625, 4
        %v3627 = vmax.f32 %v3625, %v3626
        %v3628 = vrot.slane %v3627, 2
        %v3629 = vmax.f32 %v3627, %v3628
        %v3630 = vrot.slane %v3629, 1
        %v3631 = vmax.f32 %v3629, %v3630
        %v3632 = vsel %vm920, %v3377, -inf
        %v3633 = vrot.slane %v3632, 4
        %v3634 = vmax.f32 %v3632, %v3633
        %v3635 = vrot.slane %v3634, 2
        %v3636 = vmax.f32 %v3634, %v3635
        %v3637 = vrot.slane %v3636, 1
        %v3638 = vmax.f32 %v3636, %v3637
        %v3639 = vsel %vm920, %v3380, -inf
        %v3640 = vrot.slane %v3639, 4
        %v3641 = vmax.f32 %v3639, %v3640
        %v3642 = vrot.slane %v3641, 2
        %v3643 = vmax.f32 %v3641, %v3642
        %v3644 = vrot.slane %v3643, 1
        %v3645 = vmax.f32 %v3643, %v3644
        %v3646 = vsel %vm920, %v3383, -inf
        %v3647 = vrot.slane %v3646, 4
        %v3648 = vmax.f32 %v3646, %v3647
        %v3649 = vrot.slane %v3648, 2
        %v3650 = vmax.f32 %v3648, %v3649
        %v3651 = vrot.slane %v3650, 1
        %v3652 = vmax.f32 %v3650, %v3651
        %v3653 = vsel %vm920, %v3386, -inf
        %v3654 = vrot.slane %v3653, 4
        %v3655 = vmax.f32 %v3653, %v3654
        %v3656 = vrot.slane %v3655, 2
        %v3657 = vmax.f32 %v3655, %v3656
        %v3658 = vrot.slane %v3657, 1
        %v3659 = vmax.f32 %v3657, %v3658
        %v3660 = vsel %vm920, %v3389, -inf
        %v3661 = vrot.slane %v3660, 4
        %v3662 = vmax.f32 %v3660, %v3661
        %v3663 = vrot.slane %v3662, 2
        %v3664 = vmax.f32 %v3662, %v3663
        %v3665 = vrot.slane %v3664, 1
        %v3666 = vmax.f32 %v3664, %v3665
        %v3667 = vsel %vm920, %v3392, -inf
        %v3668 = vrot.slane %v3667, 4
        %v3669 = vmax.f32 %v3667, %v3668
        %v3670 = vrot.slane %v3669, 2
        %v3671 = vmax.f32 %v3669, %v3670
        %v3672 = vrot.slane %v3671, 1
        %v3673 = vmax.f32 %v3671, %v3672
        %v3674 = vsel %vm920, %v3395, -inf
        %v3675 = vrot.slane %v3674, 4
        %v3676 = vmax.f32 %v3674, %v3675
        %v3677 = vrot.slane %v3676, 2
        %v3678 = vmax.f32 %v3676, %v3677
        %v3679 = vrot.slane %v3678, 1
        %v3680 = vmax.f32 %v3678, %v3679
        %v3681 = vmax.f32 %v3463, %v3290
        %v3682 = vmax.f32 %v3470, %v3401
        %v3683 = vmax.f32 %v3477, %v3402
        %v3684 = vmax.f32 %v3484, %v3403
        %v3685 = vmax.f32 %v3491, %v3404
        %v3686 = vmax.f32 %v3498, %v3405
        %v3687 = vmax.f32 %v3505, %v3406
        %v3688 = vmax.f32 %v3512, %v3407
        %v3689 = vmax.f32 %v3519, %v3293
        %v3690 = vmax.f32 %v3526, %v3408
        %v3691 = vmax.f32 %v3533, %v3409
        %v3692 = vmax.f32 %v3540, %v3410
        %v3693 = vmax.f32 %v3547, %v3411
        %v3694 = vmax.f32 %v3554, %v3412
        %v3695 = vmax.f32 %v3561, %v3413
        %v3696 = vmax.f32 %v3568, %v3414
        %v3697 = vmax.f32 %v3575, %v3296
        %v3698 = vmax.f32 %v3582, %v3415
        %v3699 = vmax.f32 %v3589, %v3416
        %v3700 = vmax.f32 %v3596, %v3417
        %v3701 = vmax.f32 %v3603, %v3418
        %v3702 = vmax.f32 %v3610, %v3419
        %v3703 = vmax.f32 %v3617, %v3420
        %v3704 = vmax.f32 %v3624, %v3421
        %v3705 = vmax.f32 %v3631, %v3299
        %v3706 = vmax.f32 %v3638, %v3422
        %v3707 = vmax.f32 %v3645, %v3423
        %v3708 = vmax.f32 %v3652, %v3424
        %v3709 = vmax.f32 %v3659, %v3425
        %v3710 = vmax.f32 %v3666, %v3426
        %v3711 = vmax.f32 %v3673, %v3427
        %v3712 = vmax.f32 %v3680, %v3428
        %v3713 = vsub.f32 %v3290, %v3681
        %v3714 = vsub.f32 %v3401, %v3682
        %v3715 = vsub.f32 %v3402, %v3683
        %v3716 = vsub.f32 %v3403, %v3684
        %v3717 = vsub.f32 %v3404, %v3685
        %v3718 = vsub.f32 %v3405, %v3686
        %v3719 = vsub.f32 %v3406, %v3687
        %v3720 = vsub.f32 %v3407, %v3688
        %v3721 = vsub.f32 %v3293, %v3689
        %v3722 = vsub.f32 %v3408, %v3690
        %v3723 = vsub.f32 %v3409, %v3691
        %v3724 = vsub.f32 %v3410, %v3692
        %v3725 = vsub.f32 %v3411, %v3693
        %v3726 = vsub.f32 %v3412, %v3694
        %v3727 = vsub.f32 %v3413, %v3695
        %v3728 = vsub.f32 %v3414, %v3696
        %v3729 = vsub.f32 %v3296, %v3697
        %v3730 = vsub.f32 %v3415, %v3698
        %v3731 = vsub.f32 %v3416, %v3699
        %v3732 = vsub.f32 %v3417, %v3700
        %v3733 = vsub.f32 %v3418, %v3701
        %v3734 = vsub.f32 %v3419, %v3702
        %v3735 = vsub.f32 %v3420, %v3703
        %v3736 = vsub.f32 %v3421, %v3704
        %v3737 = vsub.f32 %v3299, %v3705
        %v3738 = vsub.f32 %v3422, %v3706
        %v3739 = vsub.f32 %v3423, %v3707
        %v3740 = vsub.f32 %v3424, %v3708
        %v3741 = vsub.f32 %v3425, %v3709
        %v3742 = vsub.f32 %v3426, %v3710
        %v3743 = vsub.f32 %v3427, %v3711
        %v3744 = vsub.f32 %v3428, %v3712
        %v3745 = vmul.f32 %v3713, 1.442695
        %v3746 = vpow.pop %v3745
        %v3747 = vmul.f32 %v3714, 1.442695
        %v3748 = vpow.pop %v3747
        %v3749 = vmul.f32 %v3715, 1.442695
        %v3750 = vpow.pop %v3749
        %v3751 = vmul.f32 %v3716, 1.442695
        %v3752 = vpow.pop %v3751
        %v3753 = vmul.f32 %v3717, 1.442695
        %v3754 = vpow.pop %v3753
        %v3755 = vmul.f32 %v3718, 1.442695
        %v3756 = vpow.pop %v3755
        %v3757 = vmul.f32 %v3719, 1.442695
        %v3758 = vpow.pop %v3757
        %v3759 = vmul.f32 %v3720, 1.442695
        %v3760 = vpow.pop %v3759
        %v3761 = vmul.f32 %v3721, 1.442695
        %v3762 = vpow.pop %v3761
        %v3763 = vmul.f32 %v3722, 1.442695
        %v3764 = vpow.pop %v3763
        %v3765 = vmul.f32 %v3723, 1.442695
        %v3766 = vpow.pop %v3765
        %v3767 = vmul.f32 %v3724, 1.442695
        %v3768 = vpow.pop %v3767
        %v3769 = vmul.f32 %v3725, 1.442695
        %v3770 = vpow.pop %v3769
        %v3771 = vmul.f32 %v3726, 1.442695
        %v3772 = vpow.pop %v3771
        %v3773 = vmul.f32 %v3727, 1.442695
        %v3774 = vpow.pop %v3773
        %v3775 = vmul.f32 %v3728, 1.442695
        %v3776 = vpow.pop %v3775
        %v3777 = vmul.f32 %v3729, 1.442695
        %v3778 = vpow.pop %v3777
        %v3779 = vmul.f32 %v3730, 1.442695
        %v3780 = vpow.pop %v3779
        %v3781 = vmul.f32 %v3731, 1.442695
        %v3782 = vpow.pop %v3781
        %v3783 = vmul.f32 %v3732, 1.442695
        %v3784 = vpow.pop %v3783
        %v3785 = vmul.f32 %v3733, 1.442695
        %v3786 = vpow.pop %v3785
        %v3787 = vmul.f32 %v3734, 1.442695
        %v3788 = vpow.pop %v3787
        %v3789 = vmul.f32 %v3735, 1.442695
        %v3790 = vpow.pop %v3789
        %v3791 = vmul.f32 %v3736, 1.442695
        %v3792 = vpow.pop %v3791
        %v3793 = vmul.f32 %v3737, 1.442695
        %v3794 = vpow.pop %v3793
        %v3795 = vmul.f32 %v3738, 1.442695
        %v3796 = vpow.pop %v3795
        %v3797 = vmul.f32 %v3739, 1.442695
        %v3798 = vpow.pop %v3797
        %v3799 = vmul.f32 %v3740, 1.442695
        %v3800 = vpow.pop %v3799
        %v3801 = vmul.f32 %v3741, 1.442695
        %v3802 = vpow.pop %v3801
        %v3803 = vmul.f32 %v3742, 1.442695
        %v3804 = vpow.pop %v3803
        %v3805 = vmul.f32 %v3743, 1.442695
        %v3806 = vpow.pop %v3805
        %v3807 = vmul.f32 %v3744, 1.442695
        %v3808 = vpow.pop %v3807
        %v3809 = vperm.slane %v3681, 0
        %v3810 = vperm.slane %v3682, 0
        %v3811 = vperm.slane %v3683, 0
        %v3812 = vperm.slane %v3684, 0
        %v3813 = vperm.slane %v3685, 0
        %v3814 = vperm.slane %v3686, 0
        %v3815 = vperm.slane %v3687, 0
        %v3816 = vperm.slane %v3688, 0
        %v3817 = vperm.slane %v3689, 0
        %v3818 = vperm.slane %v3690, 0
        %v3819 = vperm.slane %v3691, 0
        %v3820 = vperm.slane %v3692, 0
        %v3821 = vperm.slane %v3693, 0
        %v3822 = vperm.slane %v3694, 0
        %v3823 = vperm.slane %v3695, 0
        %v3824 = vperm.slane %v3696, 0
        %v3825 = vperm.slane %v3697, 0
        %v3826 = vperm.slane %v3698, 0
        %v3827 = vperm.slane %v3699, 0
        %v3828 = vperm.slane %v3700, 0
        %v3829 = vperm.slane %v3701, 0
        %v3830 = vperm.slane %v3702, 0
        %v3831 = vperm.slane %v3703, 0
        %v3832 = vperm.slane %v3704, 0
        %v3833 = vperm.slane %v3705, 0
        %v3834 = vperm.slane %v3706, 0
        %v3835 = vperm.slane %v3707, 0
        %v3836 = vperm.slane %v3708, 0
        %v3837 = vperm.slane %v3709, 0
        %v3838 = vperm.slane %v3710, 0
        %v3839 = vperm.slane %v3711, 0
        %v3840 = vperm.slane %v3712, 0
        %v3841 = vsub.f32 %v3302, %v3809
        %v3842 = vsub.f32 %v3305, %v3810
        %v3843 = vsub.f32 %v3308, %v3811
        %v3844 = vsub.f32 %v3311, %v3812
        %v3845 = vsub.f32 %v3314, %v3813
        %v3846 = vsub.f32 %v3317, %v3814
        %v3847 = vsub.f32 %v3320, %v3815
        %v3848 = vsub.f32 %v3323, %v3816
        %v3849 = vsub.f32 %v3326, %v3817
        %v3850 = vsub.f32 %v3329, %v3818
        %v3851 = vsub.f32 %v3332, %v3819
        %v3852 = vsub.f32 %v3335, %v3820
        %v3853 = vsub.f32 %v3338, %v3821
        %v3854 = vsub.f32 %v3341, %v3822
        %v3855 = vsub.f32 %v3344, %v3823
        %v3856 = vsub.f32 %v3347, %v3824
        %v3857 = vsub.f32 %v3350, %v3825
        %v3858 = vsub.f32 %v3353, %v3826
        %v3859 = vsub.f32 %v3356, %v3827
        %v3860 = vsub.f32 %v3359, %v3828
        %v3861 = vsub.f32 %v3362, %v3829
        %v3862 = vsub.f32 %v3365, %v3830
        %v3863 = vsub.f32 %v3368, %v3831
        %v3864 = vsub.f32 %v3371, %v3832
        %v3865 = vsub.f32 %v3374, %v3833
        %v3866 = vsub.f32 %v3377, %v3834
        %v3867 = vsub.f32 %v3380, %v3835
        %v3868 = vsub.f32 %v3383, %v3836
        %v3869 = vsub.f32 %v3386, %v3837
        %v3870 = vsub.f32 %v3389, %v3838
        %v3871 = vsub.f32 %v3392, %v3839
        %v3872 = vsub.f32 %v3395, %v3840
        %v3873 = vmul.f32 %v3841, 1.442695
        %v3874 = vpow.pop %v3873
        %v3875 = vmul.f32 %v3842, 1.442695
        %v3876 = vpow.pop %v3875
        %v3877 = vmul.f32 %v3843, 1.442695
        %v3878 = vpow.pop %v3877
        %v3879 = vmul.f32 %v3844, 1.442695
        %v3880 = vpow.pop %v3879
        %v3881 = vmul.f32 %v3845, 1.442695
        %v3882 = vpow.pop %v3881
        %v3883 = vmul.f32 %v3846, 1.442695
        %v3884 = vpow.pop %v3883
        %v3885 = vmul.f32 %v3847, 1.442695
        %v3886 = vpow.pop %v3885
        %v3887 = vmul.f32 %v3848, 1.442695
        %v3888 = vpow.pop %v3887
        %v3889 = vmul.f32 %v3849, 1.442695
        %v3890 = vpow.pop %v3889
        %v3891 = vmul.f32 %v3850, 1.442695
        %v3892 = vpow.pop %v3891
        %v3893 = vmul.f32 %v3851, 1.442695
        %v3894 = vpow.pop %v3893
        %v3895 = vmul.f32 %v3852, 1.442695
        %v3896 = vpow.pop %v3895
        %v3897 = vmul.f32 %v3853, 1.442695
        %v3898 = vpow.pop %v3897
        %v3899 = vmul.f32 %v3854, 1.442695
        %v3900 = vpow.pop %v3899
        %v3901 = vmul.f32 %v3855, 1.442695
        %v3902 = vpow.pop %v3901
        %v3903 = vmul.f32 %v3856, 1.442695
        %v3904 = vpow.pop %v3903
        %v3905 = vmul.f32 %v3857, 1.442695
        %v3906 = vpow.pop %v3905
        %v3907 = vmul.f32 %v3858, 1.442695
        %v3908 = vpow.pop %v3907
        %v3909 = vmul.f32 %v3859, 1.442695
        %v3910 = vpow.pop %v3909
        %v3911 = vmul.f32 %v3860, 1.442695
        %v3912 = vpow.pop %v3911
        %v3913 = vmul.f32 %v3861, 1.442695
        %v3914 = vpow.pop %v3913
        %v3915 = vmul.f32 %v3862, 1.442695
        %v3916 = vpow.pop %v3915
        %v3917 = vmul.f32 %v3863, 1.442695
        %v3918 = vpow.pop %v3917
        %v3919 = vmul.f32 %v3864, 1.442695
        %v3920 = vpow.pop %v3919
        %v3921 = vmul.f32 %v3865, 1.442695
        %v3922 = vpow.pop %v3921
        %v3923 = vmul.f32 %v3866, 1.442695
        %v3924 = vpow.pop %v3923
        %v3925 = vmul.f32 %v3867, 1.442695
        %v3926 = vpow.pop %v3925
        %v3927 = vmul.f32 %v3868, 1.442695
        %v3928 = vpow.pop %v3927
        %v3929 = vmul.f32 %v3869, 1.442695
        %v3930 = vpow.pop %v3929
        %v3931 = vmul.f32 %v3870, 1.442695
        %v3932 = vpow.pop %v3931
        %v3933 = vmul.f32 %v3871, 1.442695
        %v3934 = vpow.pop %v3933
        %v3935 = vmul.f32 %v3872, 1.442695
        %v3936 = vpow.pop %v3935
        %v3937 = vsel %vm920, %v3874, 0.0
        %v3938 = vrot.slane %v3937, 4
        %v3939 = vadd.f32 %v3937, %v3938
        %v3940 = vrot.slane %v3939, 2
        %v3941 = vadd.f32 %v3939, %v3940
        %v3942 = vrot.slane %v3941, 1
        %v3943 = vadd.f32 %v3941, %v3942
        %v3944 = vsel %vm920, %v3876, 0.0
        %v3945 = vrot.slane %v3944, 4
        %v3946 = vadd.f32 %v3944, %v3945
        %v3947 = vrot.slane %v3946, 2
        %v3948 = vadd.f32 %v3946, %v3947
        %v3949 = vrot.slane %v3948, 1
        %v3950 = vadd.f32 %v3948, %v3949
        %v3951 = vsel %vm920, %v3878, 0.0
        %v3952 = vrot.slane %v3951, 4
        %v3953 = vadd.f32 %v3951, %v3952
        %v3954 = vrot.slane %v3953, 2
        %v3955 = vadd.f32 %v3953, %v3954
        %v3956 = vrot.slane %v3955, 1
        %v3957 = vadd.f32 %v3955, %v3956
        %v3958 = vsel %vm920, %v3880, 0.0
        %v3959 = vrot.slane %v3958, 4
        %v3960 = vadd.f32 %v3958, %v3959
        %v3961 = vrot.slane %v3960, 2
        %v3962 = vadd.f32 %v3960, %v3961
        %v3963 = vrot.slane %v3962, 1
        %v3964 = vadd.f32 %v3962, %v3963
        %v3965 = vsel %vm920, %v3882, 0.0
        %v3966 = vrot.slane %v3965, 4
        %v3967 = vadd.f32 %v3965, %v3966
        %v3968 = vrot.slane %v3967, 2
        %v3969 = vadd.f32 %v3967, %v3968
        %v3970 = vrot.slane %v3969, 1
        %v3971 = vadd.f32 %v3969, %v3970
        %v3972 = vsel %vm920, %v3884, 0.0
        %v3973 = vrot.slane %v3972, 4
        %v3974 = vadd.f32 %v3972, %v3973
        %v3975 = vrot.slane %v3974, 2
        %v3976 = vadd.f32 %v3974, %v3975
        %v3977 = vrot.slane %v3976, 1
        %v3978 = vadd.f32 %v3976, %v3977
        %v3979 = vsel %vm920, %v3886, 0.0
        %v3980 = vrot.slane %v3979, 4
        %v3981 = vadd.f32 %v3979, %v3980
        %v3982 = vrot.slane %v3981, 2
        %v3983 = vadd.f32 %v3981, %v3982
        %v3984 = vrot.slane %v3983, 1
        %v3985 = vadd.f32 %v3983, %v3984
        %v3986 = vsel %vm920, %v3888, 0.0
        %v3987 = vrot.slane %v3986, 4
        %v3988 = vadd.f32 %v3986, %v3987
        %v3989 = vrot.slane %v3988, 2
        %v3990 = vadd.f32 %v3988, %v3989
        %v3991 = vrot.slane %v3990, 1
        %v3992 = vadd.f32 %v3990, %v3991
        %v3993 = vsel %vm920, %v3890, 0.0
        %v3994 = vrot.slane %v3993, 4
        %v3995 = vadd.f32 %v3993, %v3994
        %v3996 = vrot.slane %v3995, 2
        %v3997 = vadd.f32 %v3995, %v3996
        %v3998 = vrot.slane %v3997, 1
        %v3999 = vadd.f32 %v3997, %v3998
        %v4000 = vsel %vm920, %v3892, 0.0
        %v4001 = vrot.slane %v4000, 4
        %v4002 = vadd.f32 %v4000, %v4001
        %v4003 = vrot.slane %v4002, 2
        %v4004 = vadd.f32 %v4002, %v4003
        %v4005 = vrot.slane %v4004, 1
        %v4006 = vadd.f32 %v4004, %v4005
        %v4007 = vsel %vm920, %v3894, 0.0
        %v4008 = vrot.slane %v4007, 4
        %v4009 = vadd.f32 %v4007, %v4008
        %v4010 = vrot.slane %v4009, 2
        %v4011 = vadd.f32 %v4009, %v4010
        %v4012 = vrot.slane %v4011, 1
        %v4013 = vadd.f32 %v4011, %v4012
        %v4014 = vsel %vm920, %v3896, 0.0
        %v4015 = vrot.slane %v4014, 4
        %v4016 = vadd.f32 %v4014, %v4015
        %v4017 = vrot.slane %v4016, 2
        %v4018 = vadd.f32 %v4016, %v4017
        %v4019 = vrot.slane %v4018, 1
        %v4020 = vadd.f32 %v4018, %v4019
        %v4021 = vsel %vm920, %v3898, 0.0
        %v4022 = vrot.slane %v4021, 4
        %v4023 = vadd.f32 %v4021, %v4022
        %v4024 = vrot.slane %v4023, 2
        %v4025 = vadd.f32 %v4023, %v4024
        %v4026 = vrot.slane %v4025, 1
        %v4027 = vadd.f32 %v4025, %v4026
        %v4028 = vsel %vm920, %v3900, 0.0
        %v4029 = vrot.slane %v4028, 4
        %v4030 = vadd.f32 %v4028, %v4029
        %v4031 = vrot.slane %v4030, 2
        %v4032 = vadd.f32 %v4030, %v4031
        %v4033 = vrot.slane %v4032, 1
        %v4034 = vadd.f32 %v4032, %v4033
        %v4035 = vsel %vm920, %v3902, 0.0
        %v4036 = vrot.slane %v4035, 4
        %v4037 = vadd.f32 %v4035, %v4036
        %v4038 = vrot.slane %v4037, 2
        %v4039 = vadd.f32 %v4037, %v4038
        %v4040 = vrot.slane %v4039, 1
        %v4041 = vadd.f32 %v4039, %v4040
        %v4042 = vsel %vm920, %v3904, 0.0
        %v4043 = vrot.slane %v4042, 4
        %v4044 = vadd.f32 %v4042, %v4043
        %v4045 = vrot.slane %v4044, 2
        %v4046 = vadd.f32 %v4044, %v4045
        %v4047 = vrot.slane %v4046, 1
        %v4048 = vadd.f32 %v4046, %v4047
        %v4049 = vsel %vm920, %v3906, 0.0
        %v4050 = vrot.slane %v4049, 4
        %v4051 = vadd.f32 %v4049, %v4050
        %v4052 = vrot.slane %v4051, 2
        %v4053 = vadd.f32 %v4051, %v4052
        %v4054 = vrot.slane %v4053, 1
        %v4055 = vadd.f32 %v4053, %v4054
        %v4056 = vsel %vm920, %v3908, 0.0
        %v4057 = vrot.slane %v4056, 4
        %v4058 = vadd.f32 %v4056, %v4057
        %v4059 = vrot.slane %v4058, 2
        %v4060 = vadd.f32 %v4058, %v4059
        %v4061 = vrot.slane %v4060, 1
        %v4062 = vadd.f32 %v4060, %v4061
        %v4063 = vsel %vm920, %v3910, 0.0
        %v4064 = vrot.slane %v4063, 4
        %v4065 = vadd.f32 %v4063, %v4064
        %v4066 = vrot.slane %v4065, 2
        %v4067 = vadd.f32 %v4065, %v4066
        %v4068 = vrot.slane %v4067, 1
        %v4069 = vadd.f32 %v4067, %v4068
        %v4070 = vsel %vm920, %v3912, 0.0
        %v4071 = vrot.slane %v4070, 4
        %v4072 = vadd.f32 %v4070, %v4071
        %v4073 = vrot.slane %v4072, 2
        %v4074 = vadd.f32 %v4072, %v4073
        %v4075 = vrot.slane %v4074, 1
        %v4076 = vadd.f32 %v4074, %v4075
        %v4077 = vsel %vm920, %v3914, 0.0
        %v4078 = vrot.slane %v4077, 4
        %v4079 = vadd.f32 %v4077, %v4078
        %v4080 = vrot.slane %v4079, 2
        %v4081 = vadd.f32 %v4079, %v4080
        %v4082 = vrot.slane %v4081, 1
        %v4083 = vadd.f32 %v4081, %v4082
        %v4084 = vsel %vm920, %v3916, 0.0
        %v4085 = vrot.slane %v4084, 4
        %v4086 = vadd.f32 %v4084, %v4085
        %v4087 = vrot.slane %v4086, 2
        %v4088 = vadd.f32 %v4086, %v4087
        %v4089 = vrot.slane %v4088, 1
        %v4090 = vadd.f32 %v4088, %v4089
        %v4091 = vsel %vm920, %v3918, 0.0
        %v4092 = vrot.slane %v4091, 4
        %v4093 = vadd.f32 %v4091, %v4092
        %v4094 = vrot.slane %v4093, 2
        %v4095 = vadd.f32 %v4093, %v4094
        %v4096 = vrot.slane %v4095, 1
        %v4097 = vadd.f32 %v4095, %v4096
        %v4098 = vsel %vm920, %v3920, 0.0
        %v4099 = vrot.slane %v4098, 4
        %v4100 = vadd.f32 %v4098, %v4099
        %v4101 = vrot.slane %v4100, 2
        %v4102 = vadd.f32 %v4100, %v4101
        %v4103 = vrot.slane %v4102, 1
        %v4104 = vadd.f32 %v4102, %v4103
        %v4105 = vsel %vm920, %v3922, 0.0
        %v4106 = vrot.slane %v4105, 4
        %v4107 = vadd.f32 %v4105, %v4106
        %v4108 = vrot.slane %v4107, 2
        %v4109 = vadd.f32 %v4107, %v4108
        %v4110 = vrot.slane %v4109, 1
        %v4111 = vadd.f32 %v4109, %v4110
        %v4112 = vsel %vm920, %v3924, 0.0
        %v4113 = vrot.slane %v4112, 4
        %v4114 = vadd.f32 %v4112, %v4113
        %v4115 = vrot.slane %v4114, 2
        %v4116 = vadd.f32 %v4114, %v4115
        %v4117 = vrot.slane %v4116, 1
        %v4118 = vadd.f32 %v4116, %v4117
        %v4119 = vsel %vm920, %v3926, 0.0
        %v4120 = vrot.slane %v4119, 4
        %v4121 = vadd.f32 %v4119, %v4120
        %v4122 = vrot.slane %v4121, 2
        %v4123 = vadd.f32 %v4121, %v4122
        %v4124 = vrot.slane %v4123, 1
        %v4125 = vadd.f32 %v4123, %v4124
        %v4126 = vsel %vm920, %v3928, 0.0
        %v4127 = vrot.slane %v4126, 4
        %v4128 = vadd.f32 %v4126, %v4127
        %v4129 = vrot.slane %v4128, 2
        %v4130 = vadd.f32 %v4128, %v4129
        %v4131 = vrot.slane %v4130, 1
        %v4132 = vadd.f32 %v4130, %v4131
        %v4133 = vsel %vm920, %v3930, 0.0
        %v4134 = vrot.slane %v4133, 4
        %v4135 = vadd.f32 %v4133, %v4134
        %v4136 = vrot.slane %v4135, 2
        %v4137 = vadd.f32 %v4135, %v4136
        %v4138 = vrot.slane %v4137, 1
        %v4139 = vadd.f32 %v4137, %v4138
        %v4140 = vsel %vm920, %v3932, 0.0
        %v4141 = vrot.slane %v4140, 4
        %v4142 = vadd.f32 %v4140, %v4141
        %v4143 = vrot.slane %v4142, 2
        %v4144 = vadd.f32 %v4142, %v4143
        %v4145 = vrot.slane %v4144, 1
        %v4146 = vadd.f32 %v4144, %v4145
        %v4147 = vsel %vm920, %v3934, 0.0
        %v4148 = vrot.slane %v4147, 4
        %v4149 = vadd.f32 %v4147, %v4148
        %v4150 = vrot.slane %v4149, 2
        %v4151 = vadd.f32 %v4149, %v4150
        %v4152 = vrot.slane %v4151, 1
        %v4153 = vadd.f32 %v4151, %v4152
        %v4154 = vsel %vm920, %v3936, 0.0
        %v4155 = vrot.slane %v4154, 4
        %v4156 = vadd.f32 %v4154, %v4155
        %v4157 = vrot.slane %v4156, 2
        %v4158 = vadd.f32 %v4156, %v4157
        %v4159 = vrot.slane %v4158, 1
        %v4160 = vadd.f32 %v4158, %v4159
        %v4161 = vadd.f32 %v3746, %v3943
        %v4162 = vadd.f32 %v3748, %v3950
        %v4163 = vadd.f32 %v3750, %v3957
        %v4164 = vadd.f32 %v3752, %v3964
        %v4165 = vadd.f32 %v3754, %v3971
        %v4166 = vadd.f32 %v3756, %v3978
        %v4167 = vadd.f32 %v3758, %v3985
        %v4168 = vadd.f32 %v3760, %v3992
        %v4169 = vadd.f32 %v3762, %v3999
        %v4170 = vadd.f32 %v3764, %v4006
        %v4171 = vadd.f32 %v3766, %v4013
        %v4172 = vadd.f32 %v3768, %v4020
        %v4173 = vadd.f32 %v3770, %v4027
        %v4174 = vadd.f32 %v3772, %v4034
        %v4175 = vadd.f32 %v3774, %v4041
        %v4176 = vadd.f32 %v3776, %v4048
        %v4177 = vadd.f32 %v3778, %v4055
        %v4178 = vadd.f32 %v3780, %v4062
        %v4179 = vadd.f32 %v3782, %v4069
        %v4180 = vadd.f32 %v3784, %v4076
        %v4181 = vadd.f32 %v3786, %v4083
        %v4182 = vadd.f32 %v3788, %v4090
        %v4183 = vadd.f32 %v3790, %v4097
        %v4184 = vadd.f32 %v3792, %v4104
        %v4185 = vadd.f32 %v3794, %v4111
        %v4186 = vadd.f32 %v3796, %v4118
        %v4187 = vadd.f32 %v3798, %v4125
        %v4188 = vadd.f32 %v3800, %v4132
        %v4189 = vadd.f32 %v3802, %v4139
        %v4190 = vadd.f32 %v3804, %v4146
        %v4191 = vadd.f32 %v3806, %v4153
        %v4192 = vadd.f32 %v3808, %v4160
        %4194 = vset.pattern.permute.xlu0 0
        %4195 = vperm.xlu0 %4194, %v3746
        %v4196 = vpop.permute.xlu0 %4195
        %v4198 = vperm.slane %v4196, 0
        %4200 = vset.pattern.permute.xlu0 0
        %4201 = vperm.xlu0 %4200, %v3748
        %v4202 = vpop.permute.xlu0 %4201
        %v4204 = vperm.slane %v4202, 0
        %4206 = vset.pattern.permute.xlu0 0
        %4207 = vperm.xlu0 %4206, %v3750
        %v4208 = vpop.permute.xlu0 %4207
        %v4210 = vperm.slane %v4208, 0
        %4212 = vset.pattern.permute.xlu0 0
        %4213 = vperm.xlu0 %4212, %v3752
        %v4214 = vpop.permute.xlu0 %4213
        %v4216 = vperm.slane %v4214, 0
        %4218 = vset.pattern.permute.xlu0 0
        %4219 = vperm.xlu0 %4218, %v3754
        %v4220 = vpop.permute.xlu0 %4219
        %v4222 = vperm.slane %v4220, 0
        %4224 = vset.pattern.permute.xlu0 0
        %4225 = vperm.xlu0 %4224, %v3756
        %v4226 = vpop.permute.xlu0 %4225
        %v4228 = vperm.slane %v4226, 0
        %4230 = vset.pattern.permute.xlu0 0
        %4231 = vperm.xlu0 %4230, %v3758
        %v4232 = vpop.permute.xlu0 %4231
        %v4234 = vperm.slane %v4232, 0
        %4236 = vset.pattern.permute.xlu0 0
        %4237 = vperm.xlu0 %4236, %v3760
        %v4238 = vpop.permute.xlu0 %4237
        %v4240 = vperm.slane %v4238, 0
        %4242 = vset.pattern.permute.xlu0 0
        %4243 = vperm.xlu0 %4242, %v3762
        %v4244 = vpop.permute.xlu0 %4243
        %v4246 = vperm.slane %v4244, 0
        %4248 = vset.pattern.permute.xlu0 0
        %4249 = vperm.xlu0 %4248, %v3764
        %v4250 = vpop.permute.xlu0 %4249
        %v4252 = vperm.slane %v4250, 0
        %4254 = vset.pattern.permute.xlu0 0
        %4255 = vperm.xlu0 %4254, %v3766
        %v4256 = vpop.permute.xlu0 %4255
        %v4258 = vperm.slane %v4256, 0
        %4260 = vset.pattern.permute.xlu0 0
        %4261 = vperm.xlu0 %4260, %v3768
        %v4262 = vpop.permute.xlu0 %4261
        %v4264 = vperm.slane %v4262, 0
        %4266 = vset.pattern.permute.xlu0 0
        %4267 = vperm.xlu0 %4266, %v3770
        %v4268 = vpop.permute.xlu0 %4267
        %v4270 = vperm.slane %v4268, 0
        %4272 = vset.pattern.permute.xlu0 0
        %4273 = vperm.xlu0 %4272, %v3772
        %v4274 = vpop.permute.xlu0 %4273
        %v4276 = vperm.slane %v4274, 0
        %4278 = vset.pattern.permute.xlu0 0
        %4279 = vperm.xlu0 %4278, %v3774
        %v4280 = vpop.permute.xlu0 %4279
        %v4282 = vperm.slane %v4280, 0
        %4284 = vset.pattern.permute.xlu0 0
        %4285 = vperm.xlu0 %4284, %v3776
        %v4286 = vpop.permute.xlu0 %4285
        %v4288 = vperm.slane %v4286, 0
        %4290 = vset.pattern.permute.xlu0 0
        %4291 = vperm.xlu0 %4290, %v3778
        %v4292 = vpop.permute.xlu0 %4291
        %v4294 = vperm.slane %v4292, 0
        %4296 = vset.pattern.permute.xlu0 0
        %4297 = vperm.xlu0 %4296, %v3780
        %v4298 = vpop.permute.xlu0 %4297
        %v4300 = vperm.slane %v4298, 0
        %4302 = vset.pattern.permute.xlu0 0
        %4303 = vperm.xlu0 %4302, %v3782
        %v4304 = vpop.permute.xlu0 %4303
        %v4306 = vperm.slane %v4304, 0
        %4308 = vset.pattern.permute.xlu0 0
        %4309 = vperm.xlu0 %4308, %v3784
        %v4310 = vpop.permute.xlu0 %4309
        %v4312 = vperm.slane %v4310, 0
        %4314 = vset.pattern.permute.xlu0 0
        %4315 = vperm.xlu0 %4314, %v3786
        %v4316 = vpop.permute.xlu0 %4315
        %v4318 = vperm.slane %v4316, 0
        %4320 = vset.pattern.permute.xlu0 0
        %4321 = vperm.xlu0 %4320, %v3788
        %v4322 = vpop.permute.xlu0 %4321
        %v4324 = vperm.slane %v4322, 0
        %4326 = vset.pattern.permute.xlu0 0
        %4327 = vperm.xlu0 %4326, %v3790
        %v4328 = vpop.permute.xlu0 %4327
        %v4330 = vperm.slane %v4328, 0
        %4332 = vset.pattern.permute.xlu0 0
        %4333 = vperm.xlu0 %4332, %v3792
        %v4334 = vpop.permute.xlu0 %4333
        %v4336 = vperm.slane %v4334, 0
        %4338 = vset.pattern.permute.xlu0 0
        %4339 = vperm.xlu0 %4338, %v3794
        %v4340 = vpop.permute.xlu0 %4339
        %v4342 = vperm.slane %v4340, 0
        %4344 = vset.pattern.permute.xlu0 0
        %4345 = vperm.xlu0 %4344, %v3796
        %v4346 = vpop.permute.xlu0 %4345
        %v4348 = vperm.slane %v4346, 0
        %4350 = vset.pattern.permute.xlu0 0
        %4351 = vperm.xlu0 %4350, %v3798
        %v4352 = vpop.permute.xlu0 %4351
        %v4354 = vperm.slane %v4352, 0
        %4356 = vset.pattern.permute.xlu0 0
        %4357 = vperm.xlu0 %4356, %v3800
        %v4358 = vpop.permute.xlu0 %4357
        %v4360 = vperm.slane %v4358, 0
        %4362 = vset.pattern.permute.xlu0 0
        %4363 = vperm.xlu0 %4362, %v3802
        %v4364 = vpop.permute.xlu0 %4363
        %v4366 = vperm.slane %v4364, 0
        %4368 = vset.pattern.permute.xlu0 0
        %4369 = vperm.xlu0 %4368, %v3804
        %v4370 = vpop.permute.xlu0 %4369
        %v4372 = vperm.slane %v4370, 0
        %4374 = vset.pattern.permute.xlu0 0
        %4375 = vperm.xlu0 %4374, %v3806
        %v4376 = vpop.permute.xlu0 %4375
        %v4378 = vperm.slane %v4376, 0
        %4380 = vset.pattern.permute.xlu0 0
        %4381 = vperm.xlu0 %4380, %v3808
        %v4382 = vpop.permute.xlu0 %4381
        %v4384 = vperm.slane %v4382, 0
        %v4385 = vrot.slane %v3126, 1
        %v4386 = vrot.slane %v3126, 2
        %v4387 = vrot.slane %v3126, 3
        %v4388 = vrot.slane %v3126, 4
        %v4389 = vrot.slane %v3126, 5
        %v4390 = vrot.slane %v3126, 6
        %v4391 = vrot.slane %v3126, 7
        %v4392 = vrot.slane %v3127, 1
        %v4393 = vrot.slane %v3127, 2
        %v4394 = vrot.slane %v3127, 3
        %v4395 = vrot.slane %v3127, 4
        %v4396 = vrot.slane %v3127, 5
        %v4397 = vrot.slane %v3127, 6
        %v4398 = vrot.slane %v3127, 7
        %v4399 = vrot.slane %v3128, 1
        %v4400 = vrot.slane %v3128, 2
        %v4401 = vrot.slane %v3128, 3
        %v4402 = vrot.slane %v3128, 4
        %v4403 = vrot.slane %v3128, 5
        %v4404 = vrot.slane %v3128, 6
        %v4405 = vrot.slane %v3128, 7
        %v4406 = vrot.slane %v3129, 1
        %v4407 = vrot.slane %v3129, 2
        %v4408 = vrot.slane %v3129, 3
        %v4409 = vrot.slane %v3129, 4
        %v4410 = vrot.slane %v3129, 5
        %v4411 = vrot.slane %v3129, 6
        %v4412 = vrot.slane %v3129, 7
        %v4441 = vmul.f32 %v4198, %v3126
        %v4442 = vmul.f32 %v4204, %v4385
        %v4443 = vmul.f32 %v4210, %v4386
        %v4444 = vmul.f32 %v4216, %v4387
        %v4445 = vmul.f32 %v4222, %v4388
        %v4446 = vmul.f32 %v4228, %v4389
        %v4447 = vmul.f32 %v4234, %v4390
        %v4448 = vmul.f32 %v4240, %v4391
        %v4449 = vmul.f32 %v4246, %v3127
        %v4450 = vmul.f32 %v4252, %v4392
        %v4451 = vmul.f32 %v4258, %v4393
        %v4452 = vmul.f32 %v4264, %v4394
        %v4453 = vmul.f32 %v4270, %v4395
        %v4454 = vmul.f32 %v4276, %v4396
        %v4455 = vmul.f32 %v4282, %v4397
        %v4456 = vmul.f32 %v4288, %v4398
        %v4457 = vmul.f32 %v4294, %v3128
        %v4458 = vmul.f32 %v4300, %v4399
        %v4459 = vmul.f32 %v4306, %v4400
        %v4460 = vmul.f32 %v4312, %v4401
        %v4461 = vmul.f32 %v4318, %v4402
        %v4462 = vmul.f32 %v4324, %v4403
        %v4463 = vmul.f32 %v4330, %v4404
        %v4464 = vmul.f32 %v4336, %v4405
        %v4465 = vmul.f32 %v4342, %v3129
        %v4466 = vmul.f32 %v4348, %v4406
        %v4467 = vmul.f32 %v4354, %v4407
        %v4468 = vmul.f32 %v4360, %v4408
        %v4469 = vmul.f32 %v4366, %v4409
        %v4470 = vmul.f32 %v4372, %v4410
        %v4471 = vmul.f32 %v4378, %v4411
        %v4472 = vmul.f32 %v4384, %v4412
        %4474 = vset.pattern.permute.xlu0 0
        %4475 = vperm.xlu0 %4474, %v3874
        %v4476 = vpop.permute.xlu0 %4475
        %4479 = vset.pattern.permute.xlu0 0
        %4480 = vperm.xlu0 %4479, %v3876
        %v4481 = vpop.permute.xlu0 %4480
        %4484 = vset.pattern.permute.xlu0 0
        %4485 = vperm.xlu0 %4484, %v3878
        %v4486 = vpop.permute.xlu0 %4485
        %4489 = vset.pattern.permute.xlu0 0
        %4490 = vperm.xlu0 %4489, %v3880
        %v4491 = vpop.permute.xlu0 %4490
        %4494 = vset.pattern.permute.xlu0 0
        %4495 = vperm.xlu0 %4494, %v3882
        %v4496 = vpop.permute.xlu0 %4495
        %4499 = vset.pattern.permute.xlu0 0
        %4500 = vperm.xlu0 %4499, %v3884
        %v4501 = vpop.permute.xlu0 %4500
        %4504 = vset.pattern.permute.xlu0 0
        %4505 = vperm.xlu0 %4504, %v3886
        %v4506 = vpop.permute.xlu0 %4505
        %4509 = vset.pattern.permute.xlu0 0
        %4510 = vperm.xlu0 %4509, %v3888
        %v4511 = vpop.permute.xlu0 %4510
        %4514 = vset.pattern.permute.xlu0 0
        %4515 = vperm.xlu0 %4514, %v3890
        %v4516 = vpop.permute.xlu0 %4515
        %4519 = vset.pattern.permute.xlu0 0
        %4520 = vperm.xlu0 %4519, %v3892
        %v4521 = vpop.permute.xlu0 %4520
        %4524 = vset.pattern.permute.xlu0 0
        %4525 = vperm.xlu0 %4524, %v3894
        %v4526 = vpop.permute.xlu0 %4525
        %4529 = vset.pattern.permute.xlu0 0
        %4530 = vperm.xlu0 %4529, %v3896
        %v4531 = vpop.permute.xlu0 %4530
        %4534 = vset.pattern.permute.xlu0 0
        %4535 = vperm.xlu0 %4534, %v3898
        %v4536 = vpop.permute.xlu0 %4535
        %4539 = vset.pattern.permute.xlu0 0
        %4540 = vperm.xlu0 %4539, %v3900
        %v4541 = vpop.permute.xlu0 %4540
        %4544 = vset.pattern.permute.xlu0 0
        %4545 = vperm.xlu0 %4544, %v3902
        %v4546 = vpop.permute.xlu0 %4545
        %4549 = vset.pattern.permute.xlu0 0
        %4550 = vperm.xlu0 %4549, %v3904
        %v4551 = vpop.permute.xlu0 %4550
        %4554 = vset.pattern.permute.xlu0 0
        %4555 = vperm.xlu0 %4554, %v3906
        %v4556 = vpop.permute.xlu0 %4555
        %4559 = vset.pattern.permute.xlu0 0
        %4560 = vperm.xlu0 %4559, %v3908
        %v4561 = vpop.permute.xlu0 %4560
        %4564 = vset.pattern.permute.xlu0 0
        %4565 = vperm.xlu0 %4564, %v3910
        %v4566 = vpop.permute.xlu0 %4565
        %4569 = vset.pattern.permute.xlu0 0
        %4570 = vperm.xlu0 %4569, %v3912
        %v4571 = vpop.permute.xlu0 %4570
        %4574 = vset.pattern.permute.xlu0 0
        %4575 = vperm.xlu0 %4574, %v3914
        %v4576 = vpop.permute.xlu0 %4575
        %4579 = vset.pattern.permute.xlu0 0
        %4580 = vperm.xlu0 %4579, %v3916
        %v4581 = vpop.permute.xlu0 %4580
        %4584 = vset.pattern.permute.xlu0 0
        %4585 = vperm.xlu0 %4584, %v3918
        %v4586 = vpop.permute.xlu0 %4585
        %4589 = vset.pattern.permute.xlu0 0
        %4590 = vperm.xlu0 %4589, %v3920
        %v4591 = vpop.permute.xlu0 %4590
        %4594 = vset.pattern.permute.xlu0 0
        %4595 = vperm.xlu0 %4594, %v3922
        %v4596 = vpop.permute.xlu0 %4595
        %4599 = vset.pattern.permute.xlu0 0
        %4600 = vperm.xlu0 %4599, %v3924
        %v4601 = vpop.permute.xlu0 %4600
        %4604 = vset.pattern.permute.xlu0 0
        %4605 = vperm.xlu0 %4604, %v3926
        %v4606 = vpop.permute.xlu0 %4605
        %4609 = vset.pattern.permute.xlu0 0
        %4610 = vperm.xlu0 %4609, %v3928
        %v4611 = vpop.permute.xlu0 %4610
        %4614 = vset.pattern.permute.xlu0 0
        %4615 = vperm.xlu0 %4614, %v3930
        %v4616 = vpop.permute.xlu0 %4615
        %4619 = vset.pattern.permute.xlu0 0
        %4620 = vperm.xlu0 %4619, %v3932
        %v4621 = vpop.permute.xlu0 %4620
        %4624 = vset.pattern.permute.xlu0 0
        %4625 = vperm.xlu0 %4624, %v3934
        %v4626 = vpop.permute.xlu0 %4625
        %4629 = vset.pattern.permute.xlu0 0
        %4630 = vperm.xlu0 %4629, %v3936
        %v4631 = vpop.permute.xlu0 %4630
        %v4633 = vmul.f32 %v4476, %v3130
        %v4634 = vmul.f32 %v4481, %v3131
        %v4635 = vmul.f32 %v4486, %v3132
        %v4636 = vmul.f32 %v4491, %v3133
        %v4637 = vmul.f32 %v4496, %v3134
        %v4638 = vmul.f32 %v4501, %v3135
        %v4639 = vmul.f32 %v4506, %v3136
        %v4640 = vmul.f32 %v4511, %v3137
        %v4641 = vmul.f32 %v4516, %v3138
        %v4642 = vmul.f32 %v4521, %v3139
        %v4643 = vmul.f32 %v4526, %v3140
        %v4644 = vmul.f32 %v4531, %v3141
        %v4645 = vmul.f32 %v4536, %v3142
        %v4646 = vmul.f32 %v4541, %v3143
        %v4647 = vmul.f32 %v4546, %v3144
        %v4648 = vmul.f32 %v4551, %v3145
        %v4649 = vmul.f32 %v4556, %v3146
        %v4650 = vmul.f32 %v4561, %v3147
        %v4651 = vmul.f32 %v4566, %v3148
        %v4652 = vmul.f32 %v4571, %v3149
        %v4653 = vmul.f32 %v4576, %v3150
        %v4654 = vmul.f32 %v4581, %v3151
        %v4655 = vmul.f32 %v4586, %v3152
        %v4656 = vmul.f32 %v4591, %v3153
        %v4657 = vmul.f32 %v4596, %v3154
        %v4658 = vmul.f32 %v4601, %v3155
        %v4659 = vmul.f32 %v4606, %v3156
        %v4660 = vmul.f32 %v4611, %v3157
        %v4661 = vmul.f32 %v4616, %v3158
        %v4662 = vmul.f32 %v4621, %v3159
        %v4663 = vmul.f32 %v4626, %v3160
        %v4664 = vmul.f32 %v4631, %v3161
        %v4665 = vsel %vm2820, %v4633, 0.0
        %v4666 = vrot.slane %v4665, 4
        %v4667 = vadd.f32 %v4665, %v4666
        %v4668 = vrot.slane %v4667, 2
        %v4669 = vadd.f32 %v4667, %v4668
        %v4670 = vrot.slane %v4669, 1
        %v4671 = vadd.f32 %v4669, %v4670
        %v4672 = vsel %vm2820, %v4634, 0.0
        %v4673 = vrot.slane %v4672, 4
        %v4674 = vadd.f32 %v4672, %v4673
        %v4675 = vrot.slane %v4674, 2
        %v4676 = vadd.f32 %v4674, %v4675
        %v4677 = vrot.slane %v4676, 1
        %v4678 = vadd.f32 %v4676, %v4677
        %v4679 = vsel %vm2820, %v4635, 0.0
        %v4680 = vrot.slane %v4679, 4
        %v4681 = vadd.f32 %v4679, %v4680
        %v4682 = vrot.slane %v4681, 2
        %v4683 = vadd.f32 %v4681, %v4682
        %v4684 = vrot.slane %v4683, 1
        %v4685 = vadd.f32 %v4683, %v4684
        %v4686 = vsel %vm2820, %v4636, 0.0
        %v4687 = vrot.slane %v4686, 4
        %v4688 = vadd.f32 %v4686, %v4687
        %v4689 = vrot.slane %v4688, 2
        %v4690 = vadd.f32 %v4688, %v4689
        %v4691 = vrot.slane %v4690, 1
        %v4692 = vadd.f32 %v4690, %v4691
        %v4693 = vsel %vm2820, %v4637, 0.0
        %v4694 = vrot.slane %v4693, 4
        %v4695 = vadd.f32 %v4693, %v4694
        %v4696 = vrot.slane %v4695, 2
        %v4697 = vadd.f32 %v4695, %v4696
        %v4698 = vrot.slane %v4697, 1
        %v4699 = vadd.f32 %v4697, %v4698
        %v4700 = vsel %vm2820, %v4638, 0.0
        %v4701 = vrot.slane %v4700, 4
        %v4702 = vadd.f32 %v4700, %v4701
        %v4703 = vrot.slane %v4702, 2
        %v4704 = vadd.f32 %v4702, %v4703
        %v4705 = vrot.slane %v4704, 1
        %v4706 = vadd.f32 %v4704, %v4705
        %v4707 = vsel %vm2820, %v4639, 0.0
        %v4708 = vrot.slane %v4707, 4
        %v4709 = vadd.f32 %v4707, %v4708
        %v4710 = vrot.slane %v4709, 2
        %v4711 = vadd.f32 %v4709, %v4710
        %v4712 = vrot.slane %v4711, 1
        %v4713 = vadd.f32 %v4711, %v4712
        %v4714 = vsel %vm2820, %v4640, 0.0
        %v4715 = vrot.slane %v4714, 4
        %v4716 = vadd.f32 %v4714, %v4715
        %v4717 = vrot.slane %v4716, 2
        %v4718 = vadd.f32 %v4716, %v4717
        %v4719 = vrot.slane %v4718, 1
        %v4720 = vadd.f32 %v4718, %v4719
        %v4721 = vsel %vm2820, %v4641, 0.0
        %v4722 = vrot.slane %v4721, 4
        %v4723 = vadd.f32 %v4721, %v4722
        %v4724 = vrot.slane %v4723, 2
        %v4725 = vadd.f32 %v4723, %v4724
        %v4726 = vrot.slane %v4725, 1
        %v4727 = vadd.f32 %v4725, %v4726
        %v4728 = vsel %vm2820, %v4642, 0.0
        %v4729 = vrot.slane %v4728, 4
        %v4730 = vadd.f32 %v4728, %v4729
        %v4731 = vrot.slane %v4730, 2
        %v4732 = vadd.f32 %v4730, %v4731
        %v4733 = vrot.slane %v4732, 1
        %v4734 = vadd.f32 %v4732, %v4733
        %v4735 = vsel %vm2820, %v4643, 0.0
        %v4736 = vrot.slane %v4735, 4
        %v4737 = vadd.f32 %v4735, %v4736
        %v4738 = vrot.slane %v4737, 2
        %v4739 = vadd.f32 %v4737, %v4738
        %v4740 = vrot.slane %v4739, 1
        %v4741 = vadd.f32 %v4739, %v4740
        %v4742 = vsel %vm2820, %v4644, 0.0
        %v4743 = vrot.slane %v4742, 4
        %v4744 = vadd.f32 %v4742, %v4743
        %v4745 = vrot.slane %v4744, 2
        %v4746 = vadd.f32 %v4744, %v4745
        %v4747 = vrot.slane %v4746, 1
        %v4748 = vadd.f32 %v4746, %v4747
        %v4749 = vsel %vm2820, %v4645, 0.0
        %v4750 = vrot.slane %v4749, 4
        %v4751 = vadd.f32 %v4749, %v4750
        %v4752 = vrot.slane %v4751, 2
        %v4753 = vadd.f32 %v4751, %v4752
        %v4754 = vrot.slane %v4753, 1
        %v4755 = vadd.f32 %v4753, %v4754
        %v4756 = vsel %vm2820, %v4646, 0.0
        %v4757 = vrot.slane %v4756, 4
        %v4758 = vadd.f32 %v4756, %v4757
        %v4759 = vrot.slane %v4758, 2
        %v4760 = vadd.f32 %v4758, %v4759
        %v4761 = vrot.slane %v4760, 1
        %v4762 = vadd.f32 %v4760, %v4761
        %v4763 = vsel %vm2820, %v4647, 0.0
        %v4764 = vrot.slane %v4763, 4
        %v4765 = vadd.f32 %v4763, %v4764
        %v4766 = vrot.slane %v4765, 2
        %v4767 = vadd.f32 %v4765, %v4766
        %v4768 = vrot.slane %v4767, 1
        %v4769 = vadd.f32 %v4767, %v4768
        %v4770 = vsel %vm2820, %v4648, 0.0
        %v4771 = vrot.slane %v4770, 4
        %v4772 = vadd.f32 %v4770, %v4771
        %v4773 = vrot.slane %v4772, 2
        %v4774 = vadd.f32 %v4772, %v4773
        %v4775 = vrot.slane %v4774, 1
        %v4776 = vadd.f32 %v4774, %v4775
        %v4777 = vsel %vm2820, %v4649, 0.0
        %v4778 = vrot.slane %v4777, 4
        %v4779 = vadd.f32 %v4777, %v4778
        %v4780 = vrot.slane %v4779, 2
        %v4781 = vadd.f32 %v4779, %v4780
        %v4782 = vrot.slane %v4781, 1
        %v4783 = vadd.f32 %v4781, %v4782
        %v4784 = vsel %vm2820, %v4650, 0.0
        %v4785 = vrot.slane %v4784, 4
        %v4786 = vadd.f32 %v4784, %v4785
        %v4787 = vrot.slane %v4786, 2
        %v4788 = vadd.f32 %v4786, %v4787
        %v4789 = vrot.slane %v4788, 1
        %v4790 = vadd.f32 %v4788, %v4789
        %v4791 = vsel %vm2820, %v4651, 0.0
        %v4792 = vrot.slane %v4791, 4
        %v4793 = vadd.f32 %v4791, %v4792
        %v4794 = vrot.slane %v4793, 2
        %v4795 = vadd.f32 %v4793, %v4794
        %v4796 = vrot.slane %v4795, 1
        %v4797 = vadd.f32 %v4795, %v4796
        %v4798 = vsel %vm2820, %v4652, 0.0
        %v4799 = vrot.slane %v4798, 4
        %v4800 = vadd.f32 %v4798, %v4799
        %v4801 = vrot.slane %v4800, 2
        %v4802 = vadd.f32 %v4800, %v4801
        %v4803 = vrot.slane %v4802, 1
        %v4804 = vadd.f32 %v4802, %v4803
        %v4805 = vsel %vm2820, %v4653, 0.0
        %v4806 = vrot.slane %v4805, 4
        %v4807 = vadd.f32 %v4805, %v4806
        %v4808 = vrot.slane %v4807, 2
        %v4809 = vadd.f32 %v4807, %v4808
        %v4810 = vrot.slane %v4809, 1
        %v4811 = vadd.f32 %v4809, %v4810
        %v4812 = vsel %vm2820, %v4654, 0.0
        %v4813 = vrot.slane %v4812, 4
        %v4814 = vadd.f32 %v4812, %v4813
        %v4815 = vrot.slane %v4814, 2
        %v4816 = vadd.f32 %v4814, %v4815
        %v4817 = vrot.slane %v4816, 1
        %v4818 = vadd.f32 %v4816, %v4817
        %v4819 = vsel %vm2820, %v4655, 0.0
        %v4820 = vrot.slane %v4819, 4
        %v4821 = vadd.f32 %v4819, %v4820
        %v4822 = vrot.slane %v4821, 2
        %v4823 = vadd.f32 %v4821, %v4822
        %v4824 = vrot.slane %v4823, 1
        %v4825 = vadd.f32 %v4823, %v4824
        %v4826 = vsel %vm2820, %v4656, 0.0
        %v4827 = vrot.slane %v4826, 4
        %v4828 = vadd.f32 %v4826, %v4827
        %v4829 = vrot.slane %v4828, 2
        %v4830 = vadd.f32 %v4828, %v4829
        %v4831 = vrot.slane %v4830, 1
        %v4832 = vadd.f32 %v4830, %v4831
        %v4833 = vsel %vm2820, %v4657, 0.0
        %v4834 = vrot.slane %v4833, 4
        %v4835 = vadd.f32 %v4833, %v4834
        %v4836 = vrot.slane %v4835, 2
        %v4837 = vadd.f32 %v4835, %v4836
        %v4838 = vrot.slane %v4837, 1
        %v4839 = vadd.f32 %v4837, %v4838
        %v4840 = vsel %vm2820, %v4658, 0.0
        %v4841 = vrot.slane %v4840, 4
        %v4842 = vadd.f32 %v4840, %v4841
        %v4843 = vrot.slane %v4842, 2
        %v4844 = vadd.f32 %v4842, %v4843
        %v4845 = vrot.slane %v4844, 1
        %v4846 = vadd.f32 %v4844, %v4845
        %v4847 = vsel %vm2820, %v4659, 0.0
        %v4848 = vrot.slane %v4847, 4
        %v4849 = vadd.f32 %v4847, %v4848
        %v4850 = vrot.slane %v4849, 2
        %v4851 = vadd.f32 %v4849, %v4850
        %v4852 = vrot.slane %v4851, 1
        %v4853 = vadd.f32 %v4851, %v4852
        %v4854 = vsel %vm2820, %v4660, 0.0
        %v4855 = vrot.slane %v4854, 4
        %v4856 = vadd.f32 %v4854, %v4855
        %v4857 = vrot.slane %v4856, 2
        %v4858 = vadd.f32 %v4856, %v4857
        %v4859 = vrot.slane %v4858, 1
        %v4860 = vadd.f32 %v4858, %v4859
        %v4861 = vsel %vm2820, %v4661, 0.0
        %v4862 = vrot.slane %v4861, 4
        %v4863 = vadd.f32 %v4861, %v4862
        %v4864 = vrot.slane %v4863, 2
        %v4865 = vadd.f32 %v4863, %v4864
        %v4866 = vrot.slane %v4865, 1
        %v4867 = vadd.f32 %v4865, %v4866
        %v4868 = vsel %vm2820, %v4662, 0.0
        %v4869 = vrot.slane %v4868, 4
        %v4870 = vadd.f32 %v4868, %v4869
        %v4871 = vrot.slane %v4870, 2
        %v4872 = vadd.f32 %v4870, %v4871
        %v4873 = vrot.slane %v4872, 1
        %v4874 = vadd.f32 %v4872, %v4873
        %v4875 = vsel %vm2820, %v4663, 0.0
        %v4876 = vrot.slane %v4875, 4
        %v4877 = vadd.f32 %v4875, %v4876
        %v4878 = vrot.slane %v4877, 2
        %v4879 = vadd.f32 %v4877, %v4878
        %v4880 = vrot.slane %v4879, 1
        %v4881 = vadd.f32 %v4879, %v4880
        %v4882 = vsel %vm2820, %v4664, 0.0
        %v4883 = vrot.slane %v4882, 4
        %v4884 = vadd.f32 %v4882, %v4883
        %v4885 = vrot.slane %v4884, 2
        %v4886 = vadd.f32 %v4884, %v4885
        %v4887 = vrot.slane %v4886, 1
        %v4888 = vadd.f32 %v4886, %v4887
        %v4889 = vadd.f32 %v4441, %v4671
        %v4890 = vadd.f32 %v4442, %v4678
        %v4891 = vadd.f32 %v4443, %v4685
        %v4892 = vadd.f32 %v4444, %v4692
        %v4893 = vadd.f32 %v4445, %v4699
        %v4894 = vadd.f32 %v4446, %v4706
        %v4895 = vadd.f32 %v4447, %v4713
        %v4896 = vadd.f32 %v4448, %v4720
        %v4897 = vadd.f32 %v4449, %v4727
        %v4898 = vadd.f32 %v4450, %v4734
        %v4899 = vadd.f32 %v4451, %v4741
        %v4900 = vadd.f32 %v4452, %v4748
        %v4901 = vadd.f32 %v4453, %v4755
        %v4902 = vadd.f32 %v4454, %v4762
        %v4903 = vadd.f32 %v4455, %v4769
        %v4904 = vadd.f32 %v4456, %v4776
        %v4905 = vadd.f32 %v4457, %v4783
        %v4906 = vadd.f32 %v4458, %v4790
        %v4907 = vadd.f32 %v4459, %v4797
        %v4908 = vadd.f32 %v4460, %v4804
        %v4909 = vadd.f32 %v4461, %v4811
        %v4910 = vadd.f32 %v4462, %v4818
        %v4911 = vadd.f32 %v4463, %v4825
        %v4912 = vadd.f32 %v4464, %v4832
        %v4913 = vadd.f32 %v4465, %v4839
        %v4914 = vadd.f32 %v4466, %v4846
        %v4915 = vadd.f32 %v4467, %v4853
        %v4916 = vadd.f32 %v4468, %v4860
        %v4917 = vadd.f32 %v4469, %v4867
        %v4918 = vadd.f32 %v4470, %v4874
        %v4919 = vadd.f32 %v4471, %v4881
        %v4920 = vadd.f32 %v4472, %v4888
        %4922 = vset.pattern.permute.xlu0 0
        %4923 = vperm.xlu0 %4922, %v4161
        %v4924 = vpop.permute.xlu0 %4923
        %v4926 = vperm.slane %v4924, 0
        %4928 = vset.pattern.permute.xlu0 0
        %4929 = vperm.xlu0 %4928, %v4162
        %v4930 = vpop.permute.xlu0 %4929
        %v4932 = vperm.slane %v4930, 0
        %4934 = vset.pattern.permute.xlu0 0
        %4935 = vperm.xlu0 %4934, %v4163
        %v4936 = vpop.permute.xlu0 %4935
        %v4938 = vperm.slane %v4936, 0
        %4940 = vset.pattern.permute.xlu0 0
        %4941 = vperm.xlu0 %4940, %v4164
        %v4942 = vpop.permute.xlu0 %4941
        %v4944 = vperm.slane %v4942, 0
        %4946 = vset.pattern.permute.xlu0 0
        %4947 = vperm.xlu0 %4946, %v4165
        %v4948 = vpop.permute.xlu0 %4947
        %v4950 = vperm.slane %v4948, 0
        %4952 = vset.pattern.permute.xlu0 0
        %4953 = vperm.xlu0 %4952, %v4166
        %v4954 = vpop.permute.xlu0 %4953
        %v4956 = vperm.slane %v4954, 0
        %4958 = vset.pattern.permute.xlu0 0
        %4959 = vperm.xlu0 %4958, %v4167
        %v4960 = vpop.permute.xlu0 %4959
        %v4962 = vperm.slane %v4960, 0
        %4964 = vset.pattern.permute.xlu0 0
        %4965 = vperm.xlu0 %4964, %v4168
        %v4966 = vpop.permute.xlu0 %4965
        %v4968 = vperm.slane %v4966, 0
        %4970 = vset.pattern.permute.xlu0 0
        %4971 = vperm.xlu0 %4970, %v4169
        %v4972 = vpop.permute.xlu0 %4971
        %v4974 = vperm.slane %v4972, 0
        %4976 = vset.pattern.permute.xlu0 0
        %4977 = vperm.xlu0 %4976, %v4170
        %v4978 = vpop.permute.xlu0 %4977
        %v4980 = vperm.slane %v4978, 0
        %4982 = vset.pattern.permute.xlu0 0
        %4983 = vperm.xlu0 %4982, %v4171
        %v4984 = vpop.permute.xlu0 %4983
        %v4986 = vperm.slane %v4984, 0
        %4988 = vset.pattern.permute.xlu0 0
        %4989 = vperm.xlu0 %4988, %v4172
        %v4990 = vpop.permute.xlu0 %4989
        %v4992 = vperm.slane %v4990, 0
        %4994 = vset.pattern.permute.xlu0 0
        %4995 = vperm.xlu0 %4994, %v4173
        %v4996 = vpop.permute.xlu0 %4995
        %v4998 = vperm.slane %v4996, 0
        %5000 = vset.pattern.permute.xlu0 0
        %5001 = vperm.xlu0 %5000, %v4174
        %v5002 = vpop.permute.xlu0 %5001
        %v5004 = vperm.slane %v5002, 0
        %5006 = vset.pattern.permute.xlu0 0
        %5007 = vperm.xlu0 %5006, %v4175
        %v5008 = vpop.permute.xlu0 %5007
        %v5010 = vperm.slane %v5008, 0
        %5012 = vset.pattern.permute.xlu0 0
        %5013 = vperm.xlu0 %5012, %v4176
        %v5014 = vpop.permute.xlu0 %5013
        %v5016 = vperm.slane %v5014, 0
        %5018 = vset.pattern.permute.xlu0 0
        %5019 = vperm.xlu0 %5018, %v4177
        %v5020 = vpop.permute.xlu0 %5019
        %v5022 = vperm.slane %v5020, 0
        %5024 = vset.pattern.permute.xlu0 0
        %5025 = vperm.xlu0 %5024, %v4178
        %v5026 = vpop.permute.xlu0 %5025
        %v5028 = vperm.slane %v5026, 0
        %5030 = vset.pattern.permute.xlu0 0
        %5031 = vperm.xlu0 %5030, %v4179
        %v5032 = vpop.permute.xlu0 %5031
        %v5034 = vperm.slane %v5032, 0
        %5036 = vset.pattern.permute.xlu0 0
        %5037 = vperm.xlu0 %5036, %v4180
        %v5038 = vpop.permute.xlu0 %5037
        %v5040 = vperm.slane %v5038, 0
        %5042 = vset.pattern.permute.xlu0 0
        %5043 = vperm.xlu0 %5042, %v4181
        %v5044 = vpop.permute.xlu0 %5043
        %v5046 = vperm.slane %v5044, 0
        %5048 = vset.pattern.permute.xlu0 0
        %5049 = vperm.xlu0 %5048, %v4182
        %v5050 = vpop.permute.xlu0 %5049
        %v5052 = vperm.slane %v5050, 0
        %5054 = vset.pattern.permute.xlu0 0
        %5055 = vperm.xlu0 %5054, %v4183
        %v5056 = vpop.permute.xlu0 %5055
        %v5058 = vperm.slane %v5056, 0
        %5060 = vset.pattern.permute.xlu0 0
        %5061 = vperm.xlu0 %5060, %v4184
        %v5062 = vpop.permute.xlu0 %5061
        %v5064 = vperm.slane %v5062, 0
        %5066 = vset.pattern.permute.xlu0 0
        %5067 = vperm.xlu0 %5066, %v4185
        %v5068 = vpop.permute.xlu0 %5067
        %v5070 = vperm.slane %v5068, 0
        %5072 = vset.pattern.permute.xlu0 0
        %5073 = vperm.xlu0 %5072, %v4186
        %v5074 = vpop.permute.xlu0 %5073
        %v5076 = vperm.slane %v5074, 0
        %5078 = vset.pattern.permute.xlu0 0
        %5079 = vperm.xlu0 %5078, %v4187
        %v5080 = vpop.permute.xlu0 %5079
        %v5082 = vperm.slane %v5080, 0
        %5084 = vset.pattern.permute.xlu0 0
        %5085 = vperm.xlu0 %5084, %v4188
        %v5086 = vpop.permute.xlu0 %5085
        %v5088 = vperm.slane %v5086, 0
        %5090 = vset.pattern.permute.xlu0 0
        %5091 = vperm.xlu0 %5090, %v4189
        %v5092 = vpop.permute.xlu0 %5091
        %v5094 = vperm.slane %v5092, 0
        %5096 = vset.pattern.permute.xlu0 0
        %5097 = vperm.xlu0 %5096, %v4190
        %v5098 = vpop.permute.xlu0 %5097
        %v5100 = vperm.slane %v5098, 0
        %5102 = vset.pattern.permute.xlu0 0
        %5103 = vperm.xlu0 %5102, %v4191
        %v5104 = vpop.permute.xlu0 %5103
        %v5106 = vperm.slane %v5104, 0
        %5108 = vset.pattern.permute.xlu0 0
        %5109 = vperm.xlu0 %5108, %v4192
        %v5110 = vpop.permute.xlu0 %5109
        %v5112 = vperm.slane %v5110, 0
        %v5113 = vrcp.pop %v4926
        %v5114 = vmul.f32 %v4926, %v5113
        %v5115 = vsub.f32 1.0, %v5114
        %v5116 = vmul.f32 %v5113, %v5115
        %v5117 = vadd.f32 %v5113, %v5116
        %vm5118 = vweird.f32 %v4926
        %vm5119 = vweird.f32 %v5113
        %vm5120 = vmor %vm5118, %vm5119
        %v5121 = vsel %vm5120, %v5113, %v5117
        %v5122 = vand.u32 2147483647, %v4926
        %vm5123 = vcmp.eq.f32.partialorder %v5122, 8.507059e+37
        %v5124 = vand.u32 %v4926, 2147483648
        %v5125 = vor.u32 1.1754944e-38, %v5124
        %v5126 = vsel %vm5123, %v5125, %v5121
        %v5127 = vmul.f32 %v4889, %v5126
        %v5128 = vrcp.pop %v4932
        %v5129 = vmul.f32 %v4932, %v5128
        %v5130 = vsub.f32 1.0, %v5129
        %v5131 = vmul.f32 %v5128, %v5130
        %v5132 = vadd.f32 %v5128, %v5131
        %vm5133 = vweird.f32 %v4932
        %vm5134 = vweird.f32 %v5128
        %vm5135 = vmor %vm5133, %vm5134
        %v5136 = vsel %vm5135, %v5128, %v5132
        %v5137 = vand.u32 2147483647, %v4932
        %vm5138 = vcmp.eq.f32.partialorder %v5137, 8.507059e+37
        %v5139 = vand.u32 %v4932, 2147483648
        %v5140 = vor.u32 1.1754944e-38, %v5139
        %v5141 = vsel %vm5138, %v5140, %v5136
        %v5142 = vmul.f32 %v4890, %v5141
        %v5143 = vrcp.pop %v4938
        %v5144 = vmul.f32 %v4938, %v5143
        %v5145 = vsub.f32 1.0, %v5144
        %v5146 = vmul.f32 %v5143, %v5145
        %v5147 = vadd.f32 %v5143, %v5146
        %vm5148 = vweird.f32 %v4938
        %vm5149 = vweird.f32 %v5143
        %vm5150 = vmor %vm5148, %vm5149
        %v5151 = vsel %vm5150, %v5143, %v5147
        %v5152 = vand.u32 2147483647, %v4938
        %vm5153 = vcmp.eq.f32.partialorder %v5152, 8.507059e+37
        %v5154 = vand.u32 %v4938, 2147483648
        %v5155 = vor.u32 1.1754944e-38, %v5154
        %v5156 = vsel %vm5153, %v5155, %v5151
        %v5157 = vmul.f32 %v4891, %v5156
        %v5158 = vrcp.pop %v4944
        %v5159 = vmul.f32 %v4944, %v5158
        %v5160 = vsub.f32 1.0, %v5159
        %v5161 = vmul.f32 %v5158, %v5160
        %v5162 = vadd.f32 %v5158, %v5161
        %vm5163 = vweird.f32 %v4944
        %vm5164 = vweird.f32 %v5158
        %vm5165 = vmor %vm5163, %vm5164
        %v5166 = vsel %vm5165, %v5158, %v5162
        %v5167 = vand.u32 2147483647, %v4944
        %vm5168 = vcmp.eq.f32.partialorder %v5167, 8.507059e+37
        %v5169 = vand.u32 %v4944, 2147483648
        %v5170 = vor.u32 1.1754944e-38, %v5169
        %v5171 = vsel %vm5168, %v5170, %v5166
        %v5172 = vmul.f32 %v4892, %v5171
        %v5173 = vrcp.pop %v4950
        %v5174 = vmul.f32 %v4950, %v5173
        %v5175 = vsub.f32 1.0, %v5174
        %v5176 = vmul.f32 %v5173, %v5175
        %v5177 = vadd.f32 %v5173, %v5176
        %vm5178 = vweird.f32 %v4950
        %vm5179 = vweird.f32 %v5173
        %vm5180 = vmor %vm5178, %vm5179
        %v5181 = vsel %vm5180, %v5173, %v5177
        %v5182 = vand.u32 2147483647, %v4950
        %vm5183 = vcmp.eq.f32.partialorder %v5182, 8.507059e+37
        %v5184 = vand.u32 %v4950, 2147483648
        %v5185 = vor.u32 1.1754944e-38, %v5184
        %v5186 = vsel %vm5183, %v5185, %v5181
        %v5187 = vmul.f32 %v4893, %v5186
        %v5188 = vrcp.pop %v4956
        %v5189 = vmul.f32 %v4956, %v5188
        %v5190 = vsub.f32 1.0, %v5189
        %v5191 = vmul.f32 %v5188, %v5190
        %v5192 = vadd.f32 %v5188, %v5191
        %vm5193 = vweird.f32 %v4956
        %vm5194 = vweird.f32 %v5188
        %vm5195 = vmor %vm5193, %vm5194
        %v5196 = vsel %vm5195, %v5188, %v5192
        %v5197 = vand.u32 2147483647, %v4956
        %vm5198 = vcmp.eq.f32.partialorder %v5197, 8.507059e+37
        %v5199 = vand.u32 %v4956, 2147483648
        %v5200 = vor.u32 1.1754944e-38, %v5199
        %v5201 = vsel %vm5198, %v5200, %v5196
        %v5202 = vmul.f32 %v4894, %v5201
        %v5203 = vrcp.pop %v4962
        %v5204 = vmul.f32 %v4962, %v5203
        %v5205 = vsub.f32 1.0, %v5204
        %v5206 = vmul.f32 %v5203, %v5205
        %v5207 = vadd.f32 %v5203, %v5206
        %vm5208 = vweird.f32 %v4962
        %vm5209 = vweird.f32 %v5203
        %vm5210 = vmor %vm5208, %vm5209
        %v5211 = vsel %vm5210, %v5203, %v5207
        %v5212 = vand.u32 2147483647, %v4962
        %vm5213 = vcmp.eq.f32.partialorder %v5212, 8.507059e+37
        %v5214 = vand.u32 %v4962, 2147483648
        %v5215 = vor.u32 1.1754944e-38, %v5214
        %v5216 = vsel %vm5213, %v5215, %v5211
        %v5217 = vmul.f32 %v4895, %v5216
        %v5218 = vrcp.pop %v4968
        %v5219 = vmul.f32 %v4968, %v5218
        %v5220 = vsub.f32 1.0, %v5219
        %v5221 = vmul.f32 %v5218, %v5220
        %v5222 = vadd.f32 %v5218, %v5221
        %vm5223 = vweird.f32 %v4968
        %vm5224 = vweird.f32 %v5218
        %vm5225 = vmor %vm5223, %vm5224
        %v5226 = vsel %vm5225, %v5218, %v5222
        %v5227 = vand.u32 2147483647, %v4968
        %vm5228 = vcmp.eq.f32.partialorder %v5227, 8.507059e+37
        %v5229 = vand.u32 %v4968, 2147483648
        %v5230 = vor.u32 1.1754944e-38, %v5229
        %v5231 = vsel %vm5228, %v5230, %v5226
        %v5232 = vmul.f32 %v4896, %v5231
        %v5233 = vrcp.pop %v4974
        %v5234 = vmul.f32 %v4974, %v5233
        %v5235 = vsub.f32 1.0, %v5234
        %v5236 = vmul.f32 %v5233, %v5235
        %v5237 = vadd.f32 %v5233, %v5236
        %vm5238 = vweird.f32 %v4974
        %vm5239 = vweird.f32 %v5233
        %vm5240 = vmor %vm5238, %vm5239
        %v5241 = vsel %vm5240, %v5233, %v5237
        %v5242 = vand.u32 2147483647, %v4974
        %vm5243 = vcmp.eq.f32.partialorder %v5242, 8.507059e+37
        %v5244 = vand.u32 %v4974, 2147483648
        %v5245 = vor.u32 1.1754944e-38, %v5244
        %v5246 = vsel %vm5243, %v5245, %v5241
        %v5247 = vmul.f32 %v4897, %v5246
        %v5248 = vrcp.pop %v4980
        %v5249 = vmul.f32 %v4980, %v5248
        %v5250 = vsub.f32 1.0, %v5249
        %v5251 = vmul.f32 %v5248, %v5250
        %v5252 = vadd.f32 %v5248, %v5251
        %vm5253 = vweird.f32 %v4980
        %vm5254 = vweird.f32 %v5248
        %vm5255 = vmor %vm5253, %vm5254
        %v5256 = vsel %vm5255, %v5248, %v5252
        %v5257 = vand.u32 2147483647, %v4980
        %vm5258 = vcmp.eq.f32.partialorder %v5257, 8.507059e+37
        %v5259 = vand.u32 %v4980, 2147483648
        %v5260 = vor.u32 1.1754944e-38, %v5259
        %v5261 = vsel %vm5258, %v5260, %v5256
        %v5262 = vmul.f32 %v4898, %v5261
        %v5263 = vrcp.pop %v4986
        %v5264 = vmul.f32 %v4986, %v5263
        %v5265 = vsub.f32 1.0, %v5264
        %v5266 = vmul.f32 %v5263, %v5265
        %v5267 = vadd.f32 %v5263, %v5266
        %vm5268 = vweird.f32 %v4986
        %vm5269 = vweird.f32 %v5263
        %vm5270 = vmor %vm5268, %vm5269
        %v5271 = vsel %vm5270, %v5263, %v5267
        %v5272 = vand.u32 2147483647, %v4986
        %vm5273 = vcmp.eq.f32.partialorder %v5272, 8.507059e+37
        %v5274 = vand.u32 %v4986, 2147483648
        %v5275 = vor.u32 1.1754944e-38, %v5274
        %v5276 = vsel %vm5273, %v5275, %v5271
        %v5277 = vmul.f32 %v4899, %v5276
        %v5278 = vrcp.pop %v4992
        %v5279 = vmul.f32 %v4992, %v5278
        %v5280 = vsub.f32 1.0, %v5279
        %v5281 = vmul.f32 %v5278, %v5280
        %v5282 = vadd.f32 %v5278, %v5281
        %vm5283 = vweird.f32 %v4992
        %vm5284 = vweird.f32 %v5278
        %vm5285 = vmor %vm5283, %vm5284
        %v5286 = vsel %vm5285, %v5278, %v5282
        %v5287 = vand.u32 2147483647, %v4992
        %vm5288 = vcmp.eq.f32.partialorder %v5287, 8.507059e+37
        %v5289 = vand.u32 %v4992, 2147483648
        %v5290 = vor.u32 1.1754944e-38, %v5289
        %v5291 = vsel %vm5288, %v5290, %v5286
        %v5292 = vmul.f32 %v4900, %v5291
        %v5293 = vrcp.pop %v4998
        %v5294 = vmul.f32 %v4998, %v5293
        %v5295 = vsub.f32 1.0, %v5294
        %v5296 = vmul.f32 %v5293, %v5295
        %v5297 = vadd.f32 %v5293, %v5296
        %vm5298 = vweird.f32 %v4998
        %vm5299 = vweird.f32 %v5293
        %vm5300 = vmor %vm5298, %vm5299
        %v5301 = vsel %vm5300, %v5293, %v5297
        %v5302 = vand.u32 2147483647, %v4998
        %vm5303 = vcmp.eq.f32.partialorder %v5302, 8.507059e+37
        %v5304 = vand.u32 %v4998, 2147483648
        %v5305 = vor.u32 1.1754944e-38, %v5304
        %v5306 = vsel %vm5303, %v5305, %v5301
        %v5307 = vmul.f32 %v4901, %v5306
        %v5308 = vrcp.pop %v5004
        %v5309 = vmul.f32 %v5004, %v5308
        %v5310 = vsub.f32 1.0, %v5309
        %v5311 = vmul.f32 %v5308, %v5310
        %v5312 = vadd.f32 %v5308, %v5311
        %vm5313 = vweird.f32 %v5004
        %vm5314 = vweird.f32 %v5308
        %vm5315 = vmor %vm5313, %vm5314
        %v5316 = vsel %vm5315, %v5308, %v5312
        %v5317 = vand.u32 2147483647, %v5004
        %vm5318 = vcmp.eq.f32.partialorder %v5317, 8.507059e+37
        %v5319 = vand.u32 %v5004, 2147483648
        %v5320 = vor.u32 1.1754944e-38, %v5319
        %v5321 = vsel %vm5318, %v5320, %v5316
        %v5322 = vmul.f32 %v4902, %v5321
        %v5323 = vrcp.pop %v5010
        %v5324 = vmul.f32 %v5010, %v5323
        %v5325 = vsub.f32 1.0, %v5324
        %v5326 = vmul.f32 %v5323, %v5325
        %v5327 = vadd.f32 %v5323, %v5326
        %vm5328 = vweird.f32 %v5010
        %vm5329 = vweird.f32 %v5323
        %vm5330 = vmor %vm5328, %vm5329
        %v5331 = vsel %vm5330, %v5323, %v5327
        %v5332 = vand.u32 2147483647, %v5010
        %vm5333 = vcmp.eq.f32.partialorder %v5332, 8.507059e+37
        %v5334 = vand.u32 %v5010, 2147483648
        %v5335 = vor.u32 1.1754944e-38, %v5334
        %v5336 = vsel %vm5333, %v5335, %v5331
        %v5337 = vmul.f32 %v4903, %v5336
        %v5338 = vrcp.pop %v5016
        %v5339 = vmul.f32 %v5016, %v5338
        %v5340 = vsub.f32 1.0, %v5339
        %v5341 = vmul.f32 %v5338, %v5340
        %v5342 = vadd.f32 %v5338, %v5341
        %vm5343 = vweird.f32 %v5016
        %vm5344 = vweird.f32 %v5338
        %vm5345 = vmor %vm5343, %vm5344
        %v5346 = vsel %vm5345, %v5338, %v5342
        %v5347 = vand.u32 2147483647, %v5016
        %vm5348 = vcmp.eq.f32.partialorder %v5347, 8.507059e+37
        %v5349 = vand.u32 %v5016, 2147483648
        %v5350 = vor.u32 1.1754944e-38, %v5349
        %v5351 = vsel %vm5348, %v5350, %v5346
        %v5352 = vmul.f32 %v4904, %v5351
        %v5353 = vrcp.pop %v5022
        %v5354 = vmul.f32 %v5022, %v5353
        %v5355 = vsub.f32 1.0, %v5354
        %v5356 = vmul.f32 %v5353, %v5355
        %v5357 = vadd.f32 %v5353, %v5356
        %vm5358 = vweird.f32 %v5022
        %vm5359 = vweird.f32 %v5353
        %vm5360 = vmor %vm5358, %vm5359
        %v5361 = vsel %vm5360, %v5353, %v5357
        %v5362 = vand.u32 2147483647, %v5022
        %vm5363 = vcmp.eq.f32.partialorder %v5362, 8.507059e+37
        %v5364 = vand.u32 %v5022, 2147483648
        %v5365 = vor.u32 1.1754944e-38, %v5364
        %v5366 = vsel %vm5363, %v5365, %v5361
        %v5367 = vmul.f32 %v4905, %v5366
        %v5368 = vrcp.pop %v5028
        %v5369 = vmul.f32 %v5028, %v5368
        %v5370 = vsub.f32 1.0, %v5369
        %v5371 = vmul.f32 %v5368, %v5370
        %v5372 = vadd.f32 %v5368, %v5371
        %vm5373 = vweird.f32 %v5028
        %vm5374 = vweird.f32 %v5368
        %vm5375 = vmor %vm5373, %vm5374
        %v5376 = vsel %vm5375, %v5368, %v5372
        %v5377 = vand.u32 2147483647, %v5028
        %vm5378 = vcmp.eq.f32.partialorder %v5377, 8.507059e+37
        %v5379 = vand.u32 %v5028, 2147483648
        %v5380 = vor.u32 1.1754944e-38, %v5379
        %v5381 = vsel %vm5378, %v5380, %v5376
        %v5382 = vmul.f32 %v4906, %v5381
        %v5383 = vrcp.pop %v5034
        %v5384 = vmul.f32 %v5034, %v5383
        %v5385 = vsub.f32 1.0, %v5384
        %v5386 = vmul.f32 %v5383, %v5385
        %v5387 = vadd.f32 %v5383, %v5386
        %vm5388 = vweird.f32 %v5034
        %vm5389 = vweird.f32 %v5383
        %vm5390 = vmor %vm5388, %vm5389
        %v5391 = vsel %vm5390, %v5383, %v5387
        %v5392 = vand.u32 2147483647, %v5034
        %vm5393 = vcmp.eq.f32.partialorder %v5392, 8.507059e+37
        %v5394 = vand.u32 %v5034, 2147483648
        %v5395 = vor.u32 1.1754944e-38, %v5394
        %v5396 = vsel %vm5393, %v5395, %v5391
        %v5397 = vmul.f32 %v4907, %v5396
        %v5398 = vrcp.pop %v5040
        %v5399 = vmul.f32 %v5040, %v5398
        %v5400 = vsub.f32 1.0, %v5399
        %v5401 = vmul.f32 %v5398, %v5400
        %v5402 = vadd.f32 %v5398, %v5401
        %vm5403 = vweird.f32 %v5040
        %vm5404 = vweird.f32 %v5398
        %vm5405 = vmor %vm5403, %vm5404
        %v5406 = vsel %vm5405, %v5398, %v5402
        %v5407 = vand.u32 2147483647, %v5040
        %vm5408 = vcmp.eq.f32.partialorder %v5407, 8.507059e+37
        %v5409 = vand.u32 %v5040, 2147483648
        %v5410 = vor.u32 1.1754944e-38, %v5409
        %v5411 = vsel %vm5408, %v5410, %v5406
        %v5412 = vmul.f32 %v4908, %v5411
        %v5413 = vrcp.pop %v5046
        %v5414 = vmul.f32 %v5046, %v5413
        %v5415 = vsub.f32 1.0, %v5414
        %v5416 = vmul.f32 %v5413, %v5415
        %v5417 = vadd.f32 %v5413, %v5416
        %vm5418 = vweird.f32 %v5046
        %vm5419 = vweird.f32 %v5413
        %vm5420 = vmor %vm5418, %vm5419
        %v5421 = vsel %vm5420, %v5413, %v5417
        %v5422 = vand.u32 2147483647, %v5046
        %vm5423 = vcmp.eq.f32.partialorder %v5422, 8.507059e+37
        %v5424 = vand.u32 %v5046, 2147483648
        %v5425 = vor.u32 1.1754944e-38, %v5424
        %v5426 = vsel %vm5423, %v5425, %v5421
        %v5427 = vmul.f32 %v4909, %v5426
        %v5428 = vrcp.pop %v5052
        %v5429 = vmul.f32 %v5052, %v5428
        %v5430 = vsub.f32 1.0, %v5429
        %v5431 = vmul.f32 %v5428, %v5430
        %v5432 = vadd.f32 %v5428, %v5431
        %vm5433 = vweird.f32 %v5052
        %vm5434 = vweird.f32 %v5428
        %vm5435 = vmor %vm5433, %vm5434
        %v5436 = vsel %vm5435, %v5428, %v5432
        %v5437 = vand.u32 2147483647, %v5052
        %vm5438 = vcmp.eq.f32.partialorder %v5437, 8.507059e+37
        %v5439 = vand.u32 %v5052, 2147483648
        %v5440 = vor.u32 1.1754944e-38, %v5439
        %v5441 = vsel %vm5438, %v5440, %v5436
        %v5442 = vmul.f32 %v4910, %v5441
        %v5443 = vrcp.pop %v5058
        %v5444 = vmul.f32 %v5058, %v5443
        %v5445 = vsub.f32 1.0, %v5444
        %v5446 = vmul.f32 %v5443, %v5445
        %v5447 = vadd.f32 %v5443, %v5446
        %vm5448 = vweird.f32 %v5058
        %vm5449 = vweird.f32 %v5443
        %vm5450 = vmor %vm5448, %vm5449
        %v5451 = vsel %vm5450, %v5443, %v5447
        %v5452 = vand.u32 2147483647, %v5058
        %vm5453 = vcmp.eq.f32.partialorder %v5452, 8.507059e+37
        %v5454 = vand.u32 %v5058, 2147483648
        %v5455 = vor.u32 1.1754944e-38, %v5454
        %v5456 = vsel %vm5453, %v5455, %v5451
        %v5457 = vmul.f32 %v4911, %v5456
        %v5458 = vrcp.pop %v5064
        %v5459 = vmul.f32 %v5064, %v5458
        %v5460 = vsub.f32 1.0, %v5459
        %v5461 = vmul.f32 %v5458, %v5460
        %v5462 = vadd.f32 %v5458, %v5461
        %vm5463 = vweird.f32 %v5064
        %vm5464 = vweird.f32 %v5458
        %vm5465 = vmor %vm5463, %vm5464
        %v5466 = vsel %vm5465, %v5458, %v5462
        %v5467 = vand.u32 2147483647, %v5064
        %vm5468 = vcmp.eq.f32.partialorder %v5467, 8.507059e+37
        %v5469 = vand.u32 %v5064, 2147483648
        %v5470 = vor.u32 1.1754944e-38, %v5469
        %v5471 = vsel %vm5468, %v5470, %v5466
        %v5472 = vmul.f32 %v4912, %v5471
        %v5473 = vrcp.pop %v5070
        %v5474 = vmul.f32 %v5070, %v5473
        %v5475 = vsub.f32 1.0, %v5474
        %v5476 = vmul.f32 %v5473, %v5475
        %v5477 = vadd.f32 %v5473, %v5476
        %vm5478 = vweird.f32 %v5070
        %vm5479 = vweird.f32 %v5473
        %vm5480 = vmor %vm5478, %vm5479
        %v5481 = vsel %vm5480, %v5473, %v5477
        %v5482 = vand.u32 2147483647, %v5070
        %vm5483 = vcmp.eq.f32.partialorder %v5482, 8.507059e+37
        %v5484 = vand.u32 %v5070, 2147483648
        %v5485 = vor.u32 1.1754944e-38, %v5484
        %v5486 = vsel %vm5483, %v5485, %v5481
        %v5487 = vmul.f32 %v4913, %v5486
        %v5488 = vrcp.pop %v5076
        %v5489 = vmul.f32 %v5076, %v5488
        %v5490 = vsub.f32 1.0, %v5489
        %v5491 = vmul.f32 %v5488, %v5490
        %v5492 = vadd.f32 %v5488, %v5491
        %vm5493 = vweird.f32 %v5076
        %vm5494 = vweird.f32 %v5488
        %vm5495 = vmor %vm5493, %vm5494
        %v5496 = vsel %vm5495, %v5488, %v5492
        %v5497 = vand.u32 2147483647, %v5076
        %vm5498 = vcmp.eq.f32.partialorder %v5497, 8.507059e+37
        %v5499 = vand.u32 %v5076, 2147483648
        %v5500 = vor.u32 1.1754944e-38, %v5499
        %v5501 = vsel %vm5498, %v5500, %v5496
        %v5502 = vmul.f32 %v4914, %v5501
        %v5503 = vrcp.pop %v5082
        %v5504 = vmul.f32 %v5082, %v5503
        %v5505 = vsub.f32 1.0, %v5504
        %v5506 = vmul.f32 %v5503, %v5505
        %v5507 = vadd.f32 %v5503, %v5506
        %vm5508 = vweird.f32 %v5082
        %vm5509 = vweird.f32 %v5503
        %vm5510 = vmor %vm5508, %vm5509
        %v5511 = vsel %vm5510, %v5503, %v5507
        %v5512 = vand.u32 2147483647, %v5082
        %vm5513 = vcmp.eq.f32.partialorder %v5512, 8.507059e+37
        %v5514 = vand.u32 %v5082, 2147483648
        %v5515 = vor.u32 1.1754944e-38, %v5514
        %v5516 = vsel %vm5513, %v5515, %v5511
        %v5517 = vmul.f32 %v4915, %v5516
        %v5518 = vrcp.pop %v5088
        %v5519 = vmul.f32 %v5088, %v5518
        %v5520 = vsub.f32 1.0, %v5519
        %v5521 = vmul.f32 %v5518, %v5520
        %v5522 = vadd.f32 %v5518, %v5521
        %vm5523 = vweird.f32 %v5088
        %vm5524 = vweird.f32 %v5518
        %vm5525 = vmor %vm5523, %vm5524
        %v5526 = vsel %vm5525, %v5518, %v5522
        %v5527 = vand.u32 2147483647, %v5088
        %vm5528 = vcmp.eq.f32.partialorder %v5527, 8.507059e+37
        %v5529 = vand.u32 %v5088, 2147483648
        %v5530 = vor.u32 1.1754944e-38, %v5529
        %v5531 = vsel %vm5528, %v5530, %v5526
        %v5532 = vmul.f32 %v4916, %v5531
        %v5533 = vrcp.pop %v5094
        %v5534 = vmul.f32 %v5094, %v5533
        %v5535 = vsub.f32 1.0, %v5534
        %v5536 = vmul.f32 %v5533, %v5535
        %v5537 = vadd.f32 %v5533, %v5536
        %vm5538 = vweird.f32 %v5094
        %vm5539 = vweird.f32 %v5533
        %vm5540 = vmor %vm5538, %vm5539
        %v5541 = vsel %vm5540, %v5533, %v5537
        %v5542 = vand.u32 2147483647, %v5094
        %vm5543 = vcmp.eq.f32.partialorder %v5542, 8.507059e+37
        %v5544 = vand.u32 %v5094, 2147483648
        %v5545 = vor.u32 1.1754944e-38, %v5544
        %v5546 = vsel %vm5543, %v5545, %v5541
        %v5547 = vmul.f32 %v4917, %v5546
        %v5548 = vrcp.pop %v5100
        %v5549 = vmul.f32 %v5100, %v5548
        %v5550 = vsub.f32 1.0, %v5549
        %v5551 = vmul.f32 %v5548, %v5550
        %v5552 = vadd.f32 %v5548, %v5551
        %vm5553 = vweird.f32 %v5100
        %vm5554 = vweird.f32 %v5548
        %vm5555 = vmor %vm5553, %vm5554
        %v5556 = vsel %vm5555, %v5548, %v5552
        %v5557 = vand.u32 2147483647, %v5100
        %vm5558 = vcmp.eq.f32.partialorder %v5557, 8.507059e+37
        %v5559 = vand.u32 %v5100, 2147483648
        %v5560 = vor.u32 1.1754944e-38, %v5559
        %v5561 = vsel %vm5558, %v5560, %v5556
        %v5562 = vmul.f32 %v4918, %v5561
        %v5563 = vrcp.pop %v5106
        %v5564 = vmul.f32 %v5106, %v5563
        %v5565 = vsub.f32 1.0, %v5564
        %v5566 = vmul.f32 %v5563, %v5565
        %v5567 = vadd.f32 %v5563, %v5566
        %vm5568 = vweird.f32 %v5106
        %vm5569 = vweird.f32 %v5563
        %vm5570 = vmor %vm5568, %vm5569
        %v5571 = vsel %vm5570, %v5563, %v5567
        %v5572 = vand.u32 2147483647, %v5106
        %vm5573 = vcmp.eq.f32.partialorder %v5572, 8.507059e+37
        %v5574 = vand.u32 %v5106, 2147483648
        %v5575 = vor.u32 1.1754944e-38, %v5574
        %v5576 = vsel %vm5573, %v5575, %v5571
        %v5577 = vmul.f32 %v4919, %v5576
        %v5578 = vrcp.pop %v5112
        %v5579 = vmul.f32 %v5112, %v5578
        %v5580 = vsub.f32 1.0, %v5579
        %v5581 = vmul.f32 %v5578, %v5580
        %v5582 = vadd.f32 %v5578, %v5581
        %vm5583 = vweird.f32 %v5112
        %vm5584 = vweird.f32 %v5578
        %vm5585 = vmor %vm5583, %vm5584
        %v5586 = vsel %vm5585, %v5578, %v5582
        %v5587 = vand.u32 2147483647, %v5112
        %vm5588 = vcmp.eq.f32.partialorder %v5587, 8.507059e+37
        %v5589 = vand.u32 %v5112, 2147483648
        %v5590 = vor.u32 1.1754944e-38, %v5589
        %v5591 = vsel %vm5588, %v5590, %v5586
        %v5592 = vmul.f32 %v4920, %v5591
        %vm5593 = vcmp.gt.f32.partialorder %v5127, 0.0
        %vm5594 = vcmp.gt.f32.partialorder %v5142, 0.0
        %vm5595 = vcmp.gt.f32.partialorder %v5157, 0.0
        %vm5596 = vcmp.gt.f32.partialorder %v5172, 0.0
        %vm5597 = vcmp.gt.f32.partialorder %v5187, 0.0
        %vm5598 = vcmp.gt.f32.partialorder %v5202, 0.0
        %vm5599 = vcmp.gt.f32.partialorder %v5217, 0.0
        %vm5600 = vcmp.gt.f32.partialorder %v5232, 0.0
        %vm5601 = vcmp.gt.f32.partialorder %v5247, 0.0
        %vm5602 = vcmp.gt.f32.partialorder %v5262, 0.0
        %vm5603 = vcmp.gt.f32.partialorder %v5277, 0.0
        %vm5604 = vcmp.gt.f32.partialorder %v5292, 0.0
        %vm5605 = vcmp.gt.f32.partialorder %v5307, 0.0
        %vm5606 = vcmp.gt.f32.partialorder %v5322, 0.0
        %vm5607 = vcmp.gt.f32.partialorder %v5337, 0.0
        %vm5608 = vcmp.gt.f32.partialorder %v5352, 0.0
        %vm5609 = vcmp.gt.f32.partialorder %v5367, 0.0
        %vm5610 = vcmp.gt.f32.partialorder %v5382, 0.0
        %vm5611 = vcmp.gt.f32.partialorder %v5397, 0.0
        %vm5612 = vcmp.gt.f32.partialorder %v5412, 0.0
        %vm5613 = vcmp.gt.f32.partialorder %v5427, 0.0
        %vm5614 = vcmp.gt.f32.partialorder %v5442, 0.0
        %vm5615 = vcmp.gt.f32.partialorder %v5457, 0.0
        %vm5616 = vcmp.gt.f32.partialorder %v5472, 0.0
        %vm5617 = vcmp.gt.f32.partialorder %v5487, 0.0
        %vm5618 = vcmp.gt.f32.partialorder %v5502, 0.0
        %vm5619 = vcmp.gt.f32.partialorder %v5517, 0.0
        %vm5620 = vcmp.gt.f32.partialorder %v5532, 0.0
        %vm5621 = vcmp.gt.f32.partialorder %v5547, 0.0
        %vm5622 = vcmp.gt.f32.partialorder %v5562, 0.0
        %vm5623 = vcmp.gt.f32.partialorder %v5577, 0.0
        %vm5624 = vcmp.gt.f32.partialorder %v5592, 0.0
        %v5625 = vmul.f32 %v5127, 0.2
        %v5626 = vmul.f32 %v5142, 0.2
        %v5627 = vmul.f32 %v5157, 0.2
        %v5628 = vmul.f32 %v5172, 0.2
        %v5629 = vmul.f32 %v5187, 0.2
        %v5630 = vmul.f32 %v5202, 0.2
        %v5631 = vmul.f32 %v5217, 0.2
        %v5632 = vmul.f32 %v5232, 0.2
        %v5633 = vmul.f32 %v5247, 0.2
        %v5634 = vmul.f32 %v5262, 0.2
        %v5635 = vmul.f32 %v5277, 0.2
        %v5636 = vmul.f32 %v5292, 0.2
        %v5637 = vmul.f32 %v5307, 0.2
        %v5638 = vmul.f32 %v5322, 0.2
        %v5639 = vmul.f32 %v5337, 0.2
        %v5640 = vmul.f32 %v5352, 0.2
        %v5641 = vmul.f32 %v5367, 0.2
        %v5642 = vmul.f32 %v5382, 0.2
        %v5643 = vmul.f32 %v5397, 0.2
        %v5644 = vmul.f32 %v5412, 0.2
        %v5645 = vmul.f32 %v5427, 0.2
        %v5646 = vmul.f32 %v5442, 0.2
        %v5647 = vmul.f32 %v5457, 0.2
        %v5648 = vmul.f32 %v5472, 0.2
        %v5649 = vmul.f32 %v5487, 0.2
        %v5650 = vmul.f32 %v5502, 0.2
        %v5651 = vmul.f32 %v5517, 0.2
        %v5652 = vmul.f32 %v5532, 0.2
        %v5653 = vmul.f32 %v5547, 0.2
        %v5654 = vmul.f32 %v5562, 0.2
        %v5655 = vmul.f32 %v5577, 0.2
        %v5656 = vmul.f32 %v5592, 0.2
        %v5657 = vsel %vm5593, %v5127, %v5625
        %v5658 = vsel %vm5594, %v5142, %v5626
        %v5659 = vsel %vm5595, %v5157, %v5627
        %v5660 = vsel %vm5596, %v5172, %v5628
        %v5661 = vsel %vm5597, %v5187, %v5629
        %v5662 = vsel %vm5598, %v5202, %v5630
        %v5663 = vsel %vm5599, %v5217, %v5631
        %v5664 = vsel %vm5600, %v5232, %v5632
        %v5665 = vsel %vm5601, %v5247, %v5633
        %v5666 = vsel %vm5602, %v5262, %v5634
        %v5667 = vsel %vm5603, %v5277, %v5635
        %v5668 = vsel %vm5604, %v5292, %v5636
        %v5669 = vsel %vm5605, %v5307, %v5637
        %v5670 = vsel %vm5606, %v5322, %v5638
        %v5671 = vsel %vm5607, %v5337, %v5639
        %v5672 = vsel %vm5608, %v5352, %v5640
        %v5673 = vsel %vm5609, %v5367, %v5641
        %v5674 = vsel %vm5610, %v5382, %v5642
        %v5675 = vsel %vm5611, %v5397, %v5643
        %v5676 = vsel %vm5612, %v5412, %v5644
        %v5677 = vsel %vm5613, %v5427, %v5645
        %v5678 = vsel %vm5614, %v5442, %v5646
        %v5679 = vsel %vm5615, %v5457, %v5647
        %v5680 = vsel %vm5616, %v5472, %v5648
        %v5681 = vsel %vm5617, %v5487, %v5649
        %v5682 = vsel %vm5618, %v5502, %v5650
        %v5683 = vsel %vm5619, %v5517, %v5651
        %v5684 = vsel %vm5620, %v5532, %v5652
        %v5685 = vsel %vm5621, %v5547, %v5653
        %v5686 = vsel %vm5622, %v5562, %v5654
        %v5687 = vsel %vm5623, %v5577, %v5655
        %v5688 = vsel %vm5624, %v5592, %v5656
        %v5689 = vld [vmem:[%s8] sm:$0xff]
        %v5690 = vld [vmem:[%s8 + $0x8] sm:$0xff]
        %v5691 = vld [vmem:[%s9 + $0x5] sm:$0x1]
        %v5692 = vperm.slane %v5691, 0
        %5725 = vst [vmem:[#allocation1] ss:$9 sm:$0xff] %v5657
        %s5726 = scalar_lea.vmem [#allocation1], 1
        %5727 = vst [vmem:[%s5726] ss:$9 sm:$0xff] %v5658
        %s5728 = scalar_lea.vmem [#allocation1], 2
        %5729 = vst [vmem:[%s5728] ss:$9 sm:$0xff] %v5659
        %s5730 = scalar_lea.vmem [#allocation1], 3
        %5731 = vst [vmem:[%s5730] ss:$9 sm:$0xff] %v5660
        %s5732 = scalar_lea.vmem [#allocation1], 4
        %5733 = vst [vmem:[%s5732] ss:$9 sm:$0xff] %v5661
        %s5734 = scalar_lea.vmem [#allocation1], 5
        %5735 = vst [vmem:[%s5734] ss:$9 sm:$0xff] %v5662
        %s5736 = scalar_lea.vmem [#allocation1], 6
        %5737 = vst [vmem:[%s5736] ss:$9 sm:$0xff] %v5663
        %s5738 = scalar_lea.vmem [#allocation1], 7
        %5739 = vst [vmem:[%s5738] ss:$9 sm:$0xff] %v5664
        %v5740 = vld [vmem:[#allocation1] sm:$0xff]
        %5741 = vst [vmem:[#allocation1] ss:$9 sm:$0xff] %v5665
        %5742 = vst [vmem:[%s5726] ss:$9 sm:$0xff] %v5666
        %5743 = vst [vmem:[%s5728] ss:$9 sm:$0xff] %v5667
        %5744 = vst [vmem:[%s5730] ss:$9 sm:$0xff] %v5668
        %5745 = vst [vmem:[%s5732] ss:$9 sm:$0xff] %v5669
        %5746 = vst [vmem:[%s5734] ss:$9 sm:$0xff] %v5670
        %5747 = vst [vmem:[%s5736] ss:$9 sm:$0xff] %v5671
        %5748 = vst [vmem:[%s5738] ss:$9 sm:$0xff] %v5672
        %v5749 = vld [vmem:[#allocation1] sm:$0xff]
        %5750 = vst [vmem:[#allocation1] ss:$9 sm:$0xff] %v5673
        %5751 = vst [vmem:[%s5726] ss:$9 sm:$0xff] %v5674
        %5752 = vst [vmem:[%s5728] ss:$9 sm:$0xff] %v5675
        %5753 = vst [vmem:[%s5730] ss:$9 sm:$0xff] %v5676
        %5754 = vst [vmem:[%s5732] ss:$9 sm:$0xff] %v5677
        %5755 = vst [vmem:[%s5734] ss:$9 sm:$0xff] %v5678
        %5756 = vst [vmem:[%s5736] ss:$9 sm:$0xff] %v5679
        %5757 = vst [vmem:[%s5738] ss:$9 sm:$0xff] %v5680
        %v5758 = vld [vmem:[#allocation1] sm:$0xff]
        %5759 = vst [vmem:[#allocation1] ss:$9 sm:$0xff] %v5681
        %5760 = vst [vmem:[%s5726] ss:$9 sm:$0xff] %v5682
        %5761 = vst [vmem:[%s5728] ss:$9 sm:$0xff] %v5683
        %5762 = vst [vmem:[%s5730] ss:$9 sm:$0xff] %v5684
        %5763 = vst [vmem:[%s5732] ss:$9 sm:$0xff] %v5685
        %5764 = vst [vmem:[%s5734] ss:$9 sm:$0xff] %v5686
        %5765 = vst [vmem:[%s5736] ss:$9 sm:$0xff] %v5687
        %5766 = vst [vmem:[%s5738] ss:$9 sm:$0xff] %v5688
        %v5767 = vld [vmem:[#allocation1] sm:$0xff]
        %v5768 = vsel %vm2820, %v5740, 0
        %v5770 = vsel %vm2820, %v5749, 0
        %v5772 = vsel %vm2820, %v5758, 0
        %v5774 = vsel %vm2820, %v5767, 0
        %5776 = vmatpush.msra.mxu0 0.0
        %5777 = vmatpush.msra.mxu0 0.0
        %5778 = vmatpush.msra.mxu0 0.0
        %5779 = vmatpush.msra.mxu0 0.0
        %5780 = vmatpush.msra.mxu0 0.0
        %5781 = vmatpush.msra.mxu0 0.0
        %5782 = vmatpush.msra.mxu0 0.0
        %5783 = vmatpush.msra.mxu0 0.0
        %5784 = vmatpush.msra.mxu0 0.0
        %5785 = vmatpush.msra.mxu0 0.0
        %5786 = vmatpush.msra.mxu0 0.0
        %5787 = vmatpush.msra.mxu0 0.0
        %5788 = vmatpush.msra.mxu0 0.0
        %5789 = vmatpush.msra.mxu0 0.0
        %5790 = vmatpush.msra.mxu0 %v5690
        %5791 = vmatpush.msra.mxu0 %v5689
        %5792 = vmatmul.f32.gmra.mxu0 %v5768
        %v5793 = vpop.f32.mrf.mxu0
        %v5794 = vadd.f32 %v5692, %v5793
        %5795 = vmatmul.f32.gmra.mxu0 %v5770
        %v5796 = vpop.f32.mrf.mxu0
        %v5797 = vadd.f32 %v5692, %v5796
        %5798 = vmatmul.f32.gmra.mxu0 %v5772
        %v5799 = vpop.f32.mrf.mxu0
        %v5800 = vadd.f32 %v5692, %v5799
        %5801 = vmatmul.f32.gmra.mxu0 %v5774
        %v5802 = vpop.f32.mrf.mxu0
        %v5803 = vadd.f32 %v5692, %v5802
        %5804 = vdwg.mxu0
        %5805 = vst [vmem:[%s353] sm:$0xff] %v5794
        %5806 = vst [vmem:[%s353 + $0x8] sm:$0xff] %v5797
        %5807 = vst [vmem:[%s353 + $0x10] sm:$0xff] %v5800
        %5808 = vst [vmem:[%s353 + $0x18] sm:$0xff] %v5803
        %s5809 = sand.u32 %s247, 1
        %s5810 = scalar_lea.sflag [#allocation3], %s5809
        %s5811 = sand.u32 %s247, 1
        %s5812 = smul.addr %s5811, 32
        %s5813 = scalar_lea.vmem [#allocation2], %s5812
        // Predicated region
        $region61: #{tpu_custom_call.1} parent=59 // pred_check
          %p5814 = pneg %p257
        $region62: #{tpu_custom_call.1} parent=59 // pred_check_branch
          %5816 = sbr.rel (%p5814) target = $region64
        $region63: #{tpu_custom_call.1} parent=59 // pred_region
          %s5817 = smul.u32 4, %s24
          %5819 = vsyncadd %s5810, 0
          %s5820 = smul.addr %s5817, 8
          %s5821 = scalar_lea.hbm %s10, %s5820
          %s5822 = sshll.u32 %s5813, 4
          %s5823 = int_to_ptr.vmem [resolvable:$true] %s5822
          %s5824 = sshll.u32 %s5821, 4
          %s5825 = int_to_ptr.hbm [resolvable:$true] %s5824
          %5830 = dma.vmem_to_hbm [thread:$0]  %s5823, 512, %s5825, %s5810, 128, 128, 8
        $region64: #{tpu_custom_call.1} parent=59 // pred_fallthru
          _
      $region60: #{tpu_custom_call.1} parent=5 // pred_fallthru
        _
      %p5831 = scmp.le.s32.totalorder 2, %s19
      // Predicated region
      $region65: #{tpu_custom_call.1} parent=5 // pred_check
        %p5832 = pneg %p5831
      $region66: #{tpu_custom_call.1} parent=5 // pred_check_branch
        %5834 = sbr.rel (%p5832) target = $region68
      $region67: #{tpu_custom_call.1} parent=5 // pred_region
        %s5835 = ssub.s32 %s19, 2
        // Predicated region
        $region69: #{tpu_custom_call.1} parent=67 // pred_check
          %p5836 = pneg %p263
        $region70: #{tpu_custom_call.1} parent=67 // pred_check_branch
          %5838 = sbr.rel (%p5836) target = $region72
        $region71: #{tpu_custom_call.1} parent=67 // pred_region
          %s5839 = sand.u32 %s248, 1
          %s5840 = scalar_lea.sflag [#allocation3], %s5839
          %s5841 = sand.u32 %s248, 1
          %s5842 = smul.addr %s5841, 32
          %s5843 = scalar_lea.vmem [#allocation2], %s5842
          %5845 = dma.done %s5840, 512
        $region72: #{tpu_custom_call.1} parent=67 // pred_fallthru
          _
      $region68: #{tpu_custom_call.1} parent=5 // pred_fallthru
        _
    $region6: #{tpu_custom_call.1} parent=1 // loop_footer
      %s23 = sadd.s32 1, %s19
    $region7: #{tpu_custom_call.1} parent=1 // loop_footer_branch
      %18 = sbr.rel target = $region3
    $region8: #{tpu_custom_call.1} parent=1 // loop_exit
      _
    %5846 = vsyncpa [#allocation3], 1
    %s5847 = scalar_lea.sflag [#allocation3], 1
    %5848 = vsyncpa %s5847, 1

</llo_original>
